<compile_context>
chip_gen: v6e
topology: v6e:2x2x1
jax: 0.10.0
libtpu: 0.0.40
codegen_flags: <defaults>
</compile_context>

<pallas_src>
import jax
import jax.numpy as jnp
from jax.experimental import pallas as pl
from jax.experimental.pallas import tpu as pltpu


def gat_kernel(b2_ref, a_srcT_ref, z_src_ref, dsthT_ref, wdT_ref, w2_ref,
               h_ref, adT_sc, m_sc, l_sc, acc_sc):
    """Grid = (dst tiles [parallel], src chunks [arbitrary])."""
    k = pl.program_id(1)

    @pl.when(k == 0)
    def _init():
        # Fused dst-side projection: (wdst @ w1_dst)^T @ dsth_tile^T -> (H, Tn).
        adT_sc[...] = jnp.dot(wdT_ref[...], dsthT_ref[...],
                              preferred_element_type=jnp.float32)
        m_sc[...] = jnp.full(m_sc.shape, -jnp.inf, m_sc.dtype)
        l_sc[...] = jnp.zeros(l_sc.shape, l_sc.dtype)
        acc_sc[...] = jnp.zeros(acc_sc.shape, acc_sc.dtype)

    # ---- edge attention MLP on this (dst tile x src chunk) block ----
    # a1[h, t, s] = a_dst[t, h] + a_src[s, h] (+ b1, already folded into a_src)
    # Lane axis = src chunk (128-wide, lane-dense).
    a1 = adT_sc[...][:, :, None] + a_srcT_ref[...][:, None, :]      # (H, Tn, Nsc)
    a1 = jnp.maximum(a1, 0.0)                                       # relu (layer 1)
    e = jnp.sum(a1 * w2_ref[...][:, :, None], axis=0) + b2_ref[0]   # (Tn, Nsc)
    e = jnp.maximum(e, 0.0)                                         # relu (layer 2)

    # ---- online softmax over incoming edges (src axis = lanes) ----
    m_new = jnp.maximum(m_sc[...], jnp.max(e, axis=-1, keepdims=True))
    corr = jnp.exp(m_sc[...] - m_new)
    p = jnp.exp(e - m_new)
    l_sc[...] = corr * l_sc[...] + jnp.sum(p, axis=-1, keepdims=True)
    acc_sc[...] = corr * acc_sc[...] + jnp.dot(p, z_src_ref[...],
                                               preferred_element_type=jnp.float32)
    m_sc[...] = m_new

    @pl.when(k == pl.num_programs(1) - 1)
    def _finalize():
        # Deferred normalization: scale the (Tn, D) accumulator once instead of
        # dividing the full (Tn, Ns) attention matrix.
        h_ref[...] = (acc_sc[...] * (1.0 / l_sc[...])).astype(h_ref.dtype)


def gat_forward(srch, dsth, params, *, tile_nd=128, tile_ns=128):
    """Dense-bipartite-graph GAT forward.

    Grid tiles the destination nodes (parallel axis, megacore-shardable) and
    chunks the source nodes (arbitrary / reduction axis, online softmax).
    """
    Ns, src_dim = srch.shape
    Nd, dst_dim = dsth.shape
    wsrc, wdst, w1, b1, w2, b2 = params
    D = wsrc.shape[1]
    H = w1.shape[1]

    tile_nd = min(tile_nd, Nd)
    tile_ns = min(tile_ns, Ns)
    assert Nd % tile_nd == 0, "Nd must be divisible by tile_nd"
    assert Ns % tile_ns == 0, "Ns must be divisible by tile_ns"

    # ---- hoisted src-side work: one fused XLA matmul, done ONCE ----
    w1s, w1d = w1[:D, :], w1[D:, :]
    ws_cat = jnp.concatenate([wsrc, wsrc @ w1s], axis=1)            # (src_dim, D+H)
    zs_as = srch.astype(jnp.float32) @ ws_cat                        # (Ns, D+H)
    z_src = zs_as[:, :D]                                             # (Ns, D)
    a_srcT = (zs_as[:, D:] + b1[None, :]).T                          # (H, Ns), b1 folded

    # ---- dst-side fused weight; dsth passed transposed so the per-tile
    #      projection lands directly in (H, Tn) without an in-kernel transpose.
    wdT = (wdst @ w1d).T.astype(jnp.float32)                         # (H, dst_dim)
    dsthT = dsth.astype(jnp.float32).T                               # (dst_dim, Nd)

    w2_col = w2.reshape(H, 1).astype(jnp.float32)
    b2_s = b2.reshape(1).astype(jnp.float32)                         # SMEM scalar

    grid = (Nd // tile_nd, Ns // tile_ns)

    return pl.pallas_call(
        gat_kernel,
        out_shape=jax.ShapeDtypeStruct((Nd, D), jnp.float32),
        grid=grid,
        in_specs=[
            pl.BlockSpec(memory_space=pltpu.MemorySpace.SMEM),        # b2 scalar
            pl.BlockSpec((H, tile_ns), lambda j, k: (0, k)),          # a_src^T chunk
            pl.BlockSpec((tile_ns, D), lambda j, k: (k, 0)),          # z_src chunk
            pl.BlockSpec((dst_dim, tile_nd), lambda j, k: (0, j)),    # dsth^T tile
            pl.BlockSpec((H, dst_dim), lambda j, k: (0, 0)),          # fused dst weight
            pl.BlockSpec((H, 1), lambda j, k: (0, 0)),                # w2
        ],
        out_specs=pl.BlockSpec((tile_nd, D), lambda j, k: (j, 0)),
        scratch_shapes=[
            pltpu.VMEM((H, tile_nd), jnp.float32),    # a_dst^T (computed at k == 0)
            pltpu.VMEM((tile_nd, 1), jnp.float32),    # running max
            pltpu.VMEM((tile_nd, 1), jnp.float32),    # running softmax denominator
            pltpu.VMEM((tile_nd, D), jnp.float32),    # running (unnormalized) output
        ],
        # For much larger tiles, also raise vmem_limit_bytes here (esp. on v5e's
        # 16 MiB default scoped limit); current usage is only a few MiB.
        compiler_params=pltpu.CompilerParams(
            dimension_semantics=("parallel", "arbitrary")),
    )(b2_s, a_srcT, z_src, dsthT, wdT, w2_col)


def gat_reference(srch, dsth, params):
    """Pure-JAX reference mirroring the PyTorch/DGL semantics."""
    wsrc, wdst, w1, b1, w2, b2 = params
    z_src = srch @ wsrc
    z_dst = dsth @ wdst
    Ns, Nd = z_src.shape[0], z_dst.shape[0]
    # edge (i, j): concat([z_src[i], z_dst[j]])
    z2 = jnp.concatenate([jnp.repeat(z_src, Nd, axis=0),
                          jnp.tile(z_dst, (Ns, 1))], axis=1)
    a = jnp.maximum(z2 @ w1 + b1, 0.0)
    e = jnp.maximum(a @ w2 + b2, 0.0).reshape(Ns, Nd)
    alpha = jax.nn.softmax(e, axis=0)        # softmax over incoming edges per dst
    return alpha.T @ z_src                   # (Nd, D)


if __name__ == "__main__":
    key = jax.random.PRNGKey(0)
    # Small but tiling-exercising shapes: 2 dst tiles x 2 src chunks.
    Ns, Nd = 256, 256
    src_dim, dst_dim, out_dim, attn_hidden = 64, 48, 32, 32

    ks = jax.random.split(key, 8)

    def uinit(k, shape, fan_in):
        bound = 1.0 / jnp.sqrt(float(fan_in))
        return jax.random.uniform(k, shape, jnp.float32, -bound, bound)

    srch = jax.random.normal(ks[0], (Ns, src_dim), jnp.float32)
    dsth = jax.random.normal(ks[1], (Nd, dst_dim), jnp.float32)

    # src_fc / dst_fc (bias=False), stored pre-transposed as (in, out)
    wsrc = uinit(ks[2], (src_dim, out_dim), src_dim)
    wdst = uinit(ks[3], (dst_dim, out_dim), dst_dim)
    # attn_fc: Linear(2*out_dim -> attn_hidden) + ReLU, Linear(attn_hidden -> 1) + ReLU
    w1 = uinit(ks[4], (2 * out_dim, attn_hidden), 2 * out_dim)
    b1 = uinit(ks[5], (attn_hidden,), 2 * out_dim)
    w2 = uinit(ks[6], (attn_hidden, 1), attn_hidden)
    b2 = uinit(ks[7], (1,), attn_hidden)

    params = (wsrc, wdst, w1, b1, w2, b2)

    h = gat_forward(srch, dsth, params, tile_nd=128, tile_ns=128)
    h = jax.block_until_ready(h)

    ref = gat_reference(srch, dsth, params)
    err = float(jnp.max(jnp.abs(h - ref)))
    assert jnp.allclose(h, ref, atol=1e-4, rtol=1e-4), f"max abs err {err}"
    print("KERNEL_OK")
</pallas_src>

<mosaic_0001>
module attributes {stable_mosaic.version = 11 : i64} {
  func.func @gat_kernel(%arg0: i32, %arg1: i32, %arg2: memref<1xf32, #tpu.memory_space<smem>>, %arg3: memref<32x128xf32, #tpu.memory_space<vmem>>, %arg4: memref<128x32xf32, #tpu.memory_space<vmem>>, %arg5: memref<48x128xf32, #tpu.memory_space<vmem>>, %arg6: memref<32x48xf32, #tpu.memory_space<vmem>>, %arg7: memref<32x1xf32, #tpu.memory_space<vmem>>, %arg8: memref<128x32xf32, #tpu.memory_space<vmem>>, %arg9: memref<32x128xf32, #tpu.memory_space<vmem>>, %arg10: memref<128x1xf32, #tpu.memory_space<vmem>>, %arg11: memref<128x1xf32, #tpu.memory_space<vmem>>, %arg12: memref<128x32xf32, #tpu.memory_space<vmem>>) attributes {dimension_semantics = [#tpu.dimension_semantics<parallel>, #tpu.dimension_semantics<arbitrary>], iteration_bounds = array<i64: 2, 2>, scalar_prefetch = 0 : i64, scratch_operands = 4 : i64, tpu.core_type = #tpu.core_type<tc>, window_params = [{transform_indices = @transform_0, window_bounds = array<i64: 1>}, {transform_indices = @transform_1, window_bounds = array<i64: 32, 128>}, {transform_indices = @transform_2, window_bounds = array<i64: 128, 32>}, {transform_indices = @transform_3, window_bounds = array<i64: 48, 128>}, {pipeline_mode = #tpu.pipeline_mode<synchronous>, transform_indices = @transform_4, window_bounds = array<i64: 32, 48>}, {pipeline_mode = #tpu.pipeline_mode<synchronous>, transform_indices = @transform_5, window_bounds = array<i64: 32, 1>}, {transform_indices = @transform_6, window_bounds = array<i64: 128, 32>}]} {
    %c0_i32 = arith.constant 0 : i32
    %0 = arith.cmpi eq, %arg1, %c0_i32 : i32
    %1 = arith.extui %0 : i1 to i32
    %c0_i32_0 = arith.constant 0 : i32
    %2 = arith.cmpi ne, %1, %c0_i32_0 : i32
    scf.if %2 {
      %c0_29 = arith.constant 0 : index
      %c0_30 = arith.constant 0 : index
      %49 = vector.load %arg6[%c0_29, %c0_30] : memref<32x48xf32, #tpu.memory_space<vmem>>, vector<32x48xf32>
      %c0_31 = arith.constant 0 : index
      %c0_32 = arith.constant 0 : index
      %50 = vector.load %arg5[%c0_31, %c0_32] : memref<48x128xf32, #tpu.memory_space<vmem>>, vector<48x128xf32>
      %cst_33 = arith.constant dense<0.000000e+00> : vector<32x128xf32>
      %51 = tpu.matmul %49, %50, %cst_33 {dimension_numbers = #tpu.dot_dimension_numbers<[1], [0], [0], [1], [0, 0, 1, 1], [], []>} : vector<32x48xf32>, vector<48x128xf32>, vector<32x128xf32> -> vector<32x128xf32>
      %c0_34 = arith.constant 0 : index
      %c0_35 = arith.constant 0 : index
      %52 = vector.load %arg9[%c0_34, %c0_35] : memref<32x128xf32, #tpu.memory_space<vmem>>, vector<32x128xf32>
      tpu.vector_store %arg9[%c0_34, %c0_35], %51 {strides = array<i32>} : memref<32x128xf32, #tpu.memory_space<vmem>>, vector<32x128xf32>,
      %cst_36 = arith.constant 0xFF800000 : f32
      %53 = vector.broadcast %cst_36 : f32 to vector<128x1xf32>
      %c0_37 = arith.constant 0 : index
      %c0_38 = arith.constant 0 : index
      %54 = vector.load %arg10[%c0_37, %c0_38] : memref<128x1xf32, #tpu.memory_space<vmem>>, vector<128x1xf32>
      tpu.vector_store %arg10[%c0_37, %c0_38], %53 {strides = array<i32>} : memref<128x1xf32, #tpu.memory_space<vmem>>, vector<128x1xf32>,
      %cst_39 = arith.constant 0.000000e+00 : f32
      %55 = vector.broadcast %cst_39 : f32 to vector<128x1xf32>
      %c0_40 = arith.constant 0 : index
      %c0_41 = arith.constant 0 : index
      %56 = vector.load %arg11[%c0_40, %c0_41] : memref<128x1xf32, #tpu.memory_space<vmem>>, vector<128x1xf32>
      tpu.vector_store %arg11[%c0_40, %c0_41], %55 {strides = array<i32>} : memref<128x1xf32, #tpu.memory_space<vmem>>, vector<128x1xf32>,
      %cst_42 = arith.constant 0.000000e+00 : f32
      %57 = vector.broadcast %cst_42 : f32 to vector<128x32xf32>
      %c0_43 = arith.constant 0 : index
      %c0_44 = arith.constant 0 : index
      %58 = vector.load %arg12[%c0_43, %c0_44] : memref<128x32xf32, #tpu.memory_space<vmem>>, vector<128x32xf32>
      tpu.vector_store %arg12[%c0_43, %c0_44], %57 {strides = array<i32>} : memref<128x32xf32, #tpu.memory_space<vmem>>, vector<128x32xf32>,
    } else {
    }
    %c0 = arith.constant 0 : index
    %c0_1 = arith.constant 0 : index
    %3 = vector.load %arg9[%c0, %c0_1] : memref<32x128xf32, #tpu.memory_space<vmem>>, vector<32x128xf32>
    %4 = vector.shape_cast %3 : vector<32x128xf32> to vector<32x128x1xf32>
    %c0_2 = arith.constant 0 : index
    %c0_3 = arith.constant 0 : index
    %5 = vector.load %arg3[%c0_2, %c0_3] : memref<32x128xf32, #tpu.memory_space<vmem>>, vector<32x128xf32>
    %6 = vector.shape_cast %5 : vector<32x128xf32> to vector<32x1x128xf32>
    %7 = vector.broadcast %4 : vector<32x128x1xf32> to vector<32x128x128xf32>
    %8 = vector.broadcast %6 : vector<32x1x128xf32> to vector<32x128x128xf32>
    %9 = arith.addf %7, %8 : vector<32x128x128xf32>
    %cst = arith.constant 0.000000e+00 : f32
    %10 = vector.broadcast %cst : f32 to vector<32x128x128xf32>
    %11 = arith.maximumf %9, %10 : vector<32x128x128xf32>
    %c0_4 = arith.constant 0 : index
    %c0_5 = arith.constant 0 : index
    %12 = vector.load %arg7[%c0_4, %c0_5] : memref<32x1xf32, #tpu.memory_space<vmem>>, vector<32x1xf32>
    %13 = vector.shape_cast %12 : vector<32x1xf32> to vector<32x1x1xf32>
    %14 = vector.broadcast %13 : vector<32x1x1xf32> to vector<32x128x128xf32>
    %15 = arith.mulf %11, %14 : vector<32x128x128xf32>
    %cst_6 = arith.constant dense<0.000000e+00> : vector<128x128xf32>
    %16 = vector.multi_reduction <add>, %15, %cst_6 [0] : vector<32x128x128xf32> to vector<128x128xf32>
    %c0_7 = arith.constant 0 : index
    %17 = memref.load %arg2[%c0_7] : memref<1xf32, #tpu.memory_space<smem>>
    %18 = vector.broadcast %17 : f32 to vector<128x128xf32>
    %19 = arith.addf %16, %18 : vector<128x128xf32>
    %cst_8 = arith.constant 0.000000e+00 : f32
    %20 = vector.broadcast %cst_8 : f32 to vector<128x128xf32>
    %21 = arith.maximumf %19, %20 : vector<128x128xf32>
    %c0_9 = arith.constant 0 : index
    %c0_10 = arith.constant 0 : index
    %22 = vector.load %arg10[%c0_9, %c0_10] : memref<128x1xf32, #tpu.memory_space<vmem>>, vector<128x1xf32>
    %cst_11 = arith.constant dense<0xFF800000> : vector<128xf32>
    %23 = vector.multi_reduction <maximumf>, %21, %cst_11 [1] : vector<128x128xf32> to vector<128xf32>
    %24 = vector.shape_cast %23 : vector<128xf32> to vector<128x1xf32>
    %25 = arith.maximumf %22, %24 : vector<128x1xf32>
    %c0_12 = arith.constant 0 : index
    %c0_13 = arith.constant 0 : index
    %26 = vector.load %arg10[%c0_12, %c0_13] : memref<128x1xf32, #tpu.memory_space<vmem>>, vector<128x1xf32>
    %27 = arith.subf %26, %25 : vector<128x1xf32>
    %28 = math.exp %27 : vector<128x1xf32>
    %29 = vector.broadcast %25 : vector<128x1xf32> to vector<128x128xf32>
    %30 = arith.subf %21, %29 : vector<128x128xf32>
    %31 = math.exp %30 : vector<128x128xf32>
    %c0_14 = arith.constant 0 : index
    %c0_15 = arith.constant 0 : index
    %32 = vector.load %arg11[%c0_14, %c0_15] : memref<128x1xf32, #tpu.memory_space<vmem>>, vector<128x1xf32>
    %33 = arith.mulf %28, %32 : vector<128x1xf32>
    %cst_16 = arith.constant dense<0.000000e+00> : vector<128xf32>
    %34 = vector.multi_reduction <add>, %31, %cst_16 [1] : vector<128x128xf32> to vector<128xf32>
    %35 = vector.shape_cast %34 : vector<128xf32> to vector<128x1xf32>
    %36 = arith.addf %33, %35 : vector<128x1xf32>
    %c0_17 = arith.constant 0 : index
    %c0_18 = arith.constant 0 : index
    %37 = vector.load %arg11[%c0_17, %c0_18] : memref<128x1xf32, #tpu.memory_space<vmem>>, vector<128x1xf32>
    tpu.vector_store %arg11[%c0_17, %c0_18], %36 {strides = array<i32>} : memref<128x1xf32, #tpu.memory_space<vmem>>, vector<128x1xf32>,
    %c0_19 = arith.constant 0 : index
    %c0_20 = arith.constant 0 : index
    %38 = vector.load %arg12[%c0_19, %c0_20] : memref<128x32xf32, #tpu.memory_space<vmem>>, vector<128x32xf32>
    %39 = vector.broadcast %28 : vector<128x1xf32> to vector<128x32xf32>
    %40 = arith.mulf %39, %38 : vector<128x32xf32>
    %c0_21 = arith.constant 0 : index
    %c0_22 = arith.constant 0 : index
    %41 = vector.load %arg4[%c0_21, %c0_22] : memref<128x32xf32, #tpu.memory_space<vmem>>, vector<128x32xf32>
    %cst_23 = arith.constant dense<0.000000e+00> : vector<128x32xf32>
    %42 = tpu.matmul %31, %41, %cst_23 {dimension_numbers = #tpu.dot_dimension_numbers<[1], [0], [0], [1], [0, 0, 1, 1], [], []>} : vector<128x128xf32>, vector<128x32xf32>, vector<128x32xf32> -> vector<128x32xf32>
    %43 = arith.addf %40, %42 : vector<128x32xf32>
    %c0_24 = arith.constant 0 : index
    %c0_25 = arith.constant 0 : index
    %44 = vector.load %arg12[%c0_24, %c0_25] : memref<128x32xf32, #tpu.memory_space<vmem>>, vector<128x32xf32>
    tpu.vector_store %arg12[%c0_24, %c0_25], %43 {strides = array<i32>} : memref<128x32xf32, #tpu.memory_space<vmem>>, vector<128x32xf32>,
    %c0_26 = arith.constant 0 : index
    %c0_27 = arith.constant 0 : index
    %45 = vector.load %arg10[%c0_26, %c0_27] : memref<128x1xf32, #tpu.memory_space<vmem>>, vector<128x1xf32>
    tpu.vector_store %arg10[%c0_26, %c0_27], %25 {strides = array<i32>} : memref<128x1xf32, #tpu.memory_space<vmem>>, vector<128x1xf32>,
    %c1_i32 = arith.constant 1 : i32
    %46 = arith.cmpi eq, %arg1, %c1_i32 : i32
    %47 = arith.extui %46 : i1 to i32
    %c0_i32_28 = arith.constant 0 : i32
    %48 = arith.cmpi ne, %47, %c0_i32_28 : i32
    scf.if %48 {
      %c0_29 = arith.constant 0 : index
      %c0_30 = arith.constant 0 : index
      %49 = vector.load %arg12[%c0_29, %c0_30] : memref<128x32xf32, #tpu.memory_space<vmem>>, vector<128x32xf32>
      %c0_31 = arith.constant 0 : index
      %c0_32 = arith.constant 0 : index
      %50 = vector.load %arg11[%c0_31, %c0_32] : memref<128x1xf32, #tpu.memory_space<vmem>>, vector<128x1xf32>
      %cst_33 = arith.constant 1.000000e+00 : f32
      %51 = vector.broadcast %cst_33 : f32 to vector<128x1xf32>
      %52 = arith.divf %51, %50 : vector<128x1xf32>
      %53 = vector.broadcast %52 : vector<128x1xf32> to vector<128x32xf32>
      %54 = arith.mulf %49, %53 : vector<128x32xf32>
      %c0_34 = arith.constant 0 : index
      %c0_35 = arith.constant 0 : index
      %55 = vector.load %arg8[%c0_34, %c0_35] : memref<128x32xf32, #tpu.memory_space<vmem>>, vector<128x32xf32>
      tpu.vector_store %arg8[%c0_34, %c0_35], %54 {strides = array<i32>} : memref<128x32xf32, #tpu.memory_space<vmem>>, vector<128x32xf32>,
    } else {
    }
    return
  }
  func.func @transform_0(%arg0: i32, %arg1: i32) -> i32 {
    %c0_i32 = arith.constant 0 : i32
    %c0_i32_0 = arith.constant 0 : i32
    return %c0_i32 : i32
  }
  func.func @transform_1(%arg0: i32, %arg1: i32) -> (i32, i32) {
    %c0_i32 = arith.constant 0 : i32
    %c0_i32_0 = arith.constant 0 : i32
    return %c0_i32, %arg1 : i32, i32
  }
  func.func @transform_2(%arg0: i32, %arg1: i32) -> (i32, i32) {
    %c0_i32 = arith.constant 0 : i32
    %c0_i32_0 = arith.constant 0 : i32
    return %arg1, %c0_i32 : i32, i32
  }
  func.func @transform_3(%arg0: i32, %arg1: i32) -> (i32, i32) {
    %c0_i32 = arith.constant 0 : i32
    %c0_i32_0 = arith.constant 0 : i32
    return %c0_i32, %arg0 : i32, i32
  }
  func.func @transform_4(%arg0: i32, %arg1: i32) -> (i32, i32) {
    %c0_i32 = arith.constant 0 : i32
    %c0_i32_0 = arith.constant 0 : i32
    %c0_i32_1 = arith.constant 0 : i32
    return %c0_i32, %c0_i32_0 : i32, i32
  }
  func.func @transform_5(%arg0: i32, %arg1: i32) -> (i32, i32) {
    %c0_i32 = arith.constant 0 : i32
    %c0_i32_0 = arith.constant 0 : i32
    %c0_i32_1 = arith.constant 0 : i32
    return %c0_i32, %c0_i32_0 : i32, i32
  }
  func.func @transform_6(%arg0: i32, %arg1: i32) -> (i32, i32) {
    %c0_i32 = arith.constant 0 : i32
    %c0_i32_0 = arith.constant 0 : i32
    return %arg0, %c0_i32 : i32, i32
  }
}

</mosaic_0001>

<llo_original>
// kernel: tpu_custom_call.1
$region0: #{tpu_custom_call.1}
  #allocation0 [shape = 'u32[]', space=smem, size = 0x4, offset = 0x4, fixed_abs, tag = 'smem constant byte address 0x4 - core index']
  #allocation1 [shape = 'u32[144,128]{1,0:T(1,128)}', space=vmem, size = 0x12000, scoped, tag = 'internal scratch']
  #allocation2 [shape = 'f32[32,128]{1,0:T(8,128)}', space=vmem, size = 0x4000, scoped, tag = 'scratch operand']
  #allocation3 [shape = 'f32[128,1]{1,0:T(8,128)}', space=vmem, size = 0x10000, scoped, tag = 'scratch operand']
  #allocation4 [shape = 'f32[128,1]{1,0:T(8,128)}', space=vmem, size = 0x10000, scoped, tag = 'scratch operand']
  #allocation5 [shape = 'f32[128,32]{1,0:T(8,128)}', space=vmem, size = 0x10000, scoped, tag = 'scratch operand']
  #allocation6 [shape = 'f32[1]{0:T(128)S(6)}', space=smem, size = 0x200, scoped, tag = 'scoped memory for tpu_custom_call.1']
  %s0 = inlined_call_operand.<no memory space> [shape: f32[1], index: 0, kind: input, shape index: {}]
  %s1 = inlined_call_operand.vmem [shape: f32[32,256], index: 1, kind: input, shape index: {}]
  %s2 = inlined_call_operand.vmem [shape: f32[256,32], index: 2, kind: input, shape index: {}]
  %s3 = inlined_call_operand.vmem [shape: f32[48,256], index: 3, kind: input, shape index: {}]
  %s4 = inlined_call_operand.vmem [shape: f32[32,48], index: 4, kind: input, shape index: {}]
  %s5 = inlined_call_operand.vmem [shape: f32[32,1], index: 5, kind: input, shape index: {}]
  %s6 = inlined_call_operand.vmem [shape: f32[256,32], index: 6, kind: output, shape index: {}]
  %s7 = sld [smem:[#allocation0]]
  $region141: #{tpu_custom_call.1} parent=0
    _
  %s9 = ssub.s32 1, %s7
  %s10 = scalar_select 0, %s9, %s7
  %11 = sst [smem:[#allocation6]] %s0
  $region1: #{tpu_custom_call.1} parent=0
    #allocation7 [shape = 'u8[32768]{0}', space=vmem, size = 0x8000, scoped, tag = 'input window, operand 1']
    #allocation8 [shape = 'u8[49152]{0}', space=vmem, size = 0xc000, scoped, tag = 'input window, operand 3']
    loop: start=0, step=1, limit=6
    $region2: #{tpu_custom_call.1} parent=1 // loop_pre_header
      _
    $region3: #{tpu_custom_call.1} parent=1 // loop_header
      %s13 = sphi 0, %s17
      %p14 = scmp.ge.s32.totalorder %s13, 6
      %s20 = sphi 0, %s32
      %s21 = sphi 0, %s28
      %s22 = sphi 0, %s20
      %s23 = sphi 0, %s21
      %s24 = sphi 0, %s22
      %s25 = sphi 0, %s23
      %s33 = sphi 0, %s33
      %s35 = sphi 0, %s33
      %s36 = sphi 0, %s35
      %s50 = sphi 0, %s36
      %s56 = sphi 0, %s58
      %s59 = sphi 0, %s56
      %s60 = sphi 0, %s59
      %s76 = sphi 0, %s60
      %s82 = sphi 0, %s84
      %s85 = sphi 0, %s82
      %s86 = sphi 0, %s85
      %s102 = sphi 0, %s86
      %s108 = sphi 0, %s110
      %s111 = sphi 0, %s108
      %s112 = sphi 0, %s111
      %s128 = sphi 0, %s112
      %s132 = sphi 0, %s132
      %s134 = sphi 0, %s132
      %s135 = sphi 0, %s134
      %s149 = sphi 0, %s135
      %s153 = sphi 0, %s153
      %s155 = sphi 0, %s153
      %s156 = sphi 0, %s155
      %s170 = sphi 0, %s156
      %s176 = sphi 0, %s178
      %s179 = sphi 0, %s176
      %s180 = sphi 0, %s179
      %s196 = sphi 0, %s180
    $region4: #{tpu_custom_call.1} parent=1 // loop_header_branch
      %16 = sbr.rel (%p14) target = $region8
    $region5: #{tpu_custom_call.1} parent=1 // loop_body
      %s18 = ssub.s32 %s13, 1
      %s19 = ssub.s32 %s13, 2
      %s26 = sadd.s32 1, %s21
      %p27 = scmp.ge.s32.totalorder %s26, 2
      %s28 = scalar_select %p27, 0, %s26
      %s29 = sadd.s32 1, %s20
      %s30 = scalar_select %p27, %s29, %s20
      %p31 = scmp.ge.s32.totalorder %s30, 2
      %s32 = scalar_select %p31, 0, %s30
      %s34 = sadd.s32 %s33, 1
      %p37 = scmp.eq.s32.totalorder %s13, 3
      %p38 = scmp.ne.s32.totalorder %s33, %s35
      %p39 = scmp.eq.s32.totalorder %s13, 0
      %p40 = por %p38, %p39
      %p41 = scmp.ne.s32.totalorder %s33, %s35
      %p42 = scmp.eq.s32.totalorder %s18, 3
      %p43 = por %p41, %p42
      %p44 = scmp.ne.s32.totalorder %s35, %s36
      %p45 = scmp.eq.s32.totalorder %s18, 0
      %p46 = por %p44, %p45
      %p47 = scmp.ne.s32.totalorder %s35, %s36
      %p48 = scmp.eq.s32.totalorder %s19, 3
      %p49 = por %p47, %p48
      %p51 = scmp.ne.s32.totalorder %s36, %s50
      %p52 = scmp.eq.s32.totalorder %s19, 0
      %p53 = por %p51, %p52
      %s54 = ssub.s32 %s21, %s28
      %p55 = scmp.eq.s32.totalorder %s54, 0
      %s57 = sadd.s32 %s56, 1
      %s58 = scalar_select %p55, %s56, %s57
      %p61 = pneg %p55
      %p62 = scmp.eq.s32.totalorder %s13, 3
      %p63 = por %p61, %p62
      %p64 = scmp.ne.s32.totalorder %s56, %s59
      %p65 = scmp.eq.s32.totalorder %s13, 0
      %p66 = por %p64, %p65
      %p67 = scmp.ne.s32.totalorder %s56, %s59
      %p68 = scmp.eq.s32.totalorder %s18, 3
      %p69 = por %p67, %p68
      %p70 = scmp.ne.s32.totalorder %s59, %s60
      %p71 = scmp.eq.s32.totalorder %s18, 0
      %p72 = por %p70, %p71
      %p73 = scmp.ne.s32.totalorder %s59, %s60
      %p74 = scmp.eq.s32.totalorder %s19, 3
      %p75 = por %p73, %p74
      %p77 = scmp.ne.s32.totalorder %s60, %s76
      %p78 = scmp.eq.s32.totalorder %s19, 0
      %p79 = por %p77, %p78
      %s80 = ssub.s32 %s21, %s28
      %p81 = scmp.eq.s32.totalorder %s80, 0
      %s83 = sadd.s32 %s82, 1
      %s84 = scalar_select %p81, %s82, %s83
      %p87 = pneg %p81
      %p88 = scmp.eq.s32.totalorder %s13, 3
      %p89 = por %p87, %p88
      %p90 = scmp.ne.s32.totalorder %s82, %s85
      %p91 = scmp.eq.s32.totalorder %s13, 0
      %p92 = por %p90, %p91
      %p93 = scmp.ne.s32.totalorder %s82, %s85
      %p94 = scmp.eq.s32.totalorder %s18, 3
      %p95 = por %p93, %p94
      %p96 = scmp.ne.s32.totalorder %s85, %s86
      %p97 = scmp.eq.s32.totalorder %s18, 0
      %p98 = por %p96, %p97
      %p99 = scmp.ne.s32.totalorder %s85, %s86
      %p100 = scmp.eq.s32.totalorder %s19, 3
      %p101 = por %p99, %p100
      %p103 = scmp.ne.s32.totalorder %s86, %s102
      %p104 = scmp.eq.s32.totalorder %s19, 0
      %p105 = por %p103, %p104
      %s106 = ssub.s32 %s20, %s32
      %p107 = scmp.eq.s32.totalorder %s106, 0
      %s109 = sadd.s32 %s108, 1
      %s110 = scalar_select %p107, %s108, %s109
      %p113 = pneg %p107
      %p114 = scmp.eq.s32.totalorder %s13, 3
      %p115 = por %p113, %p114
      %p116 = scmp.ne.s32.totalorder %s108, %s111
      %p117 = scmp.eq.s32.totalorder %s13, 0
      %p118 = por %p116, %p117
      %p119 = scmp.ne.s32.totalorder %s108, %s111
      %p120 = scmp.eq.s32.totalorder %s18, 3
      %p121 = por %p119, %p120
      %p122 = scmp.ne.s32.totalorder %s111, %s112
      %p123 = scmp.eq.s32.totalorder %s18, 0
      %p124 = por %p122, %p123
      %p125 = scmp.ne.s32.totalorder %s111, %s112
      %p126 = scmp.eq.s32.totalorder %s19, 3
      %p127 = por %p125, %p126
      %p129 = scmp.ne.s32.totalorder %s112, %s128
      %p130 = scmp.eq.s32.totalorder %s19, 0
      %p131 = por %p129, %p130
      %s133 = sadd.s32 %s132, 1
      %p136 = scmp.eq.s32.totalorder %s13, 3
      %p137 = scmp.ne.s32.totalorder %s132, %s134
      %p138 = scmp.eq.s32.totalorder %s13, 0
      %p139 = por %p137, %p138
      %p140 = scmp.ne.s32.totalorder %s132, %s134
      %p141 = scmp.eq.s32.totalorder %s18, 3
      %p142 = por %p140, %p141
      %p143 = scmp.ne.s32.totalorder %s134, %s135
      %p144 = scmp.eq.s32.totalorder %s18, 0
      %p145 = por %p143, %p144
      %p146 = scmp.ne.s32.totalorder %s134, %s135
      %p147 = scmp.eq.s32.totalorder %s19, 3
      %p148 = por %p146, %p147
      %p150 = scmp.ne.s32.totalorder %s135, %s149
      %p151 = scmp.eq.s32.totalorder %s19, 0
      %p152 = por %p150, %p151
      %s154 = sadd.s32 %s153, 1
      %p157 = scmp.eq.s32.totalorder %s13, 3
      %p158 = scmp.ne.s32.totalorder %s153, %s155
      %p159 = scmp.eq.s32.totalorder %s13, 0
      %p160 = por %p158, %p159
      %p161 = scmp.ne.s32.totalorder %s153, %s155
      %p162 = scmp.eq.s32.totalorder %s18, 3
      %p163 = por %p161, %p162
      %p164 = scmp.ne.s32.totalorder %s155, %s156
      %p165 = scmp.eq.s32.totalorder %s18, 0
      %p166 = por %p164, %p165
      %p167 = scmp.ne.s32.totalorder %s155, %s156
      %p168 = scmp.eq.s32.totalorder %s19, 3
      %p169 = por %p167, %p168
      %p171 = scmp.ne.s32.totalorder %s156, %s170
      %p172 = scmp.eq.s32.totalorder %s19, 0
      %p173 = por %p171, %p172
      %s174 = ssub.s32 %s20, %s32
      %p175 = scmp.eq.s32.totalorder %s174, 0
      %s177 = sadd.s32 %s176, 1
      %s178 = scalar_select %p175, %s176, %s177
      %p181 = pneg %p175
      %p182 = scmp.eq.s32.totalorder %s13, 3
      %p183 = por %p181, %p182
      %p184 = scmp.ne.s32.totalorder %s176, %s179
      %p185 = scmp.eq.s32.totalorder %s13, 0
      %p186 = por %p184, %p185
      %p187 = scmp.ne.s32.totalorder %s176, %s179
      %p188 = scmp.eq.s32.totalorder %s18, 3
      %p189 = por %p187, %p188
      %p190 = scmp.ne.s32.totalorder %s179, %s180
      %p191 = scmp.eq.s32.totalorder %s18, 0
      %p192 = por %p190, %p191
      %p193 = scmp.ne.s32.totalorder %s179, %s180
      %p194 = scmp.eq.s32.totalorder %s19, 3
      %p195 = por %p193, %p194
      %p197 = scmp.ne.s32.totalorder %s180, %s196
      %p198 = scmp.eq.s32.totalorder %s19, 0
      %p199 = por %p197, %p198
      %p200 = scmp.le.s32.totalorder 1, %s13
      %p201 = scmp.lt.s32.totalorder %s13, 5
      %p202 = pnand %p200, %p201
      %p203 = pneg %p202
      // Predicated region
      $region9: #{tpu_custom_call.1} parent=5 // pred_check
        _
      $region10: #{tpu_custom_call.1} parent=5 // pred_check_branch
        %205 = sbr.rel (%p202) target = $region12
      $region11: #{tpu_custom_call.1} parent=5 // pred_region
        %s206 = ssub.s32 %s13, 1
        // Predicated region
        $region13: #{tpu_custom_call.1} parent=11 // pred_check
          %p207 = pneg %p46
        $region14: #{tpu_custom_call.1} parent=11 // pred_check_branch
          %209 = sbr.rel (%p207) target = $region16
        $region15: #{tpu_custom_call.1} parent=11 // pred_region
          _
        $region16: #{tpu_custom_call.1} parent=11 // pred_fallthru
          _
        // Predicated region
        $region17: #{tpu_custom_call.1} parent=11 // pred_check
          %p210 = pneg %p145
        $region18: #{tpu_custom_call.1} parent=11 // pred_check_branch
          %212 = sbr.rel (%p210) target = $region20
        $region19: #{tpu_custom_call.1} parent=11 // pred_region
          _
        $region20: #{tpu_custom_call.1} parent=11 // pred_fallthru
          _
        // Predicated region
        $region21: #{tpu_custom_call.1} parent=11 // pred_check
          %p213 = pneg %p166
        $region22: #{tpu_custom_call.1} parent=11 // pred_check_branch
          %215 = sbr.rel (%p213) target = $region24
        $region23: #{tpu_custom_call.1} parent=11 // pred_region
          _
        $region24: #{tpu_custom_call.1} parent=11 // pred_fallthru
          _
      $region12: #{tpu_custom_call.1} parent=5 // pred_fallthru
        _
      %p216 = scmp.lt.s32.totalorder %s13, 4
      // Predicated region
      $region25: #{tpu_custom_call.1} parent=5 // pred_check
        %p217 = pneg %p216
      $region26: #{tpu_custom_call.1} parent=5 // pred_check_branch
        %219 = sbr.rel (%p217) target = $region28
      $region27: #{tpu_custom_call.1} parent=5 // pred_region
        // Predicated region
        $region29: #{tpu_custom_call.1} parent=27 // pred_check
          %p220 = pneg %p66
        $region30: #{tpu_custom_call.1} parent=27 // pred_check_branch
          %222 = sbr.rel (%p220) target = $region32
        $region31: #{tpu_custom_call.1} parent=27 // pred_region
          %s223 = sand.u32 %s56, 1
          %s224 = sand.u32 %s56, 1
          %s225 = smul.addr %s224, 32
          %s226 = scalar_lea.vmem [#allocation7], %s225
          %s227 = smul.addr %s21, 8
          %s228 = scalar_lea.vmem %s1, %s227
          // Predicated region
          $region33: #{tpu_custom_call.1} parent=31 // pred_check
            _
          $region34: #{tpu_custom_call.1} parent=31 // pred_check_branch
            %230 = sbr.rel (0) target = $region36
          $region35: #{tpu_custom_call.1} parent=31 // pred_region
            // Predicated region
            $region37: #{tpu_custom_call.1} parent=35 // pred_check
              _
            $region38: #{tpu_custom_call.1} parent=35 // pred_check_branch
              %232 = sbr.rel (0) target = $region40
            $region39: #{tpu_custom_call.1} parent=35 // pred_region
              // Predicated region
              $region52: #{tpu_custom_call.1} parent=39 // pred_check
                _
              $region53: #{tpu_custom_call.1} parent=39 // pred_check_branch
                %254 = sbr.rel (0) target = $region55
              $region54: #{tpu_custom_call.1} parent=39 // pred_region
                loop: start=0, step=1, limit=1
                $region56: #{tpu_custom_call.1} parent=54 // loop_pre_header
                  _
                $region57: #{tpu_custom_call.1} parent=54 // loop_header
                  %s256 = sphi 0, %s260
                  %p257 = scmp.ge.s32.totalorder %s256, 1
                  %s261 = sphi %s228, %s228
                  %s262 = sphi %s226, %s226
                $region58: #{tpu_custom_call.1} parent=54 // loop_header_branch
                  %259 = sbr.rel (%p257) target = $region62
                $region59: #{tpu_custom_call.1} parent=54 // loop_body
                  %v263 = vld [vmem:[%s261] sm:$0xff]
                  %264 = vst [vmem:[%s262] sm:$0xff] %v263
                  %v265 = vld [vmem:[%s261 + $0x10] sm:$0xff]
                  %266 = vst [vmem:[%s262 + $0x8] sm:$0xff] %v265
                  %v267 = vld [vmem:[%s261 + $0x20] sm:$0xff]
                  %268 = vst [vmem:[%s262 + $0x10] sm:$0xff] %v267
                  %v269 = vld [vmem:[%s261 + $0x30] sm:$0xff]
                  %270 = vst [vmem:[%s262 + $0x18] sm:$0xff] %v269
                $region60: #{tpu_custom_call.1} parent=54 // loop_footer
                  %s260 = sadd.s32 1, %s256
                $region61: #{tpu_custom_call.1} parent=54 // loop_footer_branch
                  %255 = sbr.rel target = $region57
                $region62: #{tpu_custom_call.1} parent=54 // loop_exit
                  _
              $region55: #{tpu_custom_call.1} parent=39 // pred_fallthru
                _
              // Predicated region
              $region63: #{tpu_custom_call.1} parent=39 // pred_check
                _
              $region64: #{tpu_custom_call.1} parent=39 // pred_check_branch
                %272 = sbr.rel target = $region66
              $region65: #{tpu_custom_call.1} parent=39 // pred_region
                _
              $region66: #{tpu_custom_call.1} parent=39 // pred_fallthru
                _
            $region40: #{tpu_custom_call.1} parent=35 // pred_fallthru
              _
            // Predicated region
            $region41: #{tpu_custom_call.1} parent=35 // pred_check
              _
            $region42: #{tpu_custom_call.1} parent=35 // pred_check_branch
              %234 = sbr.rel target = $region44
            $region43: #{tpu_custom_call.1} parent=35 // pred_region
              %s236 = ssub.s32 256, 1
              loop: start=0, step=1, limit=1
              $region45: #{tpu_custom_call.1} parent=43 // loop_pre_header
                _
              $region46: #{tpu_custom_call.1} parent=43 // loop_header
                %s238 = sphi 0, %s242
                %p239 = scmp.ge.s32.totalorder %s238, 1
                %s243 = sphi %s228, %s228
                %s244 = sphi %s226, %s226
              $region47: #{tpu_custom_call.1} parent=43 // loop_header_branch
                %241 = sbr.rel (%p239) target = $region51
              $region48: #{tpu_custom_call.1} parent=43 // loop_body
                %v245 = vld [vmem:[%s243] sm:%s236]
                %246 = vst [vmem:[%s244] sm:%s236] %v245
                %v247 = vld [vmem:[%s243 + $0x10] sm:%s236]
                %248 = vst [vmem:[%s244 + $0x8] sm:%s236] %v247
                %v249 = vld [vmem:[%s243 + $0x20] sm:%s236]
                %250 = vst [vmem:[%s244 + $0x10] sm:%s236] %v249
                %v251 = vld [vmem:[%s243 + $0x30] sm:%s236]
                %252 = vst [vmem:[%s244 + $0x18] sm:%s236] %v251
              $region49: #{tpu_custom_call.1} parent=43 // loop_footer
                %s242 = sadd.s32 1, %s238
              $region50: #{tpu_custom_call.1} parent=43 // loop_footer_branch
                %237 = sbr.rel target = $region46
              $region51: #{tpu_custom_call.1} parent=43 // loop_exit
                _
            $region44: #{tpu_custom_call.1} parent=35 // pred_fallthru
              _
          $region36: #{tpu_custom_call.1} parent=31 // pred_fallthru
            _
          %273 = vnop
        $region32: #{tpu_custom_call.1} parent=27 // pred_fallthru
          _
        // Predicated region
        $region67: #{tpu_custom_call.1} parent=27 // pred_check
          %p274 = pneg %p92
        $region68: #{tpu_custom_call.1} parent=27 // pred_check_branch
          %276 = sbr.rel (%p274) target = $region70
        $region69: #{tpu_custom_call.1} parent=27 // pred_region
          %s277 = smul.u32 16, %s21
          %p278 = scmp.lt.s32.totalorder %s277, 31
          %s279 = scalar_select %p278, %s277, 31
          %s280 = smul.addr %s279, 8
          %s281 = scalar_lea.vmem %s2, %s280
          %s282 = smul.u32 16, %s21
        $region70: #{tpu_custom_call.1} parent=27 // pred_fallthru
          _
        // Predicated region
        $region71: #{tpu_custom_call.1} parent=27 // pred_check
          %p283 = pneg %p118
        $region72: #{tpu_custom_call.1} parent=27 // pred_check_branch
          %285 = sbr.rel (%p283) target = $region74
        $region73: #{tpu_custom_call.1} parent=27 // pred_region
          %s286 = sand.u32 %s108, 1
          %s287 = sand.u32 %s108, 1
          %s288 = smul.addr %s287, 48
          %s289 = scalar_lea.vmem [#allocation8], %s288
          %s290 = smul.addr %s20, 8
          %s291 = scalar_lea.vmem %s3, %s290
          // Predicated region
          $region75: #{tpu_custom_call.1} parent=73 // pred_check
            _
          $region76: #{tpu_custom_call.1} parent=73 // pred_check_branch
            %293 = sbr.rel (0) target = $region78
          $region77: #{tpu_custom_call.1} parent=73 // pred_region
            // Predicated region
            $region79: #{tpu_custom_call.1} parent=77 // pred_check
              _
            $region80: #{tpu_custom_call.1} parent=77 // pred_check_branch
              %295 = sbr.rel (0) target = $region82
            $region81: #{tpu_custom_call.1} parent=77 // pred_region
              // Predicated region
              $region94: #{tpu_custom_call.1} parent=81 // pred_check
                _
              $region95: #{tpu_custom_call.1} parent=81 // pred_check_branch
                %321 = sbr.rel (0) target = $region97
              $region96: #{tpu_custom_call.1} parent=81 // pred_region
                loop: start=0, step=1, limit=1
                $region98: #{tpu_custom_call.1} parent=96 // loop_pre_header
                  _
                $region99: #{tpu_custom_call.1} parent=96 // loop_header
                  %s323 = sphi 0, %s327
                  %p324 = scmp.ge.s32.totalorder %s323, 1
                  %s328 = sphi %s291, %s291
                  %s329 = sphi %s289, %s289
                $region100: #{tpu_custom_call.1} parent=96 // loop_header_branch
                  %326 = sbr.rel (%p324) target = $region104
                $region101: #{tpu_custom_call.1} parent=96 // loop_body
                  %v330 = vld [vmem:[%s328] sm:$0xff]
                  %331 = vst [vmem:[%s329] sm:$0xff] %v330
                  %v332 = vld [vmem:[%s328 + $0x10] sm:$0xff]
                  %333 = vst [vmem:[%s329 + $0x8] sm:$0xff] %v332
                  %v334 = vld [vmem:[%s328 + $0x20] sm:$0xff]
                  %335 = vst [vmem:[%s329 + $0x10] sm:$0xff] %v334
                  %v336 = vld [vmem:[%s328 + $0x30] sm:$0xff]
                  %337 = vst [vmem:[%s329 + $0x18] sm:$0xff] %v336
                  %v338 = vld [vmem:[%s328 + $0x40] sm:$0xff]
                  %339 = vst [vmem:[%s329 + $0x20] sm:$0xff] %v338
                  %v340 = vld [vmem:[%s328 + $0x50] sm:$0xff]
                  %341 = vst [vmem:[%s329 + $0x28] sm:$0xff] %v340
                $region102: #{tpu_custom_call.1} parent=96 // loop_footer
                  %s327 = sadd.s32 1, %s323
                $region103: #{tpu_custom_call.1} parent=96 // loop_footer_branch
                  %322 = sbr.rel target = $region99
                $region104: #{tpu_custom_call.1} parent=96 // loop_exit
                  _
              $region97: #{tpu_custom_call.1} parent=81 // pred_fallthru
                _
              // Predicated region
              $region105: #{tpu_custom_call.1} parent=81 // pred_check
                _
              $region106: #{tpu_custom_call.1} parent=81 // pred_check_branch
                %343 = sbr.rel target = $region108
              $region107: #{tpu_custom_call.1} parent=81 // pred_region
                _
              $region108: #{tpu_custom_call.1} parent=81 // pred_fallthru
                _
            $region82: #{tpu_custom_call.1} parent=77 // pred_fallthru
              _
            // Predicated region
            $region83: #{tpu_custom_call.1} parent=77 // pred_check
              _
            $region84: #{tpu_custom_call.1} parent=77 // pred_check_branch
              %297 = sbr.rel target = $region86
            $region85: #{tpu_custom_call.1} parent=77 // pred_region
              %s299 = ssub.s32 256, 1
              loop: start=0, step=1, limit=1
              $region87: #{tpu_custom_call.1} parent=85 // loop_pre_header
                _
              $region88: #{tpu_custom_call.1} parent=85 // loop_header
                %s301 = sphi 0, %s305
                %p302 = scmp.ge.s32.totalorder %s301, 1
                %s306 = sphi %s291, %s291
                %s307 = sphi %s289, %s289
              $region89: #{tpu_custom_call.1} parent=85 // loop_header_branch
                %304 = sbr.rel (%p302) target = $region93
              $region90: #{tpu_custom_call.1} parent=85 // loop_body
                %v308 = vld [vmem:[%s306] sm:%s299]
                %309 = vst [vmem:[%s307] sm:%s299] %v308
                %v310 = vld [vmem:[%s306 + $0x10] sm:%s299]
                %311 = vst [vmem:[%s307 + $0x8] sm:%s299] %v310
                %v312 = vld [vmem:[%s306 + $0x20] sm:%s299]
                %313 = vst [vmem:[%s307 + $0x10] sm:%s299] %v312
                %v314 = vld [vmem:[%s306 + $0x30] sm:%s299]
                %315 = vst [vmem:[%s307 + $0x18] sm:%s299] %v314
                %v316 = vld [vmem:[%s306 + $0x40] sm:%s299]
                %317 = vst [vmem:[%s307 + $0x20] sm:%s299] %v316
                %v318 = vld [vmem:[%s306 + $0x50] sm:%s299]
                %319 = vst [vmem:[%s307 + $0x28] sm:%s299] %v318
              $region91: #{tpu_custom_call.1} parent=85 // loop_footer
                %s305 = sadd.s32 1, %s301
              $region92: #{tpu_custom_call.1} parent=85 // loop_footer_branch
                %300 = sbr.rel target = $region88
              $region93: #{tpu_custom_call.1} parent=85 // loop_exit
                _
            $region86: #{tpu_custom_call.1} parent=77 // pred_fallthru
              _
          $region78: #{tpu_custom_call.1} parent=73 // pred_fallthru
            _
          %344 = vnop
        $region74: #{tpu_custom_call.1} parent=27 // pred_fallthru
          _
      $region28: #{tpu_custom_call.1} parent=5 // pred_fallthru
        _
      %p345 = scmp.le.s32.totalorder 1, %s13
      %p346 = scmp.lt.s32.totalorder %s13, 5
      %p347 = pnand %p345, %p346
      %p348 = pneg %p347
      // Predicated region
      $region109: #{tpu_custom_call.1} parent=5 // pred_check
        _
      $region110: #{tpu_custom_call.1} parent=5 // pred_check_branch
        %350 = sbr.rel (%p347) target = $region112
      $region111: #{tpu_custom_call.1} parent=5 // pred_region
        %s351 = ssub.s32 %s13, 1
        %s352 = sand.u32 %s59, 1
        %s353 = sand.u32 %s59, 1
        %s354 = smul.addr %s353, 32
        %s355 = scalar_lea.vmem [#allocation7], %s354
        // Predicated region
        $region113: #{tpu_custom_call.1} parent=111 // pred_check
          %p356 = pneg %p72
        $region114: #{tpu_custom_call.1} parent=111 // pred_check_branch
          %358 = sbr.rel (%p356) target = $region116
        $region115: #{tpu_custom_call.1} parent=111 // pred_region
          _
        $region116: #{tpu_custom_call.1} parent=111 // pred_fallthru
          _
        %s359 = sand.u32 %s111, 1
        %s360 = sand.u32 %s111, 1
        %s361 = smul.addr %s360, 48
        %s362 = scalar_lea.vmem [#allocation8], %s361
        // Predicated region
        $region117: #{tpu_custom_call.1} parent=111 // pred_check
          %p363 = pneg %p124
        $region118: #{tpu_custom_call.1} parent=111 // pred_check_branch
          %365 = sbr.rel (%p363) target = $region120
        $region119: #{tpu_custom_call.1} parent=111 // pred_region
          _
        $region120: #{tpu_custom_call.1} parent=111 // pred_fallthru
          _
        %p366 = pneg %p46
        %p367 = pneg %p43
        %s368 = sand.u32 %s59, 1
        %s369 = sand.u32 %s59, 1
        %s370 = smul.addr %s369, 32
        %s371 = scalar_lea.vmem [#allocation7], %s370
        %p372 = pneg %p72
        %p373 = pneg %p69
        %s374 = smul.u32 16, %s23
        %p375 = scmp.lt.s32.totalorder %s374, 31
        %s376 = scalar_select %p375, %s374, 31
        %s377 = smul.addr %s376, 8
        %s378 = scalar_lea.vmem %s2, %s377
        %p379 = pneg %p98
        %p380 = pneg %p95
        %s381 = sand.u32 %s111, 1
        %s382 = sand.u32 %s111, 1
        %s383 = smul.addr %s382, 48
        %s384 = scalar_lea.vmem [#allocation8], %s383
        %p385 = pneg %p124
        %p386 = pneg %p121
        %p387 = pneg %p145
        %p388 = pneg %p142
        %p389 = pneg %p166
        %p390 = pneg %p163
        %p391 = pneg %p192
        %p392 = pneg %p189
        %s393 = smul.u32 16, %s22
        %p394 = scmp.lt.s32.totalorder %s393, 31
        %s395 = scalar_select %p394, %s393, 31
        %s396 = smul.addr %s395, 8
        %s397 = scalar_lea.vmem %s6, %s396
        %s398 = smul.u32 16, %s23
        %p399 = scmp.lt.s32.totalorder %s398, 31
        %s400 = scalar_select %p399, %s398, 31
        %s401 = smul.addr %s400, 8
        %s402 = scalar_lea.vmem %s2, %s401
        %s403 = smul.u32 16, %s23
        %s404 = smul.u32 16, %s22
        %p405 = scmp.lt.s32.totalorder %s404, 31
        %s406 = scalar_select %p405, %s404, 31
        %s407 = smul.addr %s406, 8
        %s408 = scalar_lea.vmem %s6, %s407
        %s409 = smul.u32 16, %s22
        %p410 = scmp.eq.s32.totalorder %s23, 0
        // Predicated region
        $region121: #{tpu_custom_call.1} parent=111 // pred_check
          %p411 = pneg %p410
        $region122: #{tpu_custom_call.1} parent=111 // pred_check_branch
          %413 = sbr.rel (%p411) target = $region124
        $region123: #{tpu_custom_call.1} parent=111 // pred_region
          %v414 = vld [vmem:[%s4] sm:$0xff]
          %v415 = vld [vmem:[%s4 + $0x8] sm:$0xff]
          %v416 = vld [vmem:[%s4 + $0x10] sm:$0xff]
          %v417 = vld [vmem:[%s4 + $0x18] sm:$0xff]
          %v418 = vld [vmem:[%s362] sm:$0xff]
          %v419 = vld [vmem:[%s362 + $0x8] sm:$0xff]
          %v420 = vld [vmem:[%s362 + $0x10] sm:$0xff]
          %v421 = vld [vmem:[%s362 + $0x18] sm:$0xff]
          %v422 = vld [vmem:[%s362 + $0x20] sm:$0xff]
          %v423 = vld [vmem:[%s362 + $0x28] sm:$0xff]
          %vm424 = vcmask 392192
          %v426 = vsel %vm424, %v414, 0
          %v429 = vsel %vm424, %v415, 0
          %v432 = vsel %vm424, %v416, 0
          %v435 = vsel %vm424, %v417, 0
          %437 = vmatprep.subr.mxu0 0.0
          %438 = vmatpush1.msra.mxu0 0.0
          %439 = vmatprep.subr.mxu0 0.0
          %440 = vmatpush1.msra.mxu0 0.0
          %441 = vmatprep.subr.mxu0 0.0
          %442 = vmatpush1.msra.mxu0 0.0
          %443 = vmatprep.subr.mxu0 0.0
          %444 = vmatpush1.msra.mxu0 0.0
          %445 = vmatprep.subr.mxu0 0.0
          %446 = vmatpush1.msra.mxu0 0.0
          %447 = vmatprep.subr.mxu0 0.0
          %448 = vmatpush1.msra.mxu0 0.0
          %449 = vmatprep.subr.mxu0 0.0
          %450 = vmatpush1.msra.mxu0 0.0
          %451 = vmatprep.subr.mxu0 0.0
          %452 = vmatpush1.msra.mxu0 0.0
          %453 = vmatprep.subr.mxu0 0.0
          %454 = vmatpush1.msra.mxu0 0.0
          %455 = vmatprep.subr.mxu0 0.0
          %456 = vmatpush1.msra.mxu0 0.0
          %457 = vmatprep.subr.mxu0 0.0
          %458 = vmatpush1.msra.mxu0 %v423
          %459 = vmatprep.subr.mxu0 0.0
          %460 = vmatpush1.msra.mxu0 %v422
          %461 = vmatprep.subr.mxu0 0.0
          %462 = vmatpush1.msra.mxu0 %v421
          %463 = vmatprep.subr.mxu0 0.0
          %464 = vmatpush1.msra.mxu0 %v420
          %465 = vmatprep.subr.mxu0 0.0
          %466 = vmatpush1.msra.mxu0 %v419
          %467 = vmatprep.subr.mxu0 0.0
          %468 = vmatpush1.msra.mxu0 %v418
          %469 = vmatprep.subr.mxu0 0.0
          %470 = vmatpush2.msra.mxu0 0.0
          %471 = vmatprep.subr.mxu0 0.0
          %472 = vmatpush2.msra.mxu0 0.0
          %473 = vmatprep.subr.mxu0 0.0
          %474 = vmatpush2.msra.mxu0 0.0
          %475 = vmatprep.subr.mxu0 0.0
          %476 = vmatpush2.msra.mxu0 0.0
          %477 = vmatprep.subr.mxu0 0.0
          %478 = vmatpush2.msra.mxu0 0.0
          %479 = vmatprep.subr.mxu0 0.0
          %480 = vmatpush2.msra.mxu0 0.0
          %481 = vmatprep.subr.mxu0 0.0
          %482 = vmatpush2.msra.mxu0 0.0
          %483 = vmatprep.subr.mxu0 0.0
          %484 = vmatpush2.msra.mxu0 0.0
          %485 = vmatprep.subr.mxu0 0.0
          %486 = vmatpush2.msra.mxu0 0.0
          %487 = vmatprep.subr.mxu0 0.0
          %488 = vmatpush2.msra.mxu0 0.0
          %489 = vmatprep.subr.mxu0 0.0
          %490 = vmatpush2.msra.mxu0 0.0
          %491 = vmatprep.subr.mxu0 0.0
          %492 = vmatpush2.msra.mxu0 0.0
          %493 = vmatprep.subr.mxu0 0.0
          %494 = vmatpush2.msra.mxu0 0.0
          %495 = vmatprep.subr.mxu0 0.0
          %496 = vmatpush2.msra.mxu0 0.0
          %497 = vmatprep.subr.mxu0 0.0
          %498 = vmatpush2.msra.mxu0 0.0
          %499 = vmatprep.subr.mxu0 0.0
          %500 = vmatpush2.msra.mxu0 0.0
          %501 = vmatprep.mubr.f32.mxu0 0.0
          %502 = vmatmul.mubr.f32.gmra.mxu0 %v426
          %v503 = vpop.f32.mrf.mxu0
          %v504 = vadd.f32 0.0, %v503
          %v505 = vpop.f32.mrf.mxu0
          %506 = vmatprep.mubr.f32.mxu0 0.0
          %507 = vmatmul.mubr.f32.gmra.mxu0 %v429
          %v508 = vpop.f32.mrf.mxu0
          %v509 = vadd.f32 0.0, %v508
          %v510 = vpop.f32.mrf.mxu0
          %511 = vmatprep.mubr.f32.mxu0 0.0
          %512 = vmatmul.mubr.f32.gmra.mxu0 %v432
          %v513 = vpop.f32.mrf.mxu0
          %v514 = vadd.f32 0.0, %v513
          %v515 = vpop.f32.mrf.mxu0
          %516 = vmatprep.mubr.f32.mxu0 0.0
          %517 = vmatmul.mubr.f32.gmra.mxu0 %v435
          %v518 = vpop.f32.mrf.mxu0
          %v519 = vadd.f32 0.0, %v518
          %v520 = vpop.f32.mrf.mxu0
          %521 = vdwg.mxu0
          %522 = vst [vmem:[#allocation2] sm:$0xff] %v504
          %523 = vst [vmem:[#allocation2 + $0x8] sm:$0xff] %v509
          %524 = vst [vmem:[#allocation2 + $0x10] sm:$0xff] %v514
          %525 = vst [vmem:[#allocation2 + $0x18] sm:$0xff] %v519
          %vm526 = vcmask 7168
          %527 = vst.msk [vmem:[#allocation3] sm:$0xff] %vm526, -inf
          %528 = vst.msk [vmem:[#allocation3 + $0x8] sm:$0xff] %vm526, -inf
          %529 = vst.msk [vmem:[#allocation3 + $0x10] sm:$0xff] %vm526, -inf
          %530 = vst.msk [vmem:[#allocation3 + $0x18] sm:$0xff] %vm526, -inf
          %531 = vst.msk [vmem:[#allocation3 + $0x20] sm:$0xff] %vm526, -inf
          %532 = vst.msk [vmem:[#allocation3 + $0x28] sm:$0xff] %vm526, -inf
          %533 = vst.msk [vmem:[#allocation3 + $0x30] sm:$0xff] %vm526, -inf
          %534 = vst.msk [vmem:[#allocation3 + $0x38] sm:$0xff] %vm526, -inf
          %535 = vst.msk [vmem:[#allocation3 + $0x40] sm:$0xff] %vm526, -inf
          %536 = vst.msk [vmem:[#allocation3 + $0x48] sm:$0xff] %vm526, -inf
          %537 = vst.msk [vmem:[#allocation3 + $0x50] sm:$0xff] %vm526, -inf
          %538 = vst.msk [vmem:[#allocation3 + $0x58] sm:$0xff] %vm526, -inf
          %539 = vst.msk [vmem:[#allocation3 + $0x60] sm:$0xff] %vm526, -inf
          %540 = vst.msk [vmem:[#allocation3 + $0x68] sm:$0xff] %vm526, -inf
          %541 = vst.msk [vmem:[#allocation3 + $0x70] sm:$0xff] %vm526, -inf
          %542 = vst.msk [vmem:[#allocation3 + $0x78] sm:$0xff] %vm526, -inf
          %543 = vst.msk [vmem:[#allocation4] sm:$0xff] %vm526, 0.0
          %544 = vst.msk [vmem:[#allocation4 + $0x8] sm:$0xff] %vm526, 0.0
          %545 = vst.msk [vmem:[#allocation4 + $0x10] sm:$0xff] %vm526, 0.0
          %546 = vst.msk [vmem:[#allocation4 + $0x18] sm:$0xff] %vm526, 0.0
          %547 = vst.msk [vmem:[#allocation4 + $0x20] sm:$0xff] %vm526, 0.0
          %548 = vst.msk [vmem:[#allocation4 + $0x28] sm:$0xff] %vm526, 0.0
          %549 = vst.msk [vmem:[#allocation4 + $0x30] sm:$0xff] %vm526, 0.0
          %550 = vst.msk [vmem:[#allocation4 + $0x38] sm:$0xff] %vm526, 0.0
          %551 = vst.msk [vmem:[#allocation4 + $0x40] sm:$0xff] %vm526, 0.0
          %552 = vst.msk [vmem:[#allocation4 + $0x48] sm:$0xff] %vm526, 0.0
          %553 = vst.msk [vmem:[#allocation4 + $0x50] sm:$0xff] %vm526, 0.0
          %554 = vst.msk [vmem:[#allocation4 + $0x58] sm:$0xff] %vm526, 0.0
          %555 = vst.msk [vmem:[#allocation4 + $0x60] sm:$0xff] %vm526, 0.0
          %556 = vst.msk [vmem:[#allocation4 + $0x68] sm:$0xff] %vm526, 0.0
          %557 = vst.msk [vmem:[#allocation4 + $0x70] sm:$0xff] %vm526, 0.0
          %558 = vst.msk [vmem:[#allocation4 + $0x78] sm:$0xff] %vm526, 0.0
          %vm559 = vcmask 261120
          %560 = vst.msk [vmem:[#allocation5] sm:$0xff] %vm559, 0.0
          %561 = vst.msk [vmem:[#allocation5 + $0x8] sm:$0xff] %vm559, 0.0
          %562 = vst.msk [vmem:[#allocation5 + $0x10] sm:$0xff] %vm559, 0.0
          %563 = vst.msk [vmem:[#allocation5 + $0x18] sm:$0xff] %vm559, 0.0
          %564 = vst.msk [vmem:[#allocation5 + $0x20] sm:$0xff] %vm559, 0.0
          %565 = vst.msk [vmem:[#allocation5 + $0x28] sm:$0xff] %vm559, 0.0
          %566 = vst.msk [vmem:[#allocation5 + $0x30] sm:$0xff] %vm559, 0.0
          %567 = vst.msk [vmem:[#allocation5 + $0x38] sm:$0xff] %vm559, 0.0
          %568 = vst.msk [vmem:[#allocation5 + $0x40] sm:$0xff] %vm559, 0.0
          %569 = vst.msk [vmem:[#allocation5 + $0x48] sm:$0xff] %vm559, 0.0
          %570 = vst.msk [vmem:[#allocation5 + $0x50] sm:$0xff] %vm559, 0.0
          %571 = vst.msk [vmem:[#allocation5 + $0x58] sm:$0xff] %vm559, 0.0
          %572 = vst.msk [vmem:[#allocation5 + $0x60] sm:$0xff] %vm559, 0.0
          %573 = vst.msk [vmem:[#allocation5 + $0x68] sm:$0xff] %vm559, 0.0
          %574 = vst.msk [vmem:[#allocation5 + $0x70] sm:$0xff] %vm559, 0.0
          %575 = vst.msk [vmem:[#allocation5 + $0x78] sm:$0xff] %vm559, 0.0
        $region124: #{tpu_custom_call.1} parent=111 // pred_fallthru
          _
        %v576 = vld [vmem:[#allocation2] sm:$0xff]
        %v577 = vld [vmem:[#allocation2 + $0x8] sm:$0xff]
        %v578 = vld [vmem:[#allocation2 + $0x10] sm:$0xff]
        %v579 = vld [vmem:[#allocation2 + $0x18] sm:$0xff]
        %v580 = vlaneseq
        %v581 = vshrl.u32 %v580, 7
        %v582 = vsub.s32 0, %v581
        %v583 = vrot.slane %v576, %v582
        %585 = vbcast.lane.b32.xlu0 %v583, 256
        %v586 = vpop.permute.xlu0 %585
        %s588 = sor.u32 256, 8
        %589 = vbcast.lane.b32.xlu0 %v583, %s588
        %v590 = vpop.permute.xlu0 %589
        %s592 = sor.u32 256, 16
        %593 = vbcast.lane.b32.xlu0 %v583, %s592
        %v594 = vpop.permute.xlu0 %593
        %s596 = sor.u32 256, 24
        %597 = vbcast.lane.b32.xlu0 %v583, %s596
        %v598 = vpop.permute.xlu0 %597
        %s600 = sor.u32 256, 32
        %601 = vbcast.lane.b32.xlu0 %v583, %s600
        %v602 = vpop.permute.xlu0 %601
        %s604 = sor.u32 256, 40
        %605 = vbcast.lane.b32.xlu0 %v583, %s604
        %v606 = vpop.permute.xlu0 %605
        %s608 = sor.u32 256, 48
        %609 = vbcast.lane.b32.xlu0 %v583, %s608
        %v610 = vpop.permute.xlu0 %609
        %s612 = sor.u32 256, 56
        %613 = vbcast.lane.b32.xlu0 %v583, %s612
        %v614 = vpop.permute.xlu0 %613
        %s616 = sor.u32 256, 64
        %617 = vbcast.lane.b32.xlu0 %v583, %s616
        %v618 = vpop.permute.xlu0 %617
        %s620 = sor.u32 256, 72
        %621 = vbcast.lane.b32.xlu0 %v583, %s620
        %v622 = vpop.permute.xlu0 %621
        %s624 = sor.u32 256, 80
        %625 = vbcast.lane.b32.xlu0 %v583, %s624
        %v626 = vpop.permute.xlu0 %625
        %s628 = sor.u32 256, 88
        %629 = vbcast.lane.b32.xlu0 %v583, %s628
        %v630 = vpop.permute.xlu0 %629
        %s632 = sor.u32 256, 96
        %633 = vbcast.lane.b32.xlu0 %v583, %s632
        %v634 = vpop.permute.xlu0 %633
        %s636 = sor.u32 256, 104
        %637 = vbcast.lane.b32.xlu0 %v583, %s636
        %v638 = vpop.permute.xlu0 %637
        %s640 = sor.u32 256, 112
        %641 = vbcast.lane.b32.xlu0 %v583, %s640
        %v642 = vpop.permute.xlu0 %641
        %s644 = sor.u32 256, 120
        %645 = vbcast.lane.b32.xlu0 %v583, %s644
        %v646 = vpop.permute.xlu0 %645
        %v647 = vlaneseq
        %v648 = vshrl.u32 %v647, 7
        %v649 = vsub.s32 1, %v648
        %v650 = vrot.slane %v576, %v649
        %652 = vbcast.lane.b32.xlu0 %v650, 256
        %v653 = vpop.permute.xlu0 %652
        %s655 = sor.u32 256, 8
        %656 = vbcast.lane.b32.xlu0 %v650, %s655
        %v657 = vpop.permute.xlu0 %656
        %s659 = sor.u32 256, 16
        %660 = vbcast.lane.b32.xlu0 %v650, %s659
        %v661 = vpop.permute.xlu0 %660
        %s663 = sor.u32 256, 24
        %664 = vbcast.lane.b32.xlu0 %v650, %s663
        %v665 = vpop.permute.xlu0 %664
        %s667 = sor.u32 256, 32
        %668 = vbcast.lane.b32.xlu0 %v650, %s667
        %v669 = vpop.permute.xlu0 %668
        %s671 = sor.u32 256, 40
        %672 = vbcast.lane.b32.xlu0 %v650, %s671
        %v673 = vpop.permute.xlu0 %672
        %s675 = sor.u32 256, 48
        %676 = vbcast.lane.b32.xlu0 %v650, %s675
        %v677 = vpop.permute.xlu0 %676
        %s679 = sor.u32 256, 56
        %680 = vbcast.lane.b32.xlu0 %v650, %s679
        %v681 = vpop.permute.xlu0 %680
        %s683 = sor.u32 256, 64
        %684 = vbcast.lane.b32.xlu0 %v650, %s683
        %v685 = vpop.permute.xlu0 %684
        %s687 = sor.u32 256, 72
        %688 = vbcast.lane.b32.xlu0 %v650, %s687
        %v689 = vpop.permute.xlu0 %688
        %s691 = sor.u32 256, 80
        %692 = vbcast.lane.b32.xlu0 %v650, %s691
        %v693 = vpop.permute.xlu0 %692
        %s695 = sor.u32 256, 88
        %696 = vbcast.lane.b32.xlu0 %v650, %s695
        %v697 = vpop.permute.xlu0 %696
        %s699 = sor.u32 256, 96
        %700 = vbcast.lane.b32.xlu0 %v650, %s699
        %v701 = vpop.permute.xlu0 %700
        %s703 = sor.u32 256, 104
        %704 = vbcast.lane.b32.xlu0 %v650, %s703
        %v705 = vpop.permute.xlu0 %704
        %s707 = sor.u32 256, 112
        %708 = vbcast.lane.b32.xlu0 %v650, %s707
        %v709 = vpop.permute.xlu0 %708
        %s711 = sor.u32 256, 120
        %712 = vbcast.lane.b32.xlu0 %v650, %s711
        %v713 = vpop.permute.xlu0 %712
        %v714 = vlaneseq
        %v715 = vshrl.u32 %v714, 7
        %v716 = vsub.s32 2, %v715
        %v717 = vrot.slane %v576, %v716
        %719 = vbcast.lane.b32.xlu0 %v717, 256
        %v720 = vpop.permute.xlu0 %719
        %s722 = sor.u32 256, 8
        %723 = vbcast.lane.b32.xlu0 %v717, %s722
        %v724 = vpop.permute.xlu0 %723
        %s726 = sor.u32 256, 16
        %727 = vbcast.lane.b32.xlu0 %v717, %s726
        %v728 = vpop.permute.xlu0 %727
        %s730 = sor.u32 256, 24
        %731 = vbcast.lane.b32.xlu0 %v717, %s730
        %v732 = vpop.permute.xlu0 %731
        %s734 = sor.u32 256, 32
        %735 = vbcast.lane.b32.xlu0 %v717, %s734
        %v736 = vpop.permute.xlu0 %735
        %s738 = sor.u32 256, 40
        %739 = vbcast.lane.b32.xlu0 %v717, %s738
        %v740 = vpop.permute.xlu0 %739
        %s742 = sor.u32 256, 48
        %743 = vbcast.lane.b32.xlu0 %v717, %s742
        %v744 = vpop.permute.xlu0 %743
        %s746 = sor.u32 256, 56
        %747 = vbcast.lane.b32.xlu0 %v717, %s746
        %v748 = vpop.permute.xlu0 %747
        %s750 = sor.u32 256, 64
        %751 = vbcast.lane.b32.xlu0 %v717, %s750
        %v752 = vpop.permute.xlu0 %751
        %s754 = sor.u32 256, 72
        %755 = vbcast.lane.b32.xlu0 %v717, %s754
        %v756 = vpop.permute.xlu0 %755
        %s758 = sor.u32 256, 80
        %759 = vbcast.lane.b32.xlu0 %v717, %s758
        %v760 = vpop.permute.xlu0 %759
        %s762 = sor.u32 256, 88
        %763 = vbcast.lane.b32.xlu0 %v717, %s762
        %v764 = vpop.permute.xlu0 %763
        %s766 = sor.u32 256, 96
        %767 = vbcast.lane.b32.xlu0 %v717, %s766
        %v768 = vpop.permute.xlu0 %767
        %s770 = sor.u32 256, 104
        %771 = vbcast.lane.b32.xlu0 %v717, %s770
        %v772 = vpop.permute.xlu0 %771
        %s774 = sor.u32 256, 112
        %775 = vbcast.lane.b32.xlu0 %v717, %s774
        %v776 = vpop.permute.xlu0 %775
        %s778 = sor.u32 256, 120
        %779 = vbcast.lane.b32.xlu0 %v717, %s778
        %v780 = vpop.permute.xlu0 %779
        %v781 = vlaneseq
        %v782 = vshrl.u32 %v781, 7
        %v783 = vsub.s32 3, %v782
        %v784 = vrot.slane %v576, %v783
        %786 = vbcast.lane.b32.xlu0 %v784, 256
        %v787 = vpop.permute.xlu0 %786
        %s789 = sor.u32 256, 8
        %790 = vbcast.lane.b32.xlu0 %v784, %s789
        %v791 = vpop.permute.xlu0 %790
        %s793 = sor.u32 256, 16
        %794 = vbcast.lane.b32.xlu0 %v784, %s793
        %v795 = vpop.permute.xlu0 %794
        %s797 = sor.u32 256, 24
        %798 = vbcast.lane.b32.xlu0 %v784, %s797
        %v799 = vpop.permute.xlu0 %798
        %s801 = sor.u32 256, 32
        %802 = vbcast.lane.b32.xlu0 %v784, %s801
        %v803 = vpop.permute.xlu0 %802
        %s805 = sor.u32 256, 40
        %806 = vbcast.lane.b32.xlu0 %v784, %s805
        %v807 = vpop.permute.xlu0 %806
        %s809 = sor.u32 256, 48
        %810 = vbcast.lane.b32.xlu0 %v784, %s809
        %v811 = vpop.permute.xlu0 %810
        %s813 = sor.u32 256, 56
        %814 = vbcast.lane.b32.xlu0 %v784, %s813
        %v815 = vpop.permute.xlu0 %814
        %s817 = sor.u32 256, 64
        %818 = vbcast.lane.b32.xlu0 %v784, %s817
        %v819 = vpop.permute.xlu0 %818
        %s821 = sor.u32 256, 72
        %822 = vbcast.lane.b32.xlu0 %v784, %s821
        %v823 = vpop.permute.xlu0 %822
        %s825 = sor.u32 256, 80
        %826 = vbcast.lane.b32.xlu0 %v784, %s825
        %v827 = vpop.permute.xlu0 %826
        %s829 = sor.u32 256, 88
        %830 = vbcast.lane.b32.xlu0 %v784, %s829
        %v831 = vpop.permute.xlu0 %830
        %s833 = sor.u32 256, 96
        %834 = vbcast.lane.b32.xlu0 %v784, %s833
        %v835 = vpop.permute.xlu0 %834
        %s837 = sor.u32 256, 104
        %838 = vbcast.lane.b32.xlu0 %v784, %s837
        %v839 = vpop.permute.xlu0 %838
        %s841 = sor.u32 256, 112
        %842 = vbcast.lane.b32.xlu0 %v784, %s841
        %v843 = vpop.permute.xlu0 %842
        %s845 = sor.u32 256, 120
        %846 = vbcast.lane.b32.xlu0 %v784, %s845
        %v847 = vpop.permute.xlu0 %846
        %v848 = vlaneseq
        %v849 = vshrl.u32 %v848, 7
        %v850 = vsub.s32 4, %v849
        %v851 = vrot.slane %v576, %v850
        %853 = vbcast.lane.b32.xlu0 %v851, 256
        %v854 = vpop.permute.xlu0 %853
        %s856 = sor.u32 256, 8
        %857 = vbcast.lane.b32.xlu0 %v851, %s856
        %v858 = vpop.permute.xlu0 %857
        %s860 = sor.u32 256, 16
        %861 = vbcast.lane.b32.xlu0 %v851, %s860
        %v862 = vpop.permute.xlu0 %861
        %s864 = sor.u32 256, 24
        %865 = vbcast.lane.b32.xlu0 %v851, %s864
        %v866 = vpop.permute.xlu0 %865
        %s868 = sor.u32 256, 32
        %869 = vbcast.lane.b32.xlu0 %v851, %s868
        %v870 = vpop.permute.xlu0 %869
        %s872 = sor.u32 256, 40
        %873 = vbcast.lane.b32.xlu0 %v851, %s872
        %v874 = vpop.permute.xlu0 %873
        %s876 = sor.u32 256, 48
        %877 = vbcast.lane.b32.xlu0 %v851, %s876
        %v878 = vpop.permute.xlu0 %877
        %s880 = sor.u32 256, 56
        %881 = vbcast.lane.b32.xlu0 %v851, %s880
        %v882 = vpop.permute.xlu0 %881
        %s884 = sor.u32 256, 64
        %885 = vbcast.lane.b32.xlu0 %v851, %s884
        %v886 = vpop.permute.xlu0 %885
        %s888 = sor.u32 256, 72
        %889 = vbcast.lane.b32.xlu0 %v851, %s888
        %v890 = vpop.permute.xlu0 %889
        %s892 = sor.u32 256, 80
        %893 = vbcast.lane.b32.xlu0 %v851, %s892
        %v894 = vpop.permute.xlu0 %893
        %s896 = sor.u32 256, 88
        %897 = vbcast.lane.b32.xlu0 %v851, %s896
        %v898 = vpop.permute.xlu0 %897
        %s900 = sor.u32 256, 96
        %901 = vbcast.lane.b32.xlu0 %v851, %s900
        %v902 = vpop.permute.xlu0 %901
        %s904 = sor.u32 256, 104
        %905 = vbcast.lane.b32.xlu0 %v851, %s904
        %v906 = vpop.permute.xlu0 %905
        %s908 = sor.u32 256, 112
        %909 = vbcast.lane.b32.xlu0 %v851, %s908
        %v910 = vpop.permute.xlu0 %909
        %s912 = sor.u32 256, 120
        %913 = vbcast.lane.b32.xlu0 %v851, %s912
        %v914 = vpop.permute.xlu0 %913
        %v915 = vlaneseq
        %v916 = vshrl.u32 %v915, 7
        %v917 = vsub.s32 5, %v916
        %v918 = vrot.slane %v576, %v917
        %920 = vbcast.lane.b32.xlu0 %v918, 256
        %v921 = vpop.permute.xlu0 %920
        %s923 = sor.u32 256, 8
        %924 = vbcast.lane.b32.xlu0 %v918, %s923
        %v925 = vpop.permute.xlu0 %924
        %s927 = sor.u32 256, 16
        %928 = vbcast.lane.b32.xlu0 %v918, %s927
        %v929 = vpop.permute.xlu0 %928
        %s931 = sor.u32 256, 24
        %932 = vbcast.lane.b32.xlu0 %v918, %s931
        %v933 = vpop.permute.xlu0 %932
        %s935 = sor.u32 256, 32
        %936 = vbcast.lane.b32.xlu0 %v918, %s935
        %v937 = vpop.permute.xlu0 %936
        %s939 = sor.u32 256, 40
        %940 = vbcast.lane.b32.xlu0 %v918, %s939
        %v941 = vpop.permute.xlu0 %940
        %s943 = sor.u32 256, 48
        %944 = vbcast.lane.b32.xlu0 %v918, %s943
        %v945 = vpop.permute.xlu0 %944
        %s947 = sor.u32 256, 56
        %948 = vbcast.lane.b32.xlu0 %v918, %s947
        %v949 = vpop.permute.xlu0 %948
        %s951 = sor.u32 256, 64
        %952 = vbcast.lane.b32.xlu0 %v918, %s951
        %v953 = vpop.permute.xlu0 %952
        %s955 = sor.u32 256, 72
        %956 = vbcast.lane.b32.xlu0 %v918, %s955
        %v957 = vpop.permute.xlu0 %956
        %s959 = sor.u32 256, 80
        %960 = vbcast.lane.b32.xlu0 %v918, %s959
        %v961 = vpop.permute.xlu0 %960
        %s963 = sor.u32 256, 88
        %964 = vbcast.lane.b32.xlu0 %v918, %s963
        %v965 = vpop.permute.xlu0 %964
        %s967 = sor.u32 256, 96
        %968 = vbcast.lane.b32.xlu0 %v918, %s967
        %v969 = vpop.permute.xlu0 %968
        %s971 = sor.u32 256, 104
        %972 = vbcast.lane.b32.xlu0 %v918, %s971
        %v973 = vpop.permute.xlu0 %972
        %s975 = sor.u32 256, 112
        %976 = vbcast.lane.b32.xlu0 %v918, %s975
        %v977 = vpop.permute.xlu0 %976
        %s979 = sor.u32 256, 120
        %980 = vbcast.lane.b32.xlu0 %v918, %s979
        %v981 = vpop.permute.xlu0 %980
        %v982 = vlaneseq
        %v983 = vshrl.u32 %v982, 7
        %v984 = vsub.s32 6, %v983
        %v985 = vrot.slane %v576, %v984
        %987 = vbcast.lane.b32.xlu0 %v985, 256
        %v988 = vpop.permute.xlu0 %987
        %s990 = sor.u32 256, 8
        %991 = vbcast.lane.b32.xlu0 %v985, %s990
        %v992 = vpop.permute.xlu0 %991
        %s994 = sor.u32 256, 16
        %995 = vbcast.lane.b32.xlu0 %v985, %s994
        %v996 = vpop.permute.xlu0 %995
        %s998 = sor.u32 256, 24
        %999 = vbcast.lane.b32.xlu0 %v985, %s998
        %v1000 = vpop.permute.xlu0 %999
        %s1002 = sor.u32 256, 32
        %1003 = vbcast.lane.b32.xlu0 %v985, %s1002
        %v1004 = vpop.permute.xlu0 %1003
        %s1006 = sor.u32 256, 40
        %1007 = vbcast.lane.b32.xlu0 %v985, %s1006
        %v1008 = vpop.permute.xlu0 %1007
        %s1010 = sor.u32 256, 48
        %1011 = vbcast.lane.b32.xlu0 %v985, %s1010
        %v1012 = vpop.permute.xlu0 %1011
        %s1014 = sor.u32 256, 56
        %1015 = vbcast.lane.b32.xlu0 %v985, %s1014
        %v1016 = vpop.permute.xlu0 %1015
        %s1018 = sor.u32 256, 64
        %1019 = vbcast.lane.b32.xlu0 %v985, %s1018
        %v1020 = vpop.permute.xlu0 %1019
        %s1022 = sor.u32 256, 72
        %1023 = vbcast.lane.b32.xlu0 %v985, %s1022
        %v1024 = vpop.permute.xlu0 %1023
        %s1026 = sor.u32 256, 80
        %1027 = vbcast.lane.b32.xlu0 %v985, %s1026
        %v1028 = vpop.permute.xlu0 %1027
        %s1030 = sor.u32 256, 88
        %1031 = vbcast.lane.b32.xlu0 %v985, %s1030
        %v1032 = vpop.permute.xlu0 %1031
        %s1034 = sor.u32 256, 96
        %1035 = vbcast.lane.b32.xlu0 %v985, %s1034
        %v1036 = vpop.permute.xlu0 %1035
        %s1038 = sor.u32 256, 104
        %1039 = vbcast.lane.b32.xlu0 %v985, %s1038
        %v1040 = vpop.permute.xlu0 %1039
        %s1042 = sor.u32 256, 112
        %1043 = vbcast.lane.b32.xlu0 %v985, %s1042
        %v1044 = vpop.permute.xlu0 %1043
        %s1046 = sor.u32 256, 120
        %1047 = vbcast.lane.b32.xlu0 %v985, %s1046
        %v1048 = vpop.permute.xlu0 %1047
        %v1049 = vlaneseq
        %v1050 = vshrl.u32 %v1049, 7
        %v1051 = vsub.s32 7, %v1050
        %v1052 = vrot.slane %v576, %v1051
        %1054 = vbcast.lane.b32.xlu0 %v1052, 256
        %v1055 = vpop.permute.xlu0 %1054
        %s1057 = sor.u32 256, 8
        %1058 = vbcast.lane.b32.xlu0 %v1052, %s1057
        %v1059 = vpop.permute.xlu0 %1058
        %s1061 = sor.u32 256, 16
        %1062 = vbcast.lane.b32.xlu0 %v1052, %s1061
        %v1063 = vpop.permute.xlu0 %1062
        %s1065 = sor.u32 256, 24
        %1066 = vbcast.lane.b32.xlu0 %v1052, %s1065
        %v1067 = vpop.permute.xlu0 %1066
        %s1069 = sor.u32 256, 32
        %1070 = vbcast.lane.b32.xlu0 %v1052, %s1069
        %v1071 = vpop.permute.xlu0 %1070
        %s1073 = sor.u32 256, 40
        %1074 = vbcast.lane.b32.xlu0 %v1052, %s1073
        %v1075 = vpop.permute.xlu0 %1074
        %s1077 = sor.u32 256, 48
        %1078 = vbcast.lane.b32.xlu0 %v1052, %s1077
        %v1079 = vpop.permute.xlu0 %1078
        %s1081 = sor.u32 256, 56
        %1082 = vbcast.lane.b32.xlu0 %v1052, %s1081
        %v1083 = vpop.permute.xlu0 %1082
        %s1085 = sor.u32 256, 64
        %1086 = vbcast.lane.b32.xlu0 %v1052, %s1085
        %v1087 = vpop.permute.xlu0 %1086
        %s1089 = sor.u32 256, 72
        %1090 = vbcast.lane.b32.xlu0 %v1052, %s1089
        %v1091 = vpop.permute.xlu0 %1090
        %s1093 = sor.u32 256, 80
        %1094 = vbcast.lane.b32.xlu0 %v1052, %s1093
        %v1095 = vpop.permute.xlu0 %1094
        %s1097 = sor.u32 256, 88
        %1098 = vbcast.lane.b32.xlu0 %v1052, %s1097
        %v1099 = vpop.permute.xlu0 %1098
        %s1101 = sor.u32 256, 96
        %1102 = vbcast.lane.b32.xlu0 %v1052, %s1101
        %v1103 = vpop.permute.xlu0 %1102
        %s1105 = sor.u32 256, 104
        %1106 = vbcast.lane.b32.xlu0 %v1052, %s1105
        %v1107 = vpop.permute.xlu0 %1106
        %s1109 = sor.u32 256, 112
        %1110 = vbcast.lane.b32.xlu0 %v1052, %s1109
        %v1111 = vpop.permute.xlu0 %1110
        %s1113 = sor.u32 256, 120
        %1114 = vbcast.lane.b32.xlu0 %v1052, %s1113
        %v1115 = vpop.permute.xlu0 %1114
        %v1116 = vlaneseq
        %v1117 = vshrl.u32 %v1116, 7
        %v1118 = vsub.s32 0, %v1117
        %v1119 = vrot.slane %v577, %v1118
        %1121 = vbcast.lane.b32.xlu0 %v1119, 256
        %v1122 = vpop.permute.xlu0 %1121
        %s1124 = sor.u32 256, 8
        %1125 = vbcast.lane.b32.xlu0 %v1119, %s1124
        %v1126 = vpop.permute.xlu0 %1125
        %s1128 = sor.u32 256, 16
        %1129 = vbcast.lane.b32.xlu0 %v1119, %s1128
        %v1130 = vpop.permute.xlu0 %1129
        %s1132 = sor.u32 256, 24
        %1133 = vbcast.lane.b32.xlu0 %v1119, %s1132
        %v1134 = vpop.permute.xlu0 %1133
        %s1136 = sor.u32 256, 32
        %1137 = vbcast.lane.b32.xlu0 %v1119, %s1136
        %v1138 = vpop.permute.xlu0 %1137
        %s1140 = sor.u32 256, 40
        %1141 = vbcast.lane.b32.xlu0 %v1119, %s1140
        %v1142 = vpop.permute.xlu0 %1141
        %s1144 = sor.u32 256, 48
        %1145 = vbcast.lane.b32.xlu0 %v1119, %s1144
        %v1146 = vpop.permute.xlu0 %1145
        %s1148 = sor.u32 256, 56
        %1149 = vbcast.lane.b32.xlu0 %v1119, %s1148
        %v1150 = vpop.permute.xlu0 %1149
        %s1152 = sor.u32 256, 64
        %1153 = vbcast.lane.b32.xlu0 %v1119, %s1152
        %v1154 = vpop.permute.xlu0 %1153
        %s1156 = sor.u32 256, 72
        %1157 = vbcast.lane.b32.xlu0 %v1119, %s1156
        %v1158 = vpop.permute.xlu0 %1157
        %s1160 = sor.u32 256, 80
        %1161 = vbcast.lane.b32.xlu0 %v1119, %s1160
        %v1162 = vpop.permute.xlu0 %1161
        %s1164 = sor.u32 256, 88
        %1165 = vbcast.lane.b32.xlu0 %v1119, %s1164
        %v1166 = vpop.permute.xlu0 %1165
        %s1168 = sor.u32 256, 96
        %1169 = vbcast.lane.b32.xlu0 %v1119, %s1168
        %v1170 = vpop.permute.xlu0 %1169
        %s1172 = sor.u32 256, 104
        %1173 = vbcast.lane.b32.xlu0 %v1119, %s1172
        %v1174 = vpop.permute.xlu0 %1173
        %s1176 = sor.u32 256, 112
        %1177 = vbcast.lane.b32.xlu0 %v1119, %s1176
        %v1178 = vpop.permute.xlu0 %1177
        %s1180 = sor.u32 256, 120
        %1181 = vbcast.lane.b32.xlu0 %v1119, %s1180
        %v1182 = vpop.permute.xlu0 %1181
        %v1183 = vlaneseq
        %v1184 = vshrl.u32 %v1183, 7
        %v1185 = vsub.s32 1, %v1184
        %v1186 = vrot.slane %v577, %v1185
        %1188 = vbcast.lane.b32.xlu0 %v1186, 256
        %v1189 = vpop.permute.xlu0 %1188
        %s1191 = sor.u32 256, 8
        %1192 = vbcast.lane.b32.xlu0 %v1186, %s1191
        %v1193 = vpop.permute.xlu0 %1192
        %s1195 = sor.u32 256, 16
        %1196 = vbcast.lane.b32.xlu0 %v1186, %s1195
        %v1197 = vpop.permute.xlu0 %1196
        %s1199 = sor.u32 256, 24
        %1200 = vbcast.lane.b32.xlu0 %v1186, %s1199
        %v1201 = vpop.permute.xlu0 %1200
        %s1203 = sor.u32 256, 32
        %1204 = vbcast.lane.b32.xlu0 %v1186, %s1203
        %v1205 = vpop.permute.xlu0 %1204
        %s1207 = sor.u32 256, 40
        %1208 = vbcast.lane.b32.xlu0 %v1186, %s1207
        %v1209 = vpop.permute.xlu0 %1208
        %s1211 = sor.u32 256, 48
        %1212 = vbcast.lane.b32.xlu0 %v1186, %s1211
        %v1213 = vpop.permute.xlu0 %1212
        %s1215 = sor.u32 256, 56
        %1216 = vbcast.lane.b32.xlu0 %v1186, %s1215
        %v1217 = vpop.permute.xlu0 %1216
        %s1219 = sor.u32 256, 64
        %1220 = vbcast.lane.b32.xlu0 %v1186, %s1219
        %v1221 = vpop.permute.xlu0 %1220
        %s1223 = sor.u32 256, 72
        %1224 = vbcast.lane.b32.xlu0 %v1186, %s1223
        %v1225 = vpop.permute.xlu0 %1224
        %s1227 = sor.u32 256, 80
        %1228 = vbcast.lane.b32.xlu0 %v1186, %s1227
        %v1229 = vpop.permute.xlu0 %1228
        %s1231 = sor.u32 256, 88
        %1232 = vbcast.lane.b32.xlu0 %v1186, %s1231
        %v1233 = vpop.permute.xlu0 %1232
        %s1235 = sor.u32 256, 96
        %1236 = vbcast.lane.b32.xlu0 %v1186, %s1235
        %v1237 = vpop.permute.xlu0 %1236
        %s1239 = sor.u32 256, 104
        %1240 = vbcast.lane.b32.xlu0 %v1186, %s1239
        %v1241 = vpop.permute.xlu0 %1240
        %s1243 = sor.u32 256, 112
        %1244 = vbcast.lane.b32.xlu0 %v1186, %s1243
        %v1245 = vpop.permute.xlu0 %1244
        %s1247 = sor.u32 256, 120
        %1248 = vbcast.lane.b32.xlu0 %v1186, %s1247
        %v1249 = vpop.permute.xlu0 %1248
        %v1250 = vlaneseq
        %v1251 = vshrl.u32 %v1250, 7
        %v1252 = vsub.s32 2, %v1251
        %v1253 = vrot.slane %v577, %v1252
        %1255 = vbcast.lane.b32.xlu0 %v1253, 256
        %v1256 = vpop.permute.xlu0 %1255
        %s1258 = sor.u32 256, 8
        %1259 = vbcast.lane.b32.xlu0 %v1253, %s1258
        %v1260 = vpop.permute.xlu0 %1259
        %s1262 = sor.u32 256, 16
        %1263 = vbcast.lane.b32.xlu0 %v1253, %s1262
        %v1264 = vpop.permute.xlu0 %1263
        %s1266 = sor.u32 256, 24
        %1267 = vbcast.lane.b32.xlu0 %v1253, %s1266
        %v1268 = vpop.permute.xlu0 %1267
        %s1270 = sor.u32 256, 32
        %1271 = vbcast.lane.b32.xlu0 %v1253, %s1270
        %v1272 = vpop.permute.xlu0 %1271
        %s1274 = sor.u32 256, 40
        %1275 = vbcast.lane.b32.xlu0 %v1253, %s1274
        %v1276 = vpop.permute.xlu0 %1275
        %s1278 = sor.u32 256, 48
        %1279 = vbcast.lane.b32.xlu0 %v1253, %s1278
        %v1280 = vpop.permute.xlu0 %1279
        %s1282 = sor.u32 256, 56
        %1283 = vbcast.lane.b32.xlu0 %v1253, %s1282
        %v1284 = vpop.permute.xlu0 %1283
        %s1286 = sor.u32 256, 64
        %1287 = vbcast.lane.b32.xlu0 %v1253, %s1286
        %v1288 = vpop.permute.xlu0 %1287
        %s1290 = sor.u32 256, 72
        %1291 = vbcast.lane.b32.xlu0 %v1253, %s1290
        %v1292 = vpop.permute.xlu0 %1291
        %s1294 = sor.u32 256, 80
        %1295 = vbcast.lane.b32.xlu0 %v1253, %s1294
        %v1296 = vpop.permute.xlu0 %1295
        %s1298 = sor.u32 256, 88
        %1299 = vbcast.lane.b32.xlu0 %v1253, %s1298
        %v1300 = vpop.permute.xlu0 %1299
        %s1302 = sor.u32 256, 96
        %1303 = vbcast.lane.b32.xlu0 %v1253, %s1302
        %v1304 = vpop.permute.xlu0 %1303
        %s1306 = sor.u32 256, 104
        %1307 = vbcast.lane.b32.xlu0 %v1253, %s1306
        %v1308 = vpop.permute.xlu0 %1307
        %s1310 = sor.u32 256, 112
        %1311 = vbcast.lane.b32.xlu0 %v1253, %s1310
        %v1312 = vpop.permute.xlu0 %1311
        %s1314 = sor.u32 256, 120
        %1315 = vbcast.lane.b32.xlu0 %v1253, %s1314
        %v1316 = vpop.permute.xlu0 %1315
        %v1317 = vlaneseq
        %v1318 = vshrl.u32 %v1317, 7
        %v1319 = vsub.s32 3, %v1318
        %v1320 = vrot.slane %v577, %v1319
        %1322 = vbcast.lane.b32.xlu0 %v1320, 256
        %v1323 = vpop.permute.xlu0 %1322
        %s1325 = sor.u32 256, 8
        %1326 = vbcast.lane.b32.xlu0 %v1320, %s1325
        %v1327 = vpop.permute.xlu0 %1326
        %s1329 = sor.u32 256, 16
        %1330 = vbcast.lane.b32.xlu0 %v1320, %s1329
        %v1331 = vpop.permute.xlu0 %1330
        %s1333 = sor.u32 256, 24
        %1334 = vbcast.lane.b32.xlu0 %v1320, %s1333
        %v1335 = vpop.permute.xlu0 %1334
        %s1337 = sor.u32 256, 32
        %1338 = vbcast.lane.b32.xlu0 %v1320, %s1337
        %v1339 = vpop.permute.xlu0 %1338
        %s1341 = sor.u32 256, 40
        %1342 = vbcast.lane.b32.xlu0 %v1320, %s1341
        %v1343 = vpop.permute.xlu0 %1342
        %s1345 = sor.u32 256, 48
        %1346 = vbcast.lane.b32.xlu0 %v1320, %s1345
        %v1347 = vpop.permute.xlu0 %1346
        %s1349 = sor.u32 256, 56
        %1350 = vbcast.lane.b32.xlu0 %v1320, %s1349
        %v1351 = vpop.permute.xlu0 %1350
        %s1353 = sor.u32 256, 64
        %1354 = vbcast.lane.b32.xlu0 %v1320, %s1353
        %v1355 = vpop.permute.xlu0 %1354
        %s1357 = sor.u32 256, 72
        %1358 = vbcast.lane.b32.xlu0 %v1320, %s1357
        %v1359 = vpop.permute.xlu0 %1358
        %s1361 = sor.u32 256, 80
        %1362 = vbcast.lane.b32.xlu0 %v1320, %s1361
        %v1363 = vpop.permute.xlu0 %1362
        %s1365 = sor.u32 256, 88
        %1366 = vbcast.lane.b32.xlu0 %v1320, %s1365
        %v1367 = vpop.permute.xlu0 %1366
        %s1369 = sor.u32 256, 96
        %1370 = vbcast.lane.b32.xlu0 %v1320, %s1369
        %v1371 = vpop.permute.xlu0 %1370
        %s1373 = sor.u32 256, 104
        %1374 = vbcast.lane.b32.xlu0 %v1320, %s1373
        %v1375 = vpop.permute.xlu0 %1374
        %s1377 = sor.u32 256, 112
        %1378 = vbcast.lane.b32.xlu0 %v1320, %s1377
        %v1379 = vpop.permute.xlu0 %1378
        %s1381 = sor.u32 256, 120
        %1382 = vbcast.lane.b32.xlu0 %v1320, %s1381
        %v1383 = vpop.permute.xlu0 %1382
        %v1384 = vlaneseq
        %v1385 = vshrl.u32 %v1384, 7
        %v1386 = vsub.s32 4, %v1385
        %v1387 = vrot.slane %v577, %v1386
        %1389 = vbcast.lane.b32.xlu0 %v1387, 256
        %v1390 = vpop.permute.xlu0 %1389
        %s1392 = sor.u32 256, 8
        %1393 = vbcast.lane.b32.xlu0 %v1387, %s1392
        %v1394 = vpop.permute.xlu0 %1393
        %s1396 = sor.u32 256, 16
        %1397 = vbcast.lane.b32.xlu0 %v1387, %s1396
        %v1398 = vpop.permute.xlu0 %1397
        %s1400 = sor.u32 256, 24
        %1401 = vbcast.lane.b32.xlu0 %v1387, %s1400
        %v1402 = vpop.permute.xlu0 %1401
        %s1404 = sor.u32 256, 32
        %1405 = vbcast.lane.b32.xlu0 %v1387, %s1404
        %v1406 = vpop.permute.xlu0 %1405
        %s1408 = sor.u32 256, 40
        %1409 = vbcast.lane.b32.xlu0 %v1387, %s1408
        %v1410 = vpop.permute.xlu0 %1409
        %s1412 = sor.u32 256, 48
        %1413 = vbcast.lane.b32.xlu0 %v1387, %s1412
        %v1414 = vpop.permute.xlu0 %1413
        %s1416 = sor.u32 256, 56
        %1417 = vbcast.lane.b32.xlu0 %v1387, %s1416
        %v1418 = vpop.permute.xlu0 %1417
        %s1420 = sor.u32 256, 64
        %1421 = vbcast.lane.b32.xlu0 %v1387, %s1420
        %v1422 = vpop.permute.xlu0 %1421
        %s1424 = sor.u32 256, 72
        %1425 = vbcast.lane.b32.xlu0 %v1387, %s1424
        %v1426 = vpop.permute.xlu0 %1425
        %s1428 = sor.u32 256, 80
        %1429 = vbcast.lane.b32.xlu0 %v1387, %s1428
        %v1430 = vpop.permute.xlu0 %1429
        %s1432 = sor.u32 256, 88
        %1433 = vbcast.lane.b32.xlu0 %v1387, %s1432
        %v1434 = vpop.permute.xlu0 %1433
        %s1436 = sor.u32 256, 96
        %1437 = vbcast.lane.b32.xlu0 %v1387, %s1436
        %v1438 = vpop.permute.xlu0 %1437
        %s1440 = sor.u32 256, 104
        %1441 = vbcast.lane.b32.xlu0 %v1387, %s1440
        %v1442 = vpop.permute.xlu0 %1441
        %s1444 = sor.u32 256, 112
        %1445 = vbcast.lane.b32.xlu0 %v1387, %s1444
        %v1446 = vpop.permute.xlu0 %1445
        %s1448 = sor.u32 256, 120
        %1449 = vbcast.lane.b32.xlu0 %v1387, %s1448
        %v1450 = vpop.permute.xlu0 %1449
        %v1451 = vlaneseq
        %v1452 = vshrl.u32 %v1451, 7
        %v1453 = vsub.s32 5, %v1452
        %v1454 = vrot.slane %v577, %v1453
        %1456 = vbcast.lane.b32.xlu0 %v1454, 256
        %v1457 = vpop.permute.xlu0 %1456
        %s1459 = sor.u32 256, 8
        %1460 = vbcast.lane.b32.xlu0 %v1454, %s1459
        %v1461 = vpop.permute.xlu0 %1460
        %s1463 = sor.u32 256, 16
        %1464 = vbcast.lane.b32.xlu0 %v1454, %s1463
        %v1465 = vpop.permute.xlu0 %1464
        %s1467 = sor.u32 256, 24
        %1468 = vbcast.lane.b32.xlu0 %v1454, %s1467
        %v1469 = vpop.permute.xlu0 %1468
        %s1471 = sor.u32 256, 32
        %1472 = vbcast.lane.b32.xlu0 %v1454, %s1471
        %v1473 = vpop.permute.xlu0 %1472
        %s1475 = sor.u32 256, 40
        %1476 = vbcast.lane.b32.xlu0 %v1454, %s1475
        %v1477 = vpop.permute.xlu0 %1476
        %s1479 = sor.u32 256, 48
        %1480 = vbcast.lane.b32.xlu0 %v1454, %s1479
        %v1481 = vpop.permute.xlu0 %1480
        %s1483 = sor.u32 256, 56
        %1484 = vbcast.lane.b32.xlu0 %v1454, %s1483
        %v1485 = vpop.permute.xlu0 %1484
        %s1487 = sor.u32 256, 64
        %1488 = vbcast.lane.b32.xlu0 %v1454, %s1487
        %v1489 = vpop.permute.xlu0 %1488
        %s1491 = sor.u32 256, 72
        %1492 = vbcast.lane.b32.xlu0 %v1454, %s1491
        %v1493 = vpop.permute.xlu0 %1492
        %s1495 = sor.u32 256, 80
        %1496 = vbcast.lane.b32.xlu0 %v1454, %s1495
        %v1497 = vpop.permute.xlu0 %1496
        %s1499 = sor.u32 256, 88
        %1500 = vbcast.lane.b32.xlu0 %v1454, %s1499
        %v1501 = vpop.permute.xlu0 %1500
        %s1503 = sor.u32 256, 96
        %1504 = vbcast.lane.b32.xlu0 %v1454, %s1503
        %v1505 = vpop.permute.xlu0 %1504
        %s1507 = sor.u32 256, 104
        %1508 = vbcast.lane.b32.xlu0 %v1454, %s1507
        %v1509 = vpop.permute.xlu0 %1508
        %s1511 = sor.u32 256, 112
        %1512 = vbcast.lane.b32.xlu0 %v1454, %s1511
        %v1513 = vpop.permute.xlu0 %1512
        %s1515 = sor.u32 256, 120
        %1516 = vbcast.lane.b32.xlu0 %v1454, %s1515
        %v1517 = vpop.permute.xlu0 %1516
        %v1518 = vlaneseq
        %v1519 = vshrl.u32 %v1518, 7
        %v1520 = vsub.s32 6, %v1519
        %v1521 = vrot.slane %v577, %v1520
        %1523 = vbcast.lane.b32.xlu0 %v1521, 256
        %v1524 = vpop.permute.xlu0 %1523
        %s1526 = sor.u32 256, 8
        %1527 = vbcast.lane.b32.xlu0 %v1521, %s1526
        %v1528 = vpop.permute.xlu0 %1527
        %s1530 = sor.u32 256, 16
        %1531 = vbcast.lane.b32.xlu0 %v1521, %s1530
        %v1532 = vpop.permute.xlu0 %1531
        %s1534 = sor.u32 256, 24
        %1535 = vbcast.lane.b32.xlu0 %v1521, %s1534
        %v1536 = vpop.permute.xlu0 %1535
        %s1538 = sor.u32 256, 32
        %1539 = vbcast.lane.b32.xlu0 %v1521, %s1538
        %v1540 = vpop.permute.xlu0 %1539
        %s1542 = sor.u32 256, 40
        %1543 = vbcast.lane.b32.xlu0 %v1521, %s1542
        %v1544 = vpop.permute.xlu0 %1543
        %s1546 = sor.u32 256, 48
        %1547 = vbcast.lane.b32.xlu0 %v1521, %s1546
        %v1548 = vpop.permute.xlu0 %1547
        %s1550 = sor.u32 256, 56
        %1551 = vbcast.lane.b32.xlu0 %v1521, %s1550
        %v1552 = vpop.permute.xlu0 %1551
        %s1554 = sor.u32 256, 64
        %1555 = vbcast.lane.b32.xlu0 %v1521, %s1554
        %v1556 = vpop.permute.xlu0 %1555
        %s1558 = sor.u32 256, 72
        %1559 = vbcast.lane.b32.xlu0 %v1521, %s1558
        %v1560 = vpop.permute.xlu0 %1559
        %s1562 = sor.u32 256, 80
        %1563 = vbcast.lane.b32.xlu0 %v1521, %s1562
        %v1564 = vpop.permute.xlu0 %1563
        %s1566 = sor.u32 256, 88
        %1567 = vbcast.lane.b32.xlu0 %v1521, %s1566
        %v1568 = vpop.permute.xlu0 %1567
        %s1570 = sor.u32 256, 96
        %1571 = vbcast.lane.b32.xlu0 %v1521, %s1570
        %v1572 = vpop.permute.xlu0 %1571
        %s1574 = sor.u32 256, 104
        %1575 = vbcast.lane.b32.xlu0 %v1521, %s1574
        %v1576 = vpop.permute.xlu0 %1575
        %s1578 = sor.u32 256, 112
        %1579 = vbcast.lane.b32.xlu0 %v1521, %s1578
        %v1580 = vpop.permute.xlu0 %1579
        %s1582 = sor.u32 256, 120
        %1583 = vbcast.lane.b32.xlu0 %v1521, %s1582
        %v1584 = vpop.permute.xlu0 %1583
        %v1585 = vlaneseq
        %v1586 = vshrl.u32 %v1585, 7
        %v1587 = vsub.s32 7, %v1586
        %v1588 = vrot.slane %v577, %v1587
        %1590 = vbcast.lane.b32.xlu0 %v1588, 256
        %v1591 = vpop.permute.xlu0 %1590
        %s1593 = sor.u32 256, 8
        %1594 = vbcast.lane.b32.xlu0 %v1588, %s1593
        %v1595 = vpop.permute.xlu0 %1594
        %s1597 = sor.u32 256, 16
        %1598 = vbcast.lane.b32.xlu0 %v1588, %s1597
        %v1599 = vpop.permute.xlu0 %1598
        %s1601 = sor.u32 256, 24
        %1602 = vbcast.lane.b32.xlu0 %v1588, %s1601
        %v1603 = vpop.permute.xlu0 %1602
        %s1605 = sor.u32 256, 32
        %1606 = vbcast.lane.b32.xlu0 %v1588, %s1605
        %v1607 = vpop.permute.xlu0 %1606
        %s1609 = sor.u32 256, 40
        %1610 = vbcast.lane.b32.xlu0 %v1588, %s1609
        %v1611 = vpop.permute.xlu0 %1610
        %s1613 = sor.u32 256, 48
        %1614 = vbcast.lane.b32.xlu0 %v1588, %s1613
        %v1615 = vpop.permute.xlu0 %1614
        %s1617 = sor.u32 256, 56
        %1618 = vbcast.lane.b32.xlu0 %v1588, %s1617
        %v1619 = vpop.permute.xlu0 %1618
        %s1621 = sor.u32 256, 64
        %1622 = vbcast.lane.b32.xlu0 %v1588, %s1621
        %v1623 = vpop.permute.xlu0 %1622
        %s1625 = sor.u32 256, 72
        %1626 = vbcast.lane.b32.xlu0 %v1588, %s1625
        %v1627 = vpop.permute.xlu0 %1626
        %s1629 = sor.u32 256, 80
        %1630 = vbcast.lane.b32.xlu0 %v1588, %s1629
        %v1631 = vpop.permute.xlu0 %1630
        %s1633 = sor.u32 256, 88
        %1634 = vbcast.lane.b32.xlu0 %v1588, %s1633
        %v1635 = vpop.permute.xlu0 %1634
        %s1637 = sor.u32 256, 96
        %1638 = vbcast.lane.b32.xlu0 %v1588, %s1637
        %v1639 = vpop.permute.xlu0 %1638
        %s1641 = sor.u32 256, 104
        %1642 = vbcast.lane.b32.xlu0 %v1588, %s1641
        %v1643 = vpop.permute.xlu0 %1642
        %s1645 = sor.u32 256, 112
        %1646 = vbcast.lane.b32.xlu0 %v1588, %s1645
        %v1647 = vpop.permute.xlu0 %1646
        %s1649 = sor.u32 256, 120
        %1650 = vbcast.lane.b32.xlu0 %v1588, %s1649
        %v1651 = vpop.permute.xlu0 %1650
        %v1652 = vlaneseq
        %v1653 = vshrl.u32 %v1652, 7
        %v1654 = vsub.s32 0, %v1653
        %v1655 = vrot.slane %v578, %v1654
        %1657 = vbcast.lane.b32.xlu0 %v1655, 256
        %v1658 = vpop.permute.xlu0 %1657
        %s1660 = sor.u32 256, 8
        %1661 = vbcast.lane.b32.xlu0 %v1655, %s1660
        %v1662 = vpop.permute.xlu0 %1661
        %s1664 = sor.u32 256, 16
        %1665 = vbcast.lane.b32.xlu0 %v1655, %s1664
        %v1666 = vpop.permute.xlu0 %1665
        %s1668 = sor.u32 256, 24
        %1669 = vbcast.lane.b32.xlu0 %v1655, %s1668
        %v1670 = vpop.permute.xlu0 %1669
        %s1672 = sor.u32 256, 32
        %1673 = vbcast.lane.b32.xlu0 %v1655, %s1672
        %v1674 = vpop.permute.xlu0 %1673
        %s1676 = sor.u32 256, 40
        %1677 = vbcast.lane.b32.xlu0 %v1655, %s1676
        %v1678 = vpop.permute.xlu0 %1677
        %s1680 = sor.u32 256, 48
        %1681 = vbcast.lane.b32.xlu0 %v1655, %s1680
        %v1682 = vpop.permute.xlu0 %1681
        %s1684 = sor.u32 256, 56
        %1685 = vbcast.lane.b32.xlu0 %v1655, %s1684
        %v1686 = vpop.permute.xlu0 %1685
        %s1688 = sor.u32 256, 64
        %1689 = vbcast.lane.b32.xlu0 %v1655, %s1688
        %v1690 = vpop.permute.xlu0 %1689
        %s1692 = sor.u32 256, 72
        %1693 = vbcast.lane.b32.xlu0 %v1655, %s1692
        %v1694 = vpop.permute.xlu0 %1693
        %s1696 = sor.u32 256, 80
        %1697 = vbcast.lane.b32.xlu0 %v1655, %s1696
        %v1698 = vpop.permute.xlu0 %1697
        %s1700 = sor.u32 256, 88
        %1701 = vbcast.lane.b32.xlu0 %v1655, %s1700
        %v1702 = vpop.permute.xlu0 %1701
        %s1704 = sor.u32 256, 96
        %1705 = vbcast.lane.b32.xlu0 %v1655, %s1704
        %v1706 = vpop.permute.xlu0 %1705
        %s1708 = sor.u32 256, 104
        %1709 = vbcast.lane.b32.xlu0 %v1655, %s1708
        %v1710 = vpop.permute.xlu0 %1709
        %s1712 = sor.u32 256, 112
        %1713 = vbcast.lane.b32.xlu0 %v1655, %s1712
        %v1714 = vpop.permute.xlu0 %1713
        %s1716 = sor.u32 256, 120
        %1717 = vbcast.lane.b32.xlu0 %v1655, %s1716
        %v1718 = vpop.permute.xlu0 %1717
        %v1719 = vlaneseq
        %v1720 = vshrl.u32 %v1719, 7
        %v1721 = vsub.s32 1, %v1720
        %v1722 = vrot.slane %v578, %v1721
        %1724 = vbcast.lane.b32.xlu0 %v1722, 256
        %v1725 = vpop.permute.xlu0 %1724
        %s1727 = sor.u32 256, 8
        %1728 = vbcast.lane.b32.xlu0 %v1722, %s1727
        %v1729 = vpop.permute.xlu0 %1728
        %s1731 = sor.u32 256, 16
        %1732 = vbcast.lane.b32.xlu0 %v1722, %s1731
        %v1733 = vpop.permute.xlu0 %1732
        %s1735 = sor.u32 256, 24
        %1736 = vbcast.lane.b32.xlu0 %v1722, %s1735
        %v1737 = vpop.permute.xlu0 %1736
        %s1739 = sor.u32 256, 32
        %1740 = vbcast.lane.b32.xlu0 %v1722, %s1739
        %v1741 = vpop.permute.xlu0 %1740
        %s1743 = sor.u32 256, 40
        %1744 = vbcast.lane.b32.xlu0 %v1722, %s1743
        %v1745 = vpop.permute.xlu0 %1744
        %s1747 = sor.u32 256, 48
        %1748 = vbcast.lane.b32.xlu0 %v1722, %s1747
        %v1749 = vpop.permute.xlu0 %1748
        %s1751 = sor.u32 256, 56
        %1752 = vbcast.lane.b32.xlu0 %v1722, %s1751
        %v1753 = vpop.permute.xlu0 %1752
        %s1755 = sor.u32 256, 64
        %1756 = vbcast.lane.b32.xlu0 %v1722, %s1755
        %v1757 = vpop.permute.xlu0 %1756
        %s1759 = sor.u32 256, 72
        %1760 = vbcast.lane.b32.xlu0 %v1722, %s1759
        %v1761 = vpop.permute.xlu0 %1760
        %s1763 = sor.u32 256, 80
        %1764 = vbcast.lane.b32.xlu0 %v1722, %s1763
        %v1765 = vpop.permute.xlu0 %1764
        %s1767 = sor.u32 256, 88
        %1768 = vbcast.lane.b32.xlu0 %v1722, %s1767
        %v1769 = vpop.permute.xlu0 %1768
        %s1771 = sor.u32 256, 96
        %1772 = vbcast.lane.b32.xlu0 %v1722, %s1771
        %v1773 = vpop.permute.xlu0 %1772
        %s1775 = sor.u32 256, 104
        %1776 = vbcast.lane.b32.xlu0 %v1722, %s1775
        %v1777 = vpop.permute.xlu0 %1776
        %s1779 = sor.u32 256, 112
        %1780 = vbcast.lane.b32.xlu0 %v1722, %s1779
        %v1781 = vpop.permute.xlu0 %1780
        %s1783 = sor.u32 256, 120
        %1784 = vbcast.lane.b32.xlu0 %v1722, %s1783
        %v1785 = vpop.permute.xlu0 %1784
        %v1786 = vlaneseq
        %v1787 = vshrl.u32 %v1786, 7
        %v1788 = vsub.s32 2, %v1787
        %v1789 = vrot.slane %v578, %v1788
        %1791 = vbcast.lane.b32.xlu0 %v1789, 256
        %v1792 = vpop.permute.xlu0 %1791
        %s1794 = sor.u32 256, 8
        %1795 = vbcast.lane.b32.xlu0 %v1789, %s1794
        %v1796 = vpop.permute.xlu0 %1795
        %s1798 = sor.u32 256, 16
        %1799 = vbcast.lane.b32.xlu0 %v1789, %s1798
        %v1800 = vpop.permute.xlu0 %1799
        %s1802 = sor.u32 256, 24
        %1803 = vbcast.lane.b32.xlu0 %v1789, %s1802
        %v1804 = vpop.permute.xlu0 %1803
        %s1806 = sor.u32 256, 32
        %1807 = vbcast.lane.b32.xlu0 %v1789, %s1806
        %v1808 = vpop.permute.xlu0 %1807
        %s1810 = sor.u32 256, 40
        %1811 = vbcast.lane.b32.xlu0 %v1789, %s1810
        %v1812 = vpop.permute.xlu0 %1811
        %s1814 = sor.u32 256, 48
        %1815 = vbcast.lane.b32.xlu0 %v1789, %s1814
        %v1816 = vpop.permute.xlu0 %1815
        %s1818 = sor.u32 256, 56
        %1819 = vbcast.lane.b32.xlu0 %v1789, %s1818
        %v1820 = vpop.permute.xlu0 %1819
        %s1822 = sor.u32 256, 64
        %1823 = vbcast.lane.b32.xlu0 %v1789, %s1822
        %v1824 = vpop.permute.xlu0 %1823
        %s1826 = sor.u32 256, 72
        %1827 = vbcast.lane.b32.xlu0 %v1789, %s1826
        %v1828 = vpop.permute.xlu0 %1827
        %s1830 = sor.u32 256, 80
        %1831 = vbcast.lane.b32.xlu0 %v1789, %s1830
        %v1832 = vpop.permute.xlu0 %1831
        %s1834 = sor.u32 256, 88
        %1835 = vbcast.lane.b32.xlu0 %v1789, %s1834
        %v1836 = vpop.permute.xlu0 %1835
        %s1838 = sor.u32 256, 96
        %1839 = vbcast.lane.b32.xlu0 %v1789, %s1838
        %v1840 = vpop.permute.xlu0 %1839
        %s1842 = sor.u32 256, 104
        %1843 = vbcast.lane.b32.xlu0 %v1789, %s1842
        %v1844 = vpop.permute.xlu0 %1843
        %s1846 = sor.u32 256, 112
        %1847 = vbcast.lane.b32.xlu0 %v1789, %s1846
        %v1848 = vpop.permute.xlu0 %1847
        %s1850 = sor.u32 256, 120
        %1851 = vbcast.lane.b32.xlu0 %v1789, %s1850
        %v1852 = vpop.permute.xlu0 %1851
        %v1853 = vlaneseq
        %v1854 = vshrl.u32 %v1853, 7
        %v1855 = vsub.s32 3, %v1854
        %v1856 = vrot.slane %v578, %v1855
        %1858 = vbcast.lane.b32.xlu0 %v1856, 256
        %v1859 = vpop.permute.xlu0 %1858
        %s1861 = sor.u32 256, 8
        %1862 = vbcast.lane.b32.xlu0 %v1856, %s1861
        %v1863 = vpop.permute.xlu0 %1862
        %s1865 = sor.u32 256, 16
        %1866 = vbcast.lane.b32.xlu0 %v1856, %s1865
        %v1867 = vpop.permute.xlu0 %1866
        %s1869 = sor.u32 256, 24
        %1870 = vbcast.lane.b32.xlu0 %v1856, %s1869
        %v1871 = vpop.permute.xlu0 %1870
        %s1873 = sor.u32 256, 32
        %1874 = vbcast.lane.b32.xlu0 %v1856, %s1873
        %v1875 = vpop.permute.xlu0 %1874
        %s1877 = sor.u32 256, 40
        %1878 = vbcast.lane.b32.xlu0 %v1856, %s1877
        %v1879 = vpop.permute.xlu0 %1878
        %s1881 = sor.u32 256, 48
        %1882 = vbcast.lane.b32.xlu0 %v1856, %s1881
        %v1883 = vpop.permute.xlu0 %1882
        %s1885 = sor.u32 256, 56
        %1886 = vbcast.lane.b32.xlu0 %v1856, %s1885
        %v1887 = vpop.permute.xlu0 %1886
        %s1889 = sor.u32 256, 64
        %1890 = vbcast.lane.b32.xlu0 %v1856, %s1889
        %v1891 = vpop.permute.xlu0 %1890
        %s1893 = sor.u32 256, 72
        %1894 = vbcast.lane.b32.xlu0 %v1856, %s1893
        %v1895 = vpop.permute.xlu0 %1894
        %s1897 = sor.u32 256, 80
        %1898 = vbcast.lane.b32.xlu0 %v1856, %s1897
        %v1899 = vpop.permute.xlu0 %1898
        %s1901 = sor.u32 256, 88
        %1902 = vbcast.lane.b32.xlu0 %v1856, %s1901
        %v1903 = vpop.permute.xlu0 %1902
        %s1905 = sor.u32 256, 96
        %1906 = vbcast.lane.b32.xlu0 %v1856, %s1905
        %v1907 = vpop.permute.xlu0 %1906
        %s1909 = sor.u32 256, 104
        %1910 = vbcast.lane.b32.xlu0 %v1856, %s1909
        %v1911 = vpop.permute.xlu0 %1910
        %s1913 = sor.u32 256, 112
        %1914 = vbcast.lane.b32.xlu0 %v1856, %s1913
        %v1915 = vpop.permute.xlu0 %1914
        %s1917 = sor.u32 256, 120
        %1918 = vbcast.lane.b32.xlu0 %v1856, %s1917
        %v1919 = vpop.permute.xlu0 %1918
        %v1920 = vlaneseq
        %v1921 = vshrl.u32 %v1920, 7
        %v1922 = vsub.s32 4, %v1921
        %v1923 = vrot.slane %v578, %v1922
        %1925 = vbcast.lane.b32.xlu0 %v1923, 256
        %v1926 = vpop.permute.xlu0 %1925
        %s1928 = sor.u32 256, 8
        %1929 = vbcast.lane.b32.xlu0 %v1923, %s1928
        %v1930 = vpop.permute.xlu0 %1929
        %s1932 = sor.u32 256, 16
        %1933 = vbcast.lane.b32.xlu0 %v1923, %s1932
        %v1934 = vpop.permute.xlu0 %1933
        %s1936 = sor.u32 256, 24
        %1937 = vbcast.lane.b32.xlu0 %v1923, %s1936
        %v1938 = vpop.permute.xlu0 %1937
        %s1940 = sor.u32 256, 32
        %1941 = vbcast.lane.b32.xlu0 %v1923, %s1940
        %v1942 = vpop.permute.xlu0 %1941
        %s1944 = sor.u32 256, 40
        %1945 = vbcast.lane.b32.xlu0 %v1923, %s1944
        %v1946 = vpop.permute.xlu0 %1945
        %s1948 = sor.u32 256, 48
        %1949 = vbcast.lane.b32.xlu0 %v1923, %s1948
        %v1950 = vpop.permute.xlu0 %1949
        %s1952 = sor.u32 256, 56
        %1953 = vbcast.lane.b32.xlu0 %v1923, %s1952
        %v1954 = vpop.permute.xlu0 %1953
        %s1956 = sor.u32 256, 64
        %1957 = vbcast.lane.b32.xlu0 %v1923, %s1956
        %v1958 = vpop.permute.xlu0 %1957
        %s1960 = sor.u32 256, 72
        %1961 = vbcast.lane.b32.xlu0 %v1923, %s1960
        %v1962 = vpop.permute.xlu0 %1961
        %s1964 = sor.u32 256, 80
        %1965 = vbcast.lane.b32.xlu0 %v1923, %s1964
        %v1966 = vpop.permute.xlu0 %1965
        %s1968 = sor.u32 256, 88
        %1969 = vbcast.lane.b32.xlu0 %v1923, %s1968
        %v1970 = vpop.permute.xlu0 %1969
        %s1972 = sor.u32 256, 96
        %1973 = vbcast.lane.b32.xlu0 %v1923, %s1972
        %v1974 = vpop.permute.xlu0 %1973
        %s1976 = sor.u32 256, 104
        %1977 = vbcast.lane.b32.xlu0 %v1923, %s1976
        %v1978 = vpop.permute.xlu0 %1977
        %s1980 = sor.u32 256, 112
        %1981 = vbcast.lane.b32.xlu0 %v1923, %s1980
        %v1982 = vpop.permute.xlu0 %1981
        %s1984 = sor.u32 256, 120
        %1985 = vbcast.lane.b32.xlu0 %v1923, %s1984
        %v1986 = vpop.permute.xlu0 %1985
        %v1987 = vlaneseq
        %v1988 = vshrl.u32 %v1987, 7
        %v1989 = vsub.s32 5, %v1988
        %v1990 = vrot.slane %v578, %v1989
        %1992 = vbcast.lane.b32.xlu0 %v1990, 256
        %v1993 = vpop.permute.xlu0 %1992
        %s1995 = sor.u32 256, 8
        %1996 = vbcast.lane.b32.xlu0 %v1990, %s1995
        %v1997 = vpop.permute.xlu0 %1996
        %s1999 = sor.u32 256, 16
        %2000 = vbcast.lane.b32.xlu0 %v1990, %s1999
        %v2001 = vpop.permute.xlu0 %2000
        %s2003 = sor.u32 256, 24
        %2004 = vbcast.lane.b32.xlu0 %v1990, %s2003
        %v2005 = vpop.permute.xlu0 %2004
        %s2007 = sor.u32 256, 32
        %2008 = vbcast.lane.b32.xlu0 %v1990, %s2007
        %v2009 = vpop.permute.xlu0 %2008
        %s2011 = sor.u32 256, 40
        %2012 = vbcast.lane.b32.xlu0 %v1990, %s2011
        %v2013 = vpop.permute.xlu0 %2012
        %s2015 = sor.u32 256, 48
        %2016 = vbcast.lane.b32.xlu0 %v1990, %s2015
        %v2017 = vpop.permute.xlu0 %2016
        %s2019 = sor.u32 256, 56
        %2020 = vbcast.lane.b32.xlu0 %v1990, %s2019
        %v2021 = vpop.permute.xlu0 %2020
        %s2023 = sor.u32 256, 64
        %2024 = vbcast.lane.b32.xlu0 %v1990, %s2023
        %v2025 = vpop.permute.xlu0 %2024
        %s2027 = sor.u32 256, 72
        %2028 = vbcast.lane.b32.xlu0 %v1990, %s2027
        %v2029 = vpop.permute.xlu0 %2028
        %s2031 = sor.u32 256, 80
        %2032 = vbcast.lane.b32.xlu0 %v1990, %s2031
        %v2033 = vpop.permute.xlu0 %2032
        %s2035 = sor.u32 256, 88
        %2036 = vbcast.lane.b32.xlu0 %v1990, %s2035
        %v2037 = vpop.permute.xlu0 %2036
        %s2039 = sor.u32 256, 96
        %2040 = vbcast.lane.b32.xlu0 %v1990, %s2039
        %v2041 = vpop.permute.xlu0 %2040
        %s2043 = sor.u32 256, 104
        %2044 = vbcast.lane.b32.xlu0 %v1990, %s2043
        %v2045 = vpop.permute.xlu0 %2044
        %s2047 = sor.u32 256, 112
        %2048 = vbcast.lane.b32.xlu0 %v1990, %s2047
        %v2049 = vpop.permute.xlu0 %2048
        %s2051 = sor.u32 256, 120
        %2052 = vbcast.lane.b32.xlu0 %v1990, %s2051
        %v2053 = vpop.permute.xlu0 %2052
        %v2054 = vlaneseq
        %v2055 = vshrl.u32 %v2054, 7
        %v2056 = vsub.s32 6, %v2055
        %v2057 = vrot.slane %v578, %v2056
        %2059 = vbcast.lane.b32.xlu0 %v2057, 256
        %v2060 = vpop.permute.xlu0 %2059
        %s2062 = sor.u32 256, 8
        %2063 = vbcast.lane.b32.xlu0 %v2057, %s2062
        %v2064 = vpop.permute.xlu0 %2063
        %s2066 = sor.u32 256, 16
        %2067 = vbcast.lane.b32.xlu0 %v2057, %s2066
        %v2068 = vpop.permute.xlu0 %2067
        %s2070 = sor.u32 256, 24
        %2071 = vbcast.lane.b32.xlu0 %v2057, %s2070
        %v2072 = vpop.permute.xlu0 %2071
        %s2074 = sor.u32 256, 32
        %2075 = vbcast.lane.b32.xlu0 %v2057, %s2074
        %v2076 = vpop.permute.xlu0 %2075
        %s2078 = sor.u32 256, 40
        %2079 = vbcast.lane.b32.xlu0 %v2057, %s2078
        %v2080 = vpop.permute.xlu0 %2079
        %s2082 = sor.u32 256, 48
        %2083 = vbcast.lane.b32.xlu0 %v2057, %s2082
        %v2084 = vpop.permute.xlu0 %2083
        %s2086 = sor.u32 256, 56
        %2087 = vbcast.lane.b32.xlu0 %v2057, %s2086
        %v2088 = vpop.permute.xlu0 %2087
        %s2090 = sor.u32 256, 64
        %2091 = vbcast.lane.b32.xlu0 %v2057, %s2090
        %v2092 = vpop.permute.xlu0 %2091
        %s2094 = sor.u32 256, 72
        %2095 = vbcast.lane.b32.xlu0 %v2057, %s2094
        %v2096 = vpop.permute.xlu0 %2095
        %s2098 = sor.u32 256, 80
        %2099 = vbcast.lane.b32.xlu0 %v2057, %s2098
        %v2100 = vpop.permute.xlu0 %2099
        %s2102 = sor.u32 256, 88
        %2103 = vbcast.lane.b32.xlu0 %v2057, %s2102
        %v2104 = vpop.permute.xlu0 %2103
        %s2106 = sor.u32 256, 96
        %2107 = vbcast.lane.b32.xlu0 %v2057, %s2106
        %v2108 = vpop.permute.xlu0 %2107
        %s2110 = sor.u32 256, 104
        %2111 = vbcast.lane.b32.xlu0 %v2057, %s2110
        %v2112 = vpop.permute.xlu0 %2111
        %s2114 = sor.u32 256, 112
        %2115 = vbcast.lane.b32.xlu0 %v2057, %s2114
        %v2116 = vpop.permute.xlu0 %2115
        %s2118 = sor.u32 256, 120
        %2119 = vbcast.lane.b32.xlu0 %v2057, %s2118
        %v2120 = vpop.permute.xlu0 %2119
        %v2121 = vlaneseq
        %v2122 = vshrl.u32 %v2121, 7
        %v2123 = vsub.s32 7, %v2122
        %v2124 = vrot.slane %v578, %v2123
        %2126 = vbcast.lane.b32.xlu0 %v2124, 256
        %v2127 = vpop.permute.xlu0 %2126
        %s2129 = sor.u32 256, 8
        %2130 = vbcast.lane.b32.xlu0 %v2124, %s2129
        %v2131 = vpop.permute.xlu0 %2130
        %s2133 = sor.u32 256, 16
        %2134 = vbcast.lane.b32.xlu0 %v2124, %s2133
        %v2135 = vpop.permute.xlu0 %2134
        %s2137 = sor.u32 256, 24
        %2138 = vbcast.lane.b32.xlu0 %v2124, %s2137
        %v2139 = vpop.permute.xlu0 %2138
        %s2141 = sor.u32 256, 32
        %2142 = vbcast.lane.b32.xlu0 %v2124, %s2141
        %v2143 = vpop.permute.xlu0 %2142
        %s2145 = sor.u32 256, 40
        %2146 = vbcast.lane.b32.xlu0 %v2124, %s2145
        %v2147 = vpop.permute.xlu0 %2146
        %s2149 = sor.u32 256, 48
        %2150 = vbcast.lane.b32.xlu0 %v2124, %s2149
        %v2151 = vpop.permute.xlu0 %2150
        %s2153 = sor.u32 256, 56
        %2154 = vbcast.lane.b32.xlu0 %v2124, %s2153
        %v2155 = vpop.permute.xlu0 %2154
        %s2157 = sor.u32 256, 64
        %2158 = vbcast.lane.b32.xlu0 %v2124, %s2157
        %v2159 = vpop.permute.xlu0 %2158
        %s2161 = sor.u32 256, 72
        %2162 = vbcast.lane.b32.xlu0 %v2124, %s2161
        %v2163 = vpop.permute.xlu0 %2162
        %s2165 = sor.u32 256, 80
        %2166 = vbcast.lane.b32.xlu0 %v2124, %s2165
        %v2167 = vpop.permute.xlu0 %2166
        %s2169 = sor.u32 256, 88
        %2170 = vbcast.lane.b32.xlu0 %v2124, %s2169
        %v2171 = vpop.permute.xlu0 %2170
        %s2173 = sor.u32 256, 96
        %2174 = vbcast.lane.b32.xlu0 %v2124, %s2173
        %v2175 = vpop.permute.xlu0 %2174
        %s2177 = sor.u32 256, 104
        %2178 = vbcast.lane.b32.xlu0 %v2124, %s2177
        %v2179 = vpop.permute.xlu0 %2178
        %s2181 = sor.u32 256, 112
        %2182 = vbcast.lane.b32.xlu0 %v2124, %s2181
        %v2183 = vpop.permute.xlu0 %2182
        %s2185 = sor.u32 256, 120
        %2186 = vbcast.lane.b32.xlu0 %v2124, %s2185
        %v2187 = vpop.permute.xlu0 %2186
        %v2188 = vlaneseq
        %v2189 = vshrl.u32 %v2188, 7
        %v2190 = vsub.s32 0, %v2189
        %v2191 = vrot.slane %v579, %v2190
        %2193 = vbcast.lane.b32.xlu0 %v2191, 256
        %v2194 = vpop.permute.xlu0 %2193
        %s2196 = sor.u32 256, 8
        %2197 = vbcast.lane.b32.xlu0 %v2191, %s2196
        %v2198 = vpop.permute.xlu0 %2197
        %s2200 = sor.u32 256, 16
        %2201 = vbcast.lane.b32.xlu0 %v2191, %s2200
        %v2202 = vpop.permute.xlu0 %2201
        %s2204 = sor.u32 256, 24
        %2205 = vbcast.lane.b32.xlu0 %v2191, %s2204
        %v2206 = vpop.permute.xlu0 %2205
        %s2208 = sor.u32 256, 32
        %2209 = vbcast.lane.b32.xlu0 %v2191, %s2208
        %v2210 = vpop.permute.xlu0 %2209
        %s2212 = sor.u32 256, 40
        %2213 = vbcast.lane.b32.xlu0 %v2191, %s2212
        %v2214 = vpop.permute.xlu0 %2213
        %s2216 = sor.u32 256, 48
        %2217 = vbcast.lane.b32.xlu0 %v2191, %s2216
        %v2218 = vpop.permute.xlu0 %2217
        %s2220 = sor.u32 256, 56
        %2221 = vbcast.lane.b32.xlu0 %v2191, %s2220
        %v2222 = vpop.permute.xlu0 %2221
        %s2224 = sor.u32 256, 64
        %2225 = vbcast.lane.b32.xlu0 %v2191, %s2224
        %v2226 = vpop.permute.xlu0 %2225
        %s2228 = sor.u32 256, 72
        %2229 = vbcast.lane.b32.xlu0 %v2191, %s2228
        %v2230 = vpop.permute.xlu0 %2229
        %s2232 = sor.u32 256, 80
        %2233 = vbcast.lane.b32.xlu0 %v2191, %s2232
        %v2234 = vpop.permute.xlu0 %2233
        %s2236 = sor.u32 256, 88
        %2237 = vbcast.lane.b32.xlu0 %v2191, %s2236
        %v2238 = vpop.permute.xlu0 %2237
        %s2240 = sor.u32 256, 96
        %2241 = vbcast.lane.b32.xlu0 %v2191, %s2240
        %v2242 = vpop.permute.xlu0 %2241
        %s2244 = sor.u32 256, 104
        %2245 = vbcast.lane.b32.xlu0 %v2191, %s2244
        %v2246 = vpop.permute.xlu0 %2245
        %s2248 = sor.u32 256, 112
        %2249 = vbcast.lane.b32.xlu0 %v2191, %s2248
        %v2250 = vpop.permute.xlu0 %2249
        %s2252 = sor.u32 256, 120
        %2253 = vbcast.lane.b32.xlu0 %v2191, %s2252
        %v2254 = vpop.permute.xlu0 %2253
        %v2255 = vlaneseq
        %v2256 = vshrl.u32 %v2255, 7
        %v2257 = vsub.s32 1, %v2256
        %v2258 = vrot.slane %v579, %v2257
        %2260 = vbcast.lane.b32.xlu0 %v2258, 256
        %v2261 = vpop.permute.xlu0 %2260
        %s2263 = sor.u32 256, 8
        %2264 = vbcast.lane.b32.xlu0 %v2258, %s2263
        %v2265 = vpop.permute.xlu0 %2264
        %s2267 = sor.u32 256, 16
        %2268 = vbcast.lane.b32.xlu0 %v2258, %s2267
        %v2269 = vpop.permute.xlu0 %2268
        %s2271 = sor.u32 256, 24
        %2272 = vbcast.lane.b32.xlu0 %v2258, %s2271
        %v2273 = vpop.permute.xlu0 %2272
        %s2275 = sor.u32 256, 32
        %2276 = vbcast.lane.b32.xlu0 %v2258, %s2275
        %v2277 = vpop.permute.xlu0 %2276
        %s2279 = sor.u32 256, 40
        %2280 = vbcast.lane.b32.xlu0 %v2258, %s2279
        %v2281 = vpop.permute.xlu0 %2280
        %s2283 = sor.u32 256, 48
        %2284 = vbcast.lane.b32.xlu0 %v2258, %s2283
        %v2285 = vpop.permute.xlu0 %2284
        %s2287 = sor.u32 256, 56
        %2288 = vbcast.lane.b32.xlu0 %v2258, %s2287
        %v2289 = vpop.permute.xlu0 %2288
        %s2291 = sor.u32 256, 64
        %2292 = vbcast.lane.b32.xlu0 %v2258, %s2291
        %v2293 = vpop.permute.xlu0 %2292
        %s2295 = sor.u32 256, 72
        %2296 = vbcast.lane.b32.xlu0 %v2258, %s2295
        %v2297 = vpop.permute.xlu0 %2296
        %s2299 = sor.u32 256, 80
        %2300 = vbcast.lane.b32.xlu0 %v2258, %s2299
        %v2301 = vpop.permute.xlu0 %2300
        %s2303 = sor.u32 256, 88
        %2304 = vbcast.lane.b32.xlu0 %v2258, %s2303
        %v2305 = vpop.permute.xlu0 %2304
        %s2307 = sor.u32 256, 96
        %2308 = vbcast.lane.b32.xlu0 %v2258, %s2307
        %v2309 = vpop.permute.xlu0 %2308
        %s2311 = sor.u32 256, 104
        %2312 = vbcast.lane.b32.xlu0 %v2258, %s2311
        %v2313 = vpop.permute.xlu0 %2312
        %s2315 = sor.u32 256, 112
        %2316 = vbcast.lane.b32.xlu0 %v2258, %s2315
        %v2317 = vpop.permute.xlu0 %2316
        %s2319 = sor.u32 256, 120
        %2320 = vbcast.lane.b32.xlu0 %v2258, %s2319
        %v2321 = vpop.permute.xlu0 %2320
        %v2322 = vlaneseq
        %v2323 = vshrl.u32 %v2322, 7
        %v2324 = vsub.s32 2, %v2323
        %v2325 = vrot.slane %v579, %v2324
        %2327 = vbcast.lane.b32.xlu0 %v2325, 256
        %v2328 = vpop.permute.xlu0 %2327
        %s2330 = sor.u32 256, 8
        %2331 = vbcast.lane.b32.xlu0 %v2325, %s2330
        %v2332 = vpop.permute.xlu0 %2331
        %s2334 = sor.u32 256, 16
        %2335 = vbcast.lane.b32.xlu0 %v2325, %s2334
        %v2336 = vpop.permute.xlu0 %2335
        %s2338 = sor.u32 256, 24
        %2339 = vbcast.lane.b32.xlu0 %v2325, %s2338
        %v2340 = vpop.permute.xlu0 %2339
        %s2342 = sor.u32 256, 32
        %2343 = vbcast.lane.b32.xlu0 %v2325, %s2342
        %v2344 = vpop.permute.xlu0 %2343
        %s2346 = sor.u32 256, 40
        %2347 = vbcast.lane.b32.xlu0 %v2325, %s2346
        %v2348 = vpop.permute.xlu0 %2347
        %s2350 = sor.u32 256, 48
        %2351 = vbcast.lane.b32.xlu0 %v2325, %s2350
        %v2352 = vpop.permute.xlu0 %2351
        %s2354 = sor.u32 256, 56
        %2355 = vbcast.lane.b32.xlu0 %v2325, %s2354
        %v2356 = vpop.permute.xlu0 %2355
        %s2358 = sor.u32 256, 64
        %2359 = vbcast.lane.b32.xlu0 %v2325, %s2358
        %v2360 = vpop.permute.xlu0 %2359
        %s2362 = sor.u32 256, 72
        %2363 = vbcast.lane.b32.xlu0 %v2325, %s2362
        %v2364 = vpop.permute.xlu0 %2363
        %s2366 = sor.u32 256, 80
        %2367 = vbcast.lane.b32.xlu0 %v2325, %s2366
        %v2368 = vpop.permute.xlu0 %2367
        %s2370 = sor.u32 256, 88
        %2371 = vbcast.lane.b32.xlu0 %v2325, %s2370
        %v2372 = vpop.permute.xlu0 %2371
        %s2374 = sor.u32 256, 96
        %2375 = vbcast.lane.b32.xlu0 %v2325, %s2374
        %v2376 = vpop.permute.xlu0 %2375
        %s2378 = sor.u32 256, 104
        %2379 = vbcast.lane.b32.xlu0 %v2325, %s2378
        %v2380 = vpop.permute.xlu0 %2379
        %s2382 = sor.u32 256, 112
        %2383 = vbcast.lane.b32.xlu0 %v2325, %s2382
        %v2384 = vpop.permute.xlu0 %2383
        %s2386 = sor.u32 256, 120
        %2387 = vbcast.lane.b32.xlu0 %v2325, %s2386
        %v2388 = vpop.permute.xlu0 %2387
        %v2389 = vlaneseq
        %v2390 = vshrl.u32 %v2389, 7
        %v2391 = vsub.s32 3, %v2390
        %v2392 = vrot.slane %v579, %v2391
        %2394 = vbcast.lane.b32.xlu0 %v2392, 256
        %v2395 = vpop.permute.xlu0 %2394
        %s2397 = sor.u32 256, 8
        %2398 = vbcast.lane.b32.xlu0 %v2392, %s2397
        %v2399 = vpop.permute.xlu0 %2398
        %s2401 = sor.u32 256, 16
        %2402 = vbcast.lane.b32.xlu0 %v2392, %s2401
        %v2403 = vpop.permute.xlu0 %2402
        %s2405 = sor.u32 256, 24
        %2406 = vbcast.lane.b32.xlu0 %v2392, %s2405
        %v2407 = vpop.permute.xlu0 %2406
        %s2409 = sor.u32 256, 32
        %2410 = vbcast.lane.b32.xlu0 %v2392, %s2409
        %v2411 = vpop.permute.xlu0 %2410
        %s2413 = sor.u32 256, 40
        %2414 = vbcast.lane.b32.xlu0 %v2392, %s2413
        %v2415 = vpop.permute.xlu0 %2414
        %s2417 = sor.u32 256, 48
        %2418 = vbcast.lane.b32.xlu0 %v2392, %s2417
        %v2419 = vpop.permute.xlu0 %2418
        %s2421 = sor.u32 256, 56
        %2422 = vbcast.lane.b32.xlu0 %v2392, %s2421
        %v2423 = vpop.permute.xlu0 %2422
        %s2425 = sor.u32 256, 64
        %2426 = vbcast.lane.b32.xlu0 %v2392, %s2425
        %v2427 = vpop.permute.xlu0 %2426
        %s2429 = sor.u32 256, 72
        %2430 = vbcast.lane.b32.xlu0 %v2392, %s2429
        %v2431 = vpop.permute.xlu0 %2430
        %s2433 = sor.u32 256, 80
        %2434 = vbcast.lane.b32.xlu0 %v2392, %s2433
        %v2435 = vpop.permute.xlu0 %2434
        %s2437 = sor.u32 256, 88
        %2438 = vbcast.lane.b32.xlu0 %v2392, %s2437
        %v2439 = vpop.permute.xlu0 %2438
        %s2441 = sor.u32 256, 96
        %2442 = vbcast.lane.b32.xlu0 %v2392, %s2441
        %v2443 = vpop.permute.xlu0 %2442
        %s2445 = sor.u32 256, 104
        %2446 = vbcast.lane.b32.xlu0 %v2392, %s2445
        %v2447 = vpop.permute.xlu0 %2446
        %s2449 = sor.u32 256, 112
        %2450 = vbcast.lane.b32.xlu0 %v2392, %s2449
        %v2451 = vpop.permute.xlu0 %2450
        %s2453 = sor.u32 256, 120
        %2454 = vbcast.lane.b32.xlu0 %v2392, %s2453
        %v2455 = vpop.permute.xlu0 %2454
        %v2456 = vlaneseq
        %v2457 = vshrl.u32 %v2456, 7
        %v2458 = vsub.s32 4, %v2457
        %v2459 = vrot.slane %v579, %v2458
        %2461 = vbcast.lane.b32.xlu0 %v2459, 256
        %v2462 = vpop.permute.xlu0 %2461
        %s2464 = sor.u32 256, 8
        %2465 = vbcast.lane.b32.xlu0 %v2459, %s2464
        %v2466 = vpop.permute.xlu0 %2465
        %s2468 = sor.u32 256, 16
        %2469 = vbcast.lane.b32.xlu0 %v2459, %s2468
        %v2470 = vpop.permute.xlu0 %2469
        %s2472 = sor.u32 256, 24
        %2473 = vbcast.lane.b32.xlu0 %v2459, %s2472
        %v2474 = vpop.permute.xlu0 %2473
        %s2476 = sor.u32 256, 32
        %2477 = vbcast.lane.b32.xlu0 %v2459, %s2476
        %v2478 = vpop.permute.xlu0 %2477
        %s2480 = sor.u32 256, 40
        %2481 = vbcast.lane.b32.xlu0 %v2459, %s2480
        %v2482 = vpop.permute.xlu0 %2481
        %s2484 = sor.u32 256, 48
        %2485 = vbcast.lane.b32.xlu0 %v2459, %s2484
        %v2486 = vpop.permute.xlu0 %2485
        %s2488 = sor.u32 256, 56
        %2489 = vbcast.lane.b32.xlu0 %v2459, %s2488
        %v2490 = vpop.permute.xlu0 %2489
        %s2492 = sor.u32 256, 64
        %2493 = vbcast.lane.b32.xlu0 %v2459, %s2492
        %v2494 = vpop.permute.xlu0 %2493
        %s2496 = sor.u32 256, 72
        %2497 = vbcast.lane.b32.xlu0 %v2459, %s2496
        %v2498 = vpop.permute.xlu0 %2497
        %s2500 = sor.u32 256, 80
        %2501 = vbcast.lane.b32.xlu0 %v2459, %s2500
        %v2502 = vpop.permute.xlu0 %2501
        %s2504 = sor.u32 256, 88
        %2505 = vbcast.lane.b32.xlu0 %v2459, %s2504
        %v2506 = vpop.permute.xlu0 %2505
        %s2508 = sor.u32 256, 96
        %2509 = vbcast.lane.b32.xlu0 %v2459, %s2508
        %v2510 = vpop.permute.xlu0 %2509
        %s2512 = sor.u32 256, 104
        %2513 = vbcast.lane.b32.xlu0 %v2459, %s2512
        %v2514 = vpop.permute.xlu0 %2513
        %s2516 = sor.u32 256, 112
        %2517 = vbcast.lane.b32.xlu0 %v2459, %s2516
        %v2518 = vpop.permute.xlu0 %2517
        %s2520 = sor.u32 256, 120
        %2521 = vbcast.lane.b32.xlu0 %v2459, %s2520
        %v2522 = vpop.permute.xlu0 %2521
        %v2523 = vlaneseq
        %v2524 = vshrl.u32 %v2523, 7
        %v2525 = vsub.s32 5, %v2524
        %v2526 = vrot.slane %v579, %v2525
        %2528 = vbcast.lane.b32.xlu0 %v2526, 256
        %v2529 = vpop.permute.xlu0 %2528
        %s2531 = sor.u32 256, 8
        %2532 = vbcast.lane.b32.xlu0 %v2526, %s2531
        %v2533 = vpop.permute.xlu0 %2532
        %s2535 = sor.u32 256, 16
        %2536 = vbcast.lane.b32.xlu0 %v2526, %s2535
        %v2537 = vpop.permute.xlu0 %2536
        %s2539 = sor.u32 256, 24
        %2540 = vbcast.lane.b32.xlu0 %v2526, %s2539
        %v2541 = vpop.permute.xlu0 %2540
        %s2543 = sor.u32 256, 32
        %2544 = vbcast.lane.b32.xlu0 %v2526, %s2543
        %v2545 = vpop.permute.xlu0 %2544
        %s2547 = sor.u32 256, 40
        %2548 = vbcast.lane.b32.xlu0 %v2526, %s2547
        %v2549 = vpop.permute.xlu0 %2548
        %s2551 = sor.u32 256, 48
        %2552 = vbcast.lane.b32.xlu0 %v2526, %s2551
        %v2553 = vpop.permute.xlu0 %2552
        %s2555 = sor.u32 256, 56
        %2556 = vbcast.lane.b32.xlu0 %v2526, %s2555
        %v2557 = vpop.permute.xlu0 %2556
        %s2559 = sor.u32 256, 64
        %2560 = vbcast.lane.b32.xlu0 %v2526, %s2559
        %v2561 = vpop.permute.xlu0 %2560
        %s2563 = sor.u32 256, 72
        %2564 = vbcast.lane.b32.xlu0 %v2526, %s2563
        %v2565 = vpop.permute.xlu0 %2564
        %s2567 = sor.u32 256, 80
        %2568 = vbcast.lane.b32.xlu0 %v2526, %s2567
        %v2569 = vpop.permute.xlu0 %2568
        %s2571 = sor.u32 256, 88
        %2572 = vbcast.lane.b32.xlu0 %v2526, %s2571
        %v2573 = vpop.permute.xlu0 %2572
        %s2575 = sor.u32 256, 96
        %2576 = vbcast.lane.b32.xlu0 %v2526, %s2575
        %v2577 = vpop.permute.xlu0 %2576
        %s2579 = sor.u32 256, 104
        %2580 = vbcast.lane.b32.xlu0 %v2526, %s2579
        %v2581 = vpop.permute.xlu0 %2580
        %s2583 = sor.u32 256, 112
        %2584 = vbcast.lane.b32.xlu0 %v2526, %s2583
        %v2585 = vpop.permute.xlu0 %2584
        %s2587 = sor.u32 256, 120
        %2588 = vbcast.lane.b32.xlu0 %v2526, %s2587
        %v2589 = vpop.permute.xlu0 %2588
        %v2590 = vlaneseq
        %v2591 = vshrl.u32 %v2590, 7
        %v2592 = vsub.s32 6, %v2591
        %v2593 = vrot.slane %v579, %v2592
        %2595 = vbcast.lane.b32.xlu0 %v2593, 256
        %v2596 = vpop.permute.xlu0 %2595
        %s2598 = sor.u32 256, 8
        %2599 = vbcast.lane.b32.xlu0 %v2593, %s2598
        %v2600 = vpop.permute.xlu0 %2599
        %s2602 = sor.u32 256, 16
        %2603 = vbcast.lane.b32.xlu0 %v2593, %s2602
        %v2604 = vpop.permute.xlu0 %2603
        %s2606 = sor.u32 256, 24
        %2607 = vbcast.lane.b32.xlu0 %v2593, %s2606
        %v2608 = vpop.permute.xlu0 %2607
        %s2610 = sor.u32 256, 32
        %2611 = vbcast.lane.b32.xlu0 %v2593, %s2610
        %v2612 = vpop.permute.xlu0 %2611
        %s2614 = sor.u32 256, 40
        %2615 = vbcast.lane.b32.xlu0 %v2593, %s2614
        %v2616 = vpop.permute.xlu0 %2615
        %s2618 = sor.u32 256, 48
        %2619 = vbcast.lane.b32.xlu0 %v2593, %s2618
        %v2620 = vpop.permute.xlu0 %2619
        %s2622 = sor.u32 256, 56
        %2623 = vbcast.lane.b32.xlu0 %v2593, %s2622
        %v2624 = vpop.permute.xlu0 %2623
        %s2626 = sor.u32 256, 64
        %2627 = vbcast.lane.b32.xlu0 %v2593, %s2626
        %v2628 = vpop.permute.xlu0 %2627
        %s2630 = sor.u32 256, 72
        %2631 = vbcast.lane.b32.xlu0 %v2593, %s2630
        %v2632 = vpop.permute.xlu0 %2631
        %s2634 = sor.u32 256, 80
        %2635 = vbcast.lane.b32.xlu0 %v2593, %s2634
        %v2636 = vpop.permute.xlu0 %2635
        %s2638 = sor.u32 256, 88
        %2639 = vbcast.lane.b32.xlu0 %v2593, %s2638
        %v2640 = vpop.permute.xlu0 %2639
        %s2642 = sor.u32 256, 96
        %2643 = vbcast.lane.b32.xlu0 %v2593, %s2642
        %v2644 = vpop.permute.xlu0 %2643
        %s2646 = sor.u32 256, 104
        %2647 = vbcast.lane.b32.xlu0 %v2593, %s2646
        %v2648 = vpop.permute.xlu0 %2647
        %s2650 = sor.u32 256, 112
        %2651 = vbcast.lane.b32.xlu0 %v2593, %s2650
        %v2652 = vpop.permute.xlu0 %2651
        %s2654 = sor.u32 256, 120
        %2655 = vbcast.lane.b32.xlu0 %v2593, %s2654
        %v2656 = vpop.permute.xlu0 %2655
        %v2657 = vlaneseq
        %v2658 = vshrl.u32 %v2657, 7
        %v2659 = vsub.s32 7, %v2658
        %v2660 = vrot.slane %v579, %v2659
        %2662 = vbcast.lane.b32.xlu0 %v2660, 256
        %v2663 = vpop.permute.xlu0 %2662
        %s2665 = sor.u32 256, 8
        %2666 = vbcast.lane.b32.xlu0 %v2660, %s2665
        %v2667 = vpop.permute.xlu0 %2666
        %s2669 = sor.u32 256, 16
        %2670 = vbcast.lane.b32.xlu0 %v2660, %s2669
        %v2671 = vpop.permute.xlu0 %2670
        %s2673 = sor.u32 256, 24
        %2674 = vbcast.lane.b32.xlu0 %v2660, %s2673
        %v2675 = vpop.permute.xlu0 %2674
        %s2677 = sor.u32 256, 32
        %2678 = vbcast.lane.b32.xlu0 %v2660, %s2677
        %v2679 = vpop.permute.xlu0 %2678
        %s2681 = sor.u32 256, 40
        %2682 = vbcast.lane.b32.xlu0 %v2660, %s2681
        %v2683 = vpop.permute.xlu0 %2682
        %s2685 = sor.u32 256, 48
        %2686 = vbcast.lane.b32.xlu0 %v2660, %s2685
        %v2687 = vpop.permute.xlu0 %2686
        %s2689 = sor.u32 256, 56
        %2690 = vbcast.lane.b32.xlu0 %v2660, %s2689
        %v2691 = vpop.permute.xlu0 %2690
        %s2693 = sor.u32 256, 64
        %2694 = vbcast.lane.b32.xlu0 %v2660, %s2693
        %v2695 = vpop.permute.xlu0 %2694
        %s2697 = sor.u32 256, 72
        %2698 = vbcast.lane.b32.xlu0 %v2660, %s2697
        %v2699 = vpop.permute.xlu0 %2698
        %s2701 = sor.u32 256, 80
        %2702 = vbcast.lane.b32.xlu0 %v2660, %s2701
        %v2703 = vpop.permute.xlu0 %2702
        %s2705 = sor.u32 256, 88
        %2706 = vbcast.lane.b32.xlu0 %v2660, %s2705
        %v2707 = vpop.permute.xlu0 %2706
        %s2709 = sor.u32 256, 96
        %2710 = vbcast.lane.b32.xlu0 %v2660, %s2709
        %v2711 = vpop.permute.xlu0 %2710
        %s2713 = sor.u32 256, 104
        %2714 = vbcast.lane.b32.xlu0 %v2660, %s2713
        %v2715 = vpop.permute.xlu0 %2714
        %s2717 = sor.u32 256, 112
        %2718 = vbcast.lane.b32.xlu0 %v2660, %s2717
        %v2719 = vpop.permute.xlu0 %2718
        %s2721 = sor.u32 256, 120
        %2722 = vbcast.lane.b32.xlu0 %v2660, %s2721
        %v2723 = vpop.permute.xlu0 %2722
        %v2724 = vld [vmem:[%s355] sm:$0xff]
        %v2725 = vld [vmem:[%s355 + $0x8] sm:$0xff]
        %v2726 = vld [vmem:[%s355 + $0x10] sm:$0xff]
        %v2727 = vld [vmem:[%s355 + $0x18] sm:$0xff]
        %v2732 = vcombine.high %v2724, %v2724
        %v2734 = vunpack.c.l.s4 1966171168
        %v2735 = vunpack.c.0.s8 %v2734
        %v2736 = vlaneseq
        %v2737 = vshrl.u32 %v2736, 7
        %v2738 = vsub.s32 %v2735, %v2737
        %v2739 = vrot.slane %v2724, %v2738
        %v2741 = vunpack.c.l.s4 1966171168
        %v2742 = vunpack.c.0.s8 %v2741
        %v2743 = vlaneseq
        %v2744 = vshrl.u32 %v2743, 7
        %v2745 = vsub.s32 %v2742, %v2744
        %v2746 = vrot.slane %v2732, %v2745
        %v2747 = vcombine.high %v2739, %v2739
        %v2748 = vcombine.high %v2746, %v2746
        %v2750 = vunpack.c.l.s4 1966171168
        %v2751 = vunpack.c.0.s8 %v2750
        %v2752 = vlaneseq
        %v2753 = vshrl.u32 %v2752, 7
        %v2754 = vsub.s32 %v2751, %v2753
        %v2755 = vrot.slane %v2739, %v2754
        %v2757 = vunpack.c.l.s4 1966171168
        %v2758 = vunpack.c.0.s8 %v2757
        %v2759 = vlaneseq
        %v2760 = vshrl.u32 %v2759, 7
        %v2761 = vsub.s32 %v2758, %v2760
        %v2762 = vrot.slane %v2746, %v2761
        %v2764 = vunpack.c.l.s4 1966171168
        %v2765 = vunpack.c.0.s8 %v2764
        %v2766 = vlaneseq
        %v2767 = vshrl.u32 %v2766, 7
        %v2768 = vsub.s32 %v2765, %v2767
        %v2769 = vrot.slane %v2747, %v2768
        %v2771 = vunpack.c.l.s4 1966171168
        %v2772 = vunpack.c.0.s8 %v2771
        %v2773 = vlaneseq
        %v2774 = vshrl.u32 %v2773, 7
        %v2775 = vsub.s32 %v2772, %v2774
        %v2776 = vrot.slane %v2748, %v2775
        %v2777 = vcombine.high %v2755, %v2755
        %v2778 = vcombine.high %v2762, %v2762
        %v2779 = vcombine.high %v2769, %v2769
        %v2780 = vcombine.high %v2776, %v2776
        %v2781 = vcombine.high %v2725, %v2725
        %v2783 = vunpack.c.l.s4 1966171168
        %v2784 = vunpack.c.0.s8 %v2783
        %v2785 = vlaneseq
        %v2786 = vshrl.u32 %v2785, 7
        %v2787 = vsub.s32 %v2784, %v2786
        %v2788 = vrot.slane %v2725, %v2787
        %v2790 = vunpack.c.l.s4 1966171168
        %v2791 = vunpack.c.0.s8 %v2790
        %v2792 = vlaneseq
        %v2793 = vshrl.u32 %v2792, 7
        %v2794 = vsub.s32 %v2791, %v2793
        %v2795 = vrot.slane %v2781, %v2794
        %v2796 = vcombine.high %v2788, %v2788
        %v2797 = vcombine.high %v2795, %v2795
        %v2799 = vunpack.c.l.s4 1966171168
        %v2800 = vunpack.c.0.s8 %v2799
        %v2801 = vlaneseq
        %v2802 = vshrl.u32 %v2801, 7
        %v2803 = vsub.s32 %v2800, %v2802
        %v2804 = vrot.slane %v2788, %v2803
        %v2806 = vunpack.c.l.s4 1966171168
        %v2807 = vunpack.c.0.s8 %v2806
        %v2808 = vlaneseq
        %v2809 = vshrl.u32 %v2808, 7
        %v2810 = vsub.s32 %v2807, %v2809
        %v2811 = vrot.slane %v2795, %v2810
        %v2813 = vunpack.c.l.s4 1966171168
        %v2814 = vunpack.c.0.s8 %v2813
        %v2815 = vlaneseq
        %v2816 = vshrl.u32 %v2815, 7
        %v2817 = vsub.s32 %v2814, %v2816
        %v2818 = vrot.slane %v2796, %v2817
        %v2820 = vunpack.c.l.s4 1966171168
        %v2821 = vunpack.c.0.s8 %v2820
        %v2822 = vlaneseq
        %v2823 = vshrl.u32 %v2822, 7
        %v2824 = vsub.s32 %v2821, %v2823
        %v2825 = vrot.slane %v2797, %v2824
        %v2826 = vcombine.high %v2804, %v2804
        %v2827 = vcombine.high %v2811, %v2811
        %v2828 = vcombine.high %v2818, %v2818
        %v2829 = vcombine.high %v2825, %v2825
        %v2830 = vcombine.high %v2726, %v2726
        %v2832 = vunpack.c.l.s4 1966171168
        %v2833 = vunpack.c.0.s8 %v2832
        %v2834 = vlaneseq
        %v2835 = vshrl.u32 %v2834, 7
        %v2836 = vsub.s32 %v2833, %v2835
        %v2837 = vrot.slane %v2726, %v2836
        %v2839 = vunpack.c.l.s4 1966171168
        %v2840 = vunpack.c.0.s8 %v2839
        %v2841 = vlaneseq
        %v2842 = vshrl.u32 %v2841, 7
        %v2843 = vsub.s32 %v2840, %v2842
        %v2844 = vrot.slane %v2830, %v2843
        %v2845 = vcombine.high %v2837, %v2837
        %v2846 = vcombine.high %v2844, %v2844
        %v2848 = vunpack.c.l.s4 1966171168
        %v2849 = vunpack.c.0.s8 %v2848
        %v2850 = vlaneseq
        %v2851 = vshrl.u32 %v2850, 7
        %v2852 = vsub.s32 %v2849, %v2851
        %v2853 = vrot.slane %v2837, %v2852
        %v2855 = vunpack.c.l.s4 1966171168
        %v2856 = vunpack.c.0.s8 %v2855
        %v2857 = vlaneseq
        %v2858 = vshrl.u32 %v2857, 7
        %v2859 = vsub.s32 %v2856, %v2858
        %v2860 = vrot.slane %v2844, %v2859
        %v2862 = vunpack.c.l.s4 1966171168
        %v2863 = vunpack.c.0.s8 %v2862
        %v2864 = vlaneseq
        %v2865 = vshrl.u32 %v2864, 7
        %v2866 = vsub.s32 %v2863, %v2865
        %v2867 = vrot.slane %v2845, %v2866
        %v2869 = vunpack.c.l.s4 1966171168
        %v2870 = vunpack.c.0.s8 %v2869
        %v2871 = vlaneseq
        %v2872 = vshrl.u32 %v2871, 7
        %v2873 = vsub.s32 %v2870, %v2872
        %v2874 = vrot.slane %v2846, %v2873
        %v2875 = vcombine.high %v2853, %v2853
        %v2876 = vcombine.high %v2860, %v2860
        %v2877 = vcombine.high %v2867, %v2867
        %v2878 = vcombine.high %v2874, %v2874
        %v2879 = vcombine.high %v2727, %v2727
        %v2881 = vunpack.c.l.s4 1966171168
        %v2882 = vunpack.c.0.s8 %v2881
        %v2883 = vlaneseq
        %v2884 = vshrl.u32 %v2883, 7
        %v2885 = vsub.s32 %v2882, %v2884
        %v2886 = vrot.slane %v2727, %v2885
        %v2888 = vunpack.c.l.s4 1966171168
        %v2889 = vunpack.c.0.s8 %v2888
        %v2890 = vlaneseq
        %v2891 = vshrl.u32 %v2890, 7
        %v2892 = vsub.s32 %v2889, %v2891
        %v2893 = vrot.slane %v2879, %v2892
        %v2894 = vcombine.high %v2886, %v2886
        %v2895 = vcombine.high %v2893, %v2893
        %v2897 = vunpack.c.l.s4 1966171168
        %v2898 = vunpack.c.0.s8 %v2897
        %v2899 = vlaneseq
        %v2900 = vshrl.u32 %v2899, 7
        %v2901 = vsub.s32 %v2898, %v2900
        %v2902 = vrot.slane %v2886, %v2901
        %v2904 = vunpack.c.l.s4 1966171168
        %v2905 = vunpack.c.0.s8 %v2904
        %v2906 = vlaneseq
        %v2907 = vshrl.u32 %v2906, 7
        %v2908 = vsub.s32 %v2905, %v2907
        %v2909 = vrot.slane %v2893, %v2908
        %v2911 = vunpack.c.l.s4 1966171168
        %v2912 = vunpack.c.0.s8 %v2911
        %v2913 = vlaneseq
        %v2914 = vshrl.u32 %v2913, 7
        %v2915 = vsub.s32 %v2912, %v2914
        %v2916 = vrot.slane %v2894, %v2915
        %v2918 = vunpack.c.l.s4 1966171168
        %v2919 = vunpack.c.0.s8 %v2918
        %v2920 = vlaneseq
        %v2921 = vshrl.u32 %v2920, 7
        %v2922 = vsub.s32 %v2919, %v2921
        %v2923 = vrot.slane %v2895, %v2922
        %v2924 = vcombine.high %v2902, %v2902
        %v2925 = vcombine.high %v2909, %v2909
        %v2926 = vcombine.high %v2916, %v2916
        %v2927 = vcombine.high %v2923, %v2923
        %v2928 = vlaneseq
        %v2929 = vshrl.u32 %v2928, 7
        %v2930 = vsub.s32 0, %v2929
        %v2931 = vrot.slane %v2755, %v2930
        %v2932 = vlaneseq
        %v2933 = vshrl.u32 %v2932, 7
        %v2934 = vsub.s32 0, %v2933
        %v2935 = vrot.slane %v2769, %v2934
        %v2936 = vlaneseq
        %v2937 = vshrl.u32 %v2936, 7
        %v2938 = vsub.s32 0, %v2937
        %v2939 = vrot.slane %v2777, %v2938
        %v2940 = vlaneseq
        %v2941 = vshrl.u32 %v2940, 7
        %v2942 = vsub.s32 0, %v2941
        %v2943 = vrot.slane %v2779, %v2942
        %v2944 = vlaneseq
        %v2945 = vshrl.u32 %v2944, 7
        %v2946 = vsub.s32 0, %v2945
        %v2947 = vrot.slane %v2762, %v2946
        %v2948 = vlaneseq
        %v2949 = vshrl.u32 %v2948, 7
        %v2950 = vsub.s32 0, %v2949
        %v2951 = vrot.slane %v2776, %v2950
        %v2952 = vlaneseq
        %v2953 = vshrl.u32 %v2952, 7
        %v2954 = vsub.s32 0, %v2953
        %v2955 = vrot.slane %v2778, %v2954
        %v2956 = vlaneseq
        %v2957 = vshrl.u32 %v2956, 7
        %v2958 = vsub.s32 0, %v2957
        %v2959 = vrot.slane %v2780, %v2958
        %v2960 = vlaneseq
        %v2961 = vshrl.u32 %v2960, 7
        %v2962 = vsub.s32 0, %v2961
        %v2963 = vrot.slane %v2804, %v2962
        %v2964 = vlaneseq
        %v2965 = vshrl.u32 %v2964, 7
        %v2966 = vsub.s32 0, %v2965
        %v2967 = vrot.slane %v2818, %v2966
        %v2968 = vlaneseq
        %v2969 = vshrl.u32 %v2968, 7
        %v2970 = vsub.s32 0, %v2969
        %v2971 = vrot.slane %v2826, %v2970
        %v2972 = vlaneseq
        %v2973 = vshrl.u32 %v2972, 7
        %v2974 = vsub.s32 0, %v2973
        %v2975 = vrot.slane %v2828, %v2974
        %v2976 = vlaneseq
        %v2977 = vshrl.u32 %v2976, 7
        %v2978 = vsub.s32 0, %v2977
        %v2979 = vrot.slane %v2811, %v2978
        %v2980 = vlaneseq
        %v2981 = vshrl.u32 %v2980, 7
        %v2982 = vsub.s32 0, %v2981
        %v2983 = vrot.slane %v2825, %v2982
        %v2984 = vlaneseq
        %v2985 = vshrl.u32 %v2984, 7
        %v2986 = vsub.s32 0, %v2985
        %v2987 = vrot.slane %v2827, %v2986
        %v2988 = vlaneseq
        %v2989 = vshrl.u32 %v2988, 7
        %v2990 = vsub.s32 0, %v2989
        %v2991 = vrot.slane %v2829, %v2990
        %v2992 = vlaneseq
        %v2993 = vshrl.u32 %v2992, 7
        %v2994 = vsub.s32 0, %v2993
        %v2995 = vrot.slane %v2853, %v2994
        %v2996 = vlaneseq
        %v2997 = vshrl.u32 %v2996, 7
        %v2998 = vsub.s32 0, %v2997
        %v2999 = vrot.slane %v2867, %v2998
        %v3000 = vlaneseq
        %v3001 = vshrl.u32 %v3000, 7
        %v3002 = vsub.s32 0, %v3001
        %v3003 = vrot.slane %v2875, %v3002
        %v3004 = vlaneseq
        %v3005 = vshrl.u32 %v3004, 7
        %v3006 = vsub.s32 0, %v3005
        %v3007 = vrot.slane %v2877, %v3006
        %v3008 = vlaneseq
        %v3009 = vshrl.u32 %v3008, 7
        %v3010 = vsub.s32 0, %v3009
        %v3011 = vrot.slane %v2860, %v3010
        %v3012 = vlaneseq
        %v3013 = vshrl.u32 %v3012, 7
        %v3014 = vsub.s32 0, %v3013
        %v3015 = vrot.slane %v2874, %v3014
        %v3016 = vlaneseq
        %v3017 = vshrl.u32 %v3016, 7
        %v3018 = vsub.s32 0, %v3017
        %v3019 = vrot.slane %v2876, %v3018
        %v3020 = vlaneseq
        %v3021 = vshrl.u32 %v3020, 7
        %v3022 = vsub.s32 0, %v3021
        %v3023 = vrot.slane %v2878, %v3022
        %v3024 = vlaneseq
        %v3025 = vshrl.u32 %v3024, 7
        %v3026 = vsub.s32 0, %v3025
        %v3027 = vrot.slane %v2902, %v3026
        %v3028 = vlaneseq
        %v3029 = vshrl.u32 %v3028, 7
        %v3030 = vsub.s32 0, %v3029
        %v3031 = vrot.slane %v2916, %v3030
        %v3032 = vlaneseq
        %v3033 = vshrl.u32 %v3032, 7
        %v3034 = vsub.s32 0, %v3033
        %v3035 = vrot.slane %v2924, %v3034
        %v3036 = vlaneseq
        %v3037 = vshrl.u32 %v3036, 7
        %v3038 = vsub.s32 0, %v3037
        %v3039 = vrot.slane %v2926, %v3038
        %v3040 = vlaneseq
        %v3041 = vshrl.u32 %v3040, 7
        %v3042 = vsub.s32 0, %v3041
        %v3043 = vrot.slane %v2909, %v3042
        %v3044 = vlaneseq
        %v3045 = vshrl.u32 %v3044, 7
        %v3046 = vsub.s32 0, %v3045
        %v3047 = vrot.slane %v2923, %v3046
        %v3048 = vlaneseq
        %v3049 = vshrl.u32 %v3048, 7
        %v3050 = vsub.s32 0, %v3049
        %v3051 = vrot.slane %v2925, %v3050
        %v3052 = vlaneseq
        %v3053 = vshrl.u32 %v3052, 7
        %v3054 = vsub.s32 0, %v3053
        %v3055 = vrot.slane %v2927, %v3054
        %v3088 = vadd.f32 %v586, %v2931
        %v3089 = vadd.f32 %v590, %v2931
        %v3090 = vadd.f32 %v594, %v2931
        %v3091 = vadd.f32 %v598, %v2931
        %v3092 = vadd.f32 %v602, %v2931
        %v3093 = vadd.f32 %v606, %v2931
        %v3094 = vadd.f32 %v610, %v2931
        %v3095 = vadd.f32 %v614, %v2931
        %v3096 = vadd.f32 %v618, %v2931
        %v3097 = vadd.f32 %v622, %v2931
        %v3098 = vadd.f32 %v626, %v2931
        %v3099 = vadd.f32 %v630, %v2931
        %v3100 = vadd.f32 %v634, %v2931
        %v3101 = vadd.f32 %v638, %v2931
        %v3102 = vadd.f32 %v642, %v2931
        %v3103 = vadd.f32 %v646, %v2931
        %v3104 = vadd.f32 %v653, %v2935
        %v3105 = vadd.f32 %v657, %v2935
        %v3106 = vadd.f32 %v661, %v2935
        %v3107 = vadd.f32 %v665, %v2935
        %v3108 = vadd.f32 %v669, %v2935
        %v3109 = vadd.f32 %v673, %v2935
        %v3110 = vadd.f32 %v677, %v2935
        %v3111 = vadd.f32 %v681, %v2935
        %v3112 = vadd.f32 %v685, %v2935
        %v3113 = vadd.f32 %v689, %v2935
        %v3114 = vadd.f32 %v693, %v2935
        %v3115 = vadd.f32 %v697, %v2935
        %v3116 = vadd.f32 %v701, %v2935
        %v3117 = vadd.f32 %v705, %v2935
        %v3118 = vadd.f32 %v709, %v2935
        %v3119 = vadd.f32 %v713, %v2935
        %v3120 = vadd.f32 %v720, %v2939
        %v3121 = vadd.f32 %v724, %v2939
        %v3122 = vadd.f32 %v728, %v2939
        %v3123 = vadd.f32 %v732, %v2939
        %v3124 = vadd.f32 %v736, %v2939
        %v3125 = vadd.f32 %v740, %v2939
        %v3126 = vadd.f32 %v744, %v2939
        %v3127 = vadd.f32 %v748, %v2939
        %v3128 = vadd.f32 %v752, %v2939
        %v3129 = vadd.f32 %v756, %v2939
        %v3130 = vadd.f32 %v760, %v2939
        %v3131 = vadd.f32 %v764, %v2939
        %v3132 = vadd.f32 %v768, %v2939
        %v3133 = vadd.f32 %v772, %v2939
        %v3134 = vadd.f32 %v776, %v2939
        %v3135 = vadd.f32 %v780, %v2939
        %v3136 = vadd.f32 %v787, %v2943
        %v3137 = vadd.f32 %v791, %v2943
        %v3138 = vadd.f32 %v795, %v2943
        %v3139 = vadd.f32 %v799, %v2943
        %v3140 = vadd.f32 %v803, %v2943
        %v3141 = vadd.f32 %v807, %v2943
        %v3142 = vadd.f32 %v811, %v2943
        %v3143 = vadd.f32 %v815, %v2943
        %v3144 = vadd.f32 %v819, %v2943
        %v3145 = vadd.f32 %v823, %v2943
        %v3146 = vadd.f32 %v827, %v2943
        %v3147 = vadd.f32 %v831, %v2943
        %v3148 = vadd.f32 %v835, %v2943
        %v3149 = vadd.f32 %v839, %v2943
        %v3150 = vadd.f32 %v843, %v2943
        %v3151 = vadd.f32 %v847, %v2943
        %v3152 = vadd.f32 %v854, %v2947
        %v3153 = vadd.f32 %v858, %v2947
        %v3154 = vadd.f32 %v862, %v2947
        %v3155 = vadd.f32 %v866, %v2947
        %v3156 = vadd.f32 %v870, %v2947
        %v3157 = vadd.f32 %v874, %v2947
        %v3158 = vadd.f32 %v878, %v2947
        %v3159 = vadd.f32 %v882, %v2947
        %v3160 = vadd.f32 %v886, %v2947
        %v3161 = vadd.f32 %v890, %v2947
        %v3162 = vadd.f32 %v894, %v2947
        %v3163 = vadd.f32 %v898, %v2947
        %v3164 = vadd.f32 %v902, %v2947
        %v3165 = vadd.f32 %v906, %v2947
        %v3166 = vadd.f32 %v910, %v2947
        %v3167 = vadd.f32 %v914, %v2947
        %v3168 = vadd.f32 %v921, %v2951
        %v3169 = vadd.f32 %v925, %v2951
        %v3170 = vadd.f32 %v929, %v2951
        %v3171 = vadd.f32 %v933, %v2951
        %v3172 = vadd.f32 %v937, %v2951
        %v3173 = vadd.f32 %v941, %v2951
        %v3174 = vadd.f32 %v945, %v2951
        %v3175 = vadd.f32 %v949, %v2951
        %v3176 = vadd.f32 %v953, %v2951
        %v3177 = vadd.f32 %v957, %v2951
        %v3178 = vadd.f32 %v961, %v2951
        %v3179 = vadd.f32 %v965, %v2951
        %v3180 = vadd.f32 %v969, %v2951
        %v3181 = vadd.f32 %v973, %v2951
        %v3182 = vadd.f32 %v977, %v2951
        %v3183 = vadd.f32 %v981, %v2951
        %v3184 = vadd.f32 %v988, %v2955
        %v3185 = vadd.f32 %v992, %v2955
        %v3186 = vadd.f32 %v996, %v2955
        %v3187 = vadd.f32 %v1000, %v2955
        %v3188 = vadd.f32 %v1004, %v2955
        %v3189 = vadd.f32 %v1008, %v2955
        %v3190 = vadd.f32 %v1012, %v2955
        %v3191 = vadd.f32 %v1016, %v2955
        %v3192 = vadd.f32 %v1020, %v2955
        %v3193 = vadd.f32 %v1024, %v2955
        %v3194 = vadd.f32 %v1028, %v2955
        %v3195 = vadd.f32 %v1032, %v2955
        %v3196 = vadd.f32 %v1036, %v2955
        %v3197 = vadd.f32 %v1040, %v2955
        %v3198 = vadd.f32 %v1044, %v2955
        %v3199 = vadd.f32 %v1048, %v2955
        %v3200 = vadd.f32 %v1055, %v2959
        %v3201 = vadd.f32 %v1059, %v2959
        %v3202 = vadd.f32 %v1063, %v2959
        %v3203 = vadd.f32 %v1067, %v2959
        %v3204 = vadd.f32 %v1071, %v2959
        %v3205 = vadd.f32 %v1075, %v2959
        %v3206 = vadd.f32 %v1079, %v2959
        %v3207 = vadd.f32 %v1083, %v2959
        %v3208 = vadd.f32 %v1087, %v2959
        %v3209 = vadd.f32 %v1091, %v2959
        %v3210 = vadd.f32 %v1095, %v2959
        %v3211 = vadd.f32 %v1099, %v2959
        %v3212 = vadd.f32 %v1103, %v2959
        %v3213 = vadd.f32 %v1107, %v2959
        %v3214 = vadd.f32 %v1111, %v2959
        %v3215 = vadd.f32 %v1115, %v2959
        %v3216 = vadd.f32 %v1122, %v2963
        %v3217 = vadd.f32 %v1126, %v2963
        %v3218 = vadd.f32 %v1130, %v2963
        %v3219 = vadd.f32 %v1134, %v2963
        %v3220 = vadd.f32 %v1138, %v2963
        %v3221 = vadd.f32 %v1142, %v2963
        %v3222 = vadd.f32 %v1146, %v2963
        %v3223 = vadd.f32 %v1150, %v2963
        %v3224 = vadd.f32 %v1154, %v2963
        %v3225 = vadd.f32 %v1158, %v2963
        %v3226 = vadd.f32 %v1162, %v2963
        %v3227 = vadd.f32 %v1166, %v2963
        %v3228 = vadd.f32 %v1170, %v2963
        %v3229 = vadd.f32 %v1174, %v2963
        %v3230 = vadd.f32 %v1178, %v2963
        %v3231 = vadd.f32 %v1182, %v2963
        %v3232 = vadd.f32 %v1189, %v2967
        %v3233 = vadd.f32 %v1193, %v2967
        %v3234 = vadd.f32 %v1197, %v2967
        %v3235 = vadd.f32 %v1201, %v2967
        %v3236 = vadd.f32 %v1205, %v2967
        %v3237 = vadd.f32 %v1209, %v2967
        %v3238 = vadd.f32 %v1213, %v2967
        %v3239 = vadd.f32 %v1217, %v2967
        %v3240 = vadd.f32 %v1221, %v2967
        %v3241 = vadd.f32 %v1225, %v2967
        %v3242 = vadd.f32 %v1229, %v2967
        %v3243 = vadd.f32 %v1233, %v2967
        %v3244 = vadd.f32 %v1237, %v2967
        %v3245 = vadd.f32 %v1241, %v2967
        %v3246 = vadd.f32 %v1245, %v2967
        %v3247 = vadd.f32 %v1249, %v2967
        %v3248 = vadd.f32 %v1256, %v2971
        %v3249 = vadd.f32 %v1260, %v2971
        %v3250 = vadd.f32 %v1264, %v2971
        %v3251 = vadd.f32 %v1268, %v2971
        %v3252 = vadd.f32 %v1272, %v2971
        %v3253 = vadd.f32 %v1276, %v2971
        %v3254 = vadd.f32 %v1280, %v2971
        %v3255 = vadd.f32 %v1284, %v2971
        %v3256 = vadd.f32 %v1288, %v2971
        %v3257 = vadd.f32 %v1292, %v2971
        %v3258 = vadd.f32 %v1296, %v2971
        %v3259 = vadd.f32 %v1300, %v2971
        %v3260 = vadd.f32 %v1304, %v2971
        %v3261 = vadd.f32 %v1308, %v2971
        %v3262 = vadd.f32 %v1312, %v2971
        %v3263 = vadd.f32 %v1316, %v2971
        %v3264 = vadd.f32 %v1323, %v2975
        %v3265 = vadd.f32 %v1327, %v2975
        %v3266 = vadd.f32 %v1331, %v2975
        %v3267 = vadd.f32 %v1335, %v2975
        %v3268 = vadd.f32 %v1339, %v2975
        %v3269 = vadd.f32 %v1343, %v2975
        %v3270 = vadd.f32 %v1347, %v2975
        %v3271 = vadd.f32 %v1351, %v2975
        %v3272 = vadd.f32 %v1355, %v2975
        %v3273 = vadd.f32 %v1359, %v2975
        %v3274 = vadd.f32 %v1363, %v2975
        %v3275 = vadd.f32 %v1367, %v2975
        %v3276 = vadd.f32 %v1371, %v2975
        %v3277 = vadd.f32 %v1375, %v2975
        %v3278 = vadd.f32 %v1379, %v2975
        %v3279 = vadd.f32 %v1383, %v2975
        %v3280 = vadd.f32 %v1390, %v2979
        %v3281 = vadd.f32 %v1394, %v2979
        %v3282 = vadd.f32 %v1398, %v2979
        %v3283 = vadd.f32 %v1402, %v2979
        %v3284 = vadd.f32 %v1406, %v2979
        %v3285 = vadd.f32 %v1410, %v2979
        %v3286 = vadd.f32 %v1414, %v2979
        %v3287 = vadd.f32 %v1418, %v2979
        %v3288 = vadd.f32 %v1422, %v2979
        %v3289 = vadd.f32 %v1426, %v2979
        %v3290 = vadd.f32 %v1430, %v2979
        %v3291 = vadd.f32 %v1434, %v2979
        %v3292 = vadd.f32 %v1438, %v2979
        %v3293 = vadd.f32 %v1442, %v2979
        %v3294 = vadd.f32 %v1446, %v2979
        %v3295 = vadd.f32 %v1450, %v2979
        %v3296 = vadd.f32 %v1457, %v2983
        %v3297 = vadd.f32 %v1461, %v2983
        %v3298 = vadd.f32 %v1465, %v2983
        %v3299 = vadd.f32 %v1469, %v2983
        %v3300 = vadd.f32 %v1473, %v2983
        %v3301 = vadd.f32 %v1477, %v2983
        %v3302 = vadd.f32 %v1481, %v2983
        %v3303 = vadd.f32 %v1485, %v2983
        %v3304 = vadd.f32 %v1489, %v2983
        %v3305 = vadd.f32 %v1493, %v2983
        %v3306 = vadd.f32 %v1497, %v2983
        %v3307 = vadd.f32 %v1501, %v2983
        %v3308 = vadd.f32 %v1505, %v2983
        %v3309 = vadd.f32 %v1509, %v2983
        %v3310 = vadd.f32 %v1513, %v2983
        %v3311 = vadd.f32 %v1517, %v2983
        %v3312 = vadd.f32 %v1524, %v2987
        %v3313 = vadd.f32 %v1528, %v2987
        %v3314 = vadd.f32 %v1532, %v2987
        %v3315 = vadd.f32 %v1536, %v2987
        %v3316 = vadd.f32 %v1540, %v2987
        %v3317 = vadd.f32 %v1544, %v2987
        %v3318 = vadd.f32 %v1548, %v2987
        %v3319 = vadd.f32 %v1552, %v2987
        %v3320 = vadd.f32 %v1556, %v2987
        %v3321 = vadd.f32 %v1560, %v2987
        %v3322 = vadd.f32 %v1564, %v2987
        %v3323 = vadd.f32 %v1568, %v2987
        %v3324 = vadd.f32 %v1572, %v2987
        %v3325 = vadd.f32 %v1576, %v2987
        %v3326 = vadd.f32 %v1580, %v2987
        %v3327 = vadd.f32 %v1584, %v2987
        %v3328 = vadd.f32 %v1591, %v2991
        %v3329 = vadd.f32 %v1595, %v2991
        %v3330 = vadd.f32 %v1599, %v2991
        %v3331 = vadd.f32 %v1603, %v2991
        %v3332 = vadd.f32 %v1607, %v2991
        %v3333 = vadd.f32 %v1611, %v2991
        %v3334 = vadd.f32 %v1615, %v2991
        %v3335 = vadd.f32 %v1619, %v2991
        %v3336 = vadd.f32 %v1623, %v2991
        %v3337 = vadd.f32 %v1627, %v2991
        %v3338 = vadd.f32 %v1631, %v2991
        %v3339 = vadd.f32 %v1635, %v2991
        %v3340 = vadd.f32 %v1639, %v2991
        %v3341 = vadd.f32 %v1643, %v2991
        %v3342 = vadd.f32 %v1647, %v2991
        %v3343 = vadd.f32 %v1651, %v2991
        %v3344 = vadd.f32 %v1658, %v2995
        %v3345 = vadd.f32 %v1662, %v2995
        %v3346 = vadd.f32 %v1666, %v2995
        %v3347 = vadd.f32 %v1670, %v2995
        %v3348 = vadd.f32 %v1674, %v2995
        %v3349 = vadd.f32 %v1678, %v2995
        %v3350 = vadd.f32 %v1682, %v2995
        %v3351 = vadd.f32 %v1686, %v2995
        %v3352 = vadd.f32 %v1690, %v2995
        %v3353 = vadd.f32 %v1694, %v2995
        %v3354 = vadd.f32 %v1698, %v2995
        %v3355 = vadd.f32 %v1702, %v2995
        %v3356 = vadd.f32 %v1706, %v2995
        %v3357 = vadd.f32 %v1710, %v2995
        %v3358 = vadd.f32 %v1714, %v2995
        %v3359 = vadd.f32 %v1718, %v2995
        %v3360 = vadd.f32 %v1725, %v2999
        %v3361 = vadd.f32 %v1729, %v2999
        %v3362 = vadd.f32 %v1733, %v2999
        %v3363 = vadd.f32 %v1737, %v2999
        %v3364 = vadd.f32 %v1741, %v2999
        %v3365 = vadd.f32 %v1745, %v2999
        %v3366 = vadd.f32 %v1749, %v2999
        %v3367 = vadd.f32 %v1753, %v2999
        %v3368 = vadd.f32 %v1757, %v2999
        %v3369 = vadd.f32 %v1761, %v2999
        %v3370 = vadd.f32 %v1765, %v2999
        %v3371 = vadd.f32 %v1769, %v2999
        %v3372 = vadd.f32 %v1773, %v2999
        %v3373 = vadd.f32 %v1777, %v2999
        %v3374 = vadd.f32 %v1781, %v2999
        %v3375 = vadd.f32 %v1785, %v2999
        %v3376 = vadd.f32 %v1792, %v3003
        %v3377 = vadd.f32 %v1796, %v3003
        %v3378 = vadd.f32 %v1800, %v3003
        %v3379 = vadd.f32 %v1804, %v3003
        %v3380 = vadd.f32 %v1808, %v3003
        %v3381 = vadd.f32 %v1812, %v3003
        %v3382 = vadd.f32 %v1816, %v3003
        %v3383 = vadd.f32 %v1820, %v3003
        %v3384 = vadd.f32 %v1824, %v3003
        %v3385 = vadd.f32 %v1828, %v3003
        %v3386 = vadd.f32 %v1832, %v3003
        %v3387 = vadd.f32 %v1836, %v3003
        %v3388 = vadd.f32 %v1840, %v3003
        %v3389 = vadd.f32 %v1844, %v3003
        %v3390 = vadd.f32 %v1848, %v3003
        %v3391 = vadd.f32 %v1852, %v3003
        %v3392 = vadd.f32 %v1859, %v3007
        %v3393 = vadd.f32 %v1863, %v3007
        %v3394 = vadd.f32 %v1867, %v3007
        %v3395 = vadd.f32 %v1871, %v3007
        %v3396 = vadd.f32 %v1875, %v3007
        %v3397 = vadd.f32 %v1879, %v3007
        %v3398 = vadd.f32 %v1883, %v3007
        %v3399 = vadd.f32 %v1887, %v3007
        %v3400 = vadd.f32 %v1891, %v3007
        %v3401 = vadd.f32 %v1895, %v3007
        %v3402 = vadd.f32 %v1899, %v3007
        %v3403 = vadd.f32 %v1903, %v3007
        %v3404 = vadd.f32 %v1907, %v3007
        %v3405 = vadd.f32 %v1911, %v3007
        %v3406 = vadd.f32 %v1915, %v3007
        %v3407 = vadd.f32 %v1919, %v3007
        %v3408 = vadd.f32 %v1926, %v3011
        %v3409 = vadd.f32 %v1930, %v3011
        %v3410 = vadd.f32 %v1934, %v3011
        %v3411 = vadd.f32 %v1938, %v3011
        %v3412 = vadd.f32 %v1942, %v3011
        %v3413 = vadd.f32 %v1946, %v3011
        %v3414 = vadd.f32 %v1950, %v3011
        %v3415 = vadd.f32 %v1954, %v3011
        %v3416 = vadd.f32 %v1958, %v3011
        %v3417 = vadd.f32 %v1962, %v3011
        %v3418 = vadd.f32 %v1966, %v3011
        %v3419 = vadd.f32 %v1970, %v3011
        %v3420 = vadd.f32 %v1974, %v3011
        %v3421 = vadd.f32 %v1978, %v3011
        %v3422 = vadd.f32 %v1982, %v3011
        %v3423 = vadd.f32 %v1986, %v3011
        %v3424 = vadd.f32 %v1993, %v3015
        %v3425 = vadd.f32 %v1997, %v3015
        %v3426 = vadd.f32 %v2001, %v3015
        %v3427 = vadd.f32 %v2005, %v3015
        %v3428 = vadd.f32 %v2009, %v3015
        %v3429 = vadd.f32 %v2013, %v3015
        %v3430 = vadd.f32 %v2017, %v3015
        %v3431 = vadd.f32 %v2021, %v3015
        %v3432 = vadd.f32 %v2025, %v3015
        %v3433 = vadd.f32 %v2029, %v3015
        %v3434 = vadd.f32 %v2033, %v3015
        %v3435 = vadd.f32 %v2037, %v3015
        %v3436 = vadd.f32 %v2041, %v3015
        %v3437 = vadd.f32 %v2045, %v3015
        %v3438 = vadd.f32 %v2049, %v3015
        %v3439 = vadd.f32 %v2053, %v3015
        %v3440 = vadd.f32 %v2060, %v3019
        %v3441 = vadd.f32 %v2064, %v3019
        %v3442 = vadd.f32 %v2068, %v3019
        %v3443 = vadd.f32 %v2072, %v3019
        %v3444 = vadd.f32 %v2076, %v3019
        %v3445 = vadd.f32 %v2080, %v3019
        %v3446 = vadd.f32 %v2084, %v3019
        %v3447 = vadd.f32 %v2088, %v3019
        %v3448 = vadd.f32 %v2092, %v3019
        %v3449 = vadd.f32 %v2096, %v3019
        %v3450 = vadd.f32 %v2100, %v3019
        %v3451 = vadd.f32 %v2104, %v3019
        %v3452 = vadd.f32 %v2108, %v3019
        %v3453 = vadd.f32 %v2112, %v3019
        %v3454 = vadd.f32 %v2116, %v3019
        %v3455 = vadd.f32 %v2120, %v3019
        %v3456 = vadd.f32 %v2127, %v3023
        %v3457 = vadd.f32 %v2131, %v3023
        %v3458 = vadd.f32 %v2135, %v3023
        %v3459 = vadd.f32 %v2139, %v3023
        %v3460 = vadd.f32 %v2143, %v3023
        %v3461 = vadd.f32 %v2147, %v3023
        %v3462 = vadd.f32 %v2151, %v3023
        %v3463 = vadd.f32 %v2155, %v3023
        %v3464 = vadd.f32 %v2159, %v3023
        %v3465 = vadd.f32 %v2163, %v3023
        %v3466 = vadd.f32 %v2167, %v3023
        %v3467 = vadd.f32 %v2171, %v3023
        %v3468 = vadd.f32 %v2175, %v3023
        %v3469 = vadd.f32 %v2179, %v3023
        %v3470 = vadd.f32 %v2183, %v3023
        %v3471 = vadd.f32 %v2187, %v3023
        %v3472 = vadd.f32 %v2194, %v3027
        %v3473 = vadd.f32 %v2198, %v3027
        %v3474 = vadd.f32 %v2202, %v3027
        %v3475 = vadd.f32 %v2206, %v3027
        %v3476 = vadd.f32 %v2210, %v3027
        %v3477 = vadd.f32 %v2214, %v3027
        %v3478 = vadd.f32 %v2218, %v3027
        %v3479 = vadd.f32 %v2222, %v3027
        %v3480 = vadd.f32 %v2226, %v3027
        %v3481 = vadd.f32 %v2230, %v3027
        %v3482 = vadd.f32 %v2234, %v3027
        %v3483 = vadd.f32 %v2238, %v3027
        %v3484 = vadd.f32 %v2242, %v3027
        %v3485 = vadd.f32 %v2246, %v3027
        %v3486 = vadd.f32 %v2250, %v3027
        %v3487 = vadd.f32 %v2254, %v3027
        %v3488 = vadd.f32 %v2261, %v3031
        %v3489 = vadd.f32 %v2265, %v3031
        %v3490 = vadd.f32 %v2269, %v3031
        %v3491 = vadd.f32 %v2273, %v3031
        %v3492 = vadd.f32 %v2277, %v3031
        %v3493 = vadd.f32 %v2281, %v3031
        %v3494 = vadd.f32 %v2285, %v3031
        %v3495 = vadd.f32 %v2289, %v3031
        %v3496 = vadd.f32 %v2293, %v3031
        %v3497 = vadd.f32 %v2297, %v3031
        %v3498 = vadd.f32 %v2301, %v3031
        %v3499 = vadd.f32 %v2305, %v3031
        %v3500 = vadd.f32 %v2309, %v3031
        %v3501 = vadd.f32 %v2313, %v3031
        %v3502 = vadd.f32 %v2317, %v3031
        %v3503 = vadd.f32 %v2321, %v3031
        %v3504 = vadd.f32 %v2328, %v3035
        %v3505 = vadd.f32 %v2332, %v3035
        %v3506 = vadd.f32 %v2336, %v3035
        %v3507 = vadd.f32 %v2340, %v3035
        %v3508 = vadd.f32 %v2344, %v3035
        %v3509 = vadd.f32 %v2348, %v3035
        %v3510 = vadd.f32 %v2352, %v3035
        %v3511 = vadd.f32 %v2356, %v3035
        %v3512 = vadd.f32 %v2360, %v3035
        %v3513 = vadd.f32 %v2364, %v3035
        %v3514 = vadd.f32 %v2368, %v3035
        %v3515 = vadd.f32 %v2372, %v3035
        %v3516 = vadd.f32 %v2376, %v3035
        %v3517 = vadd.f32 %v2380, %v3035
        %v3518 = vadd.f32 %v2384, %v3035
        %v3519 = vadd.f32 %v2388, %v3035
        %v3520 = vadd.f32 %v2395, %v3039
        %v3521 = vadd.f32 %v2399, %v3039
        %v3522 = vadd.f32 %v2403, %v3039
        %v3523 = vadd.f32 %v2407, %v3039
        %v3524 = vadd.f32 %v2411, %v3039
        %v3525 = vadd.f32 %v2415, %v3039
        %v3526 = vadd.f32 %v2419, %v3039
        %v3527 = vadd.f32 %v2423, %v3039
        %v3528 = vadd.f32 %v2427, %v3039
        %v3529 = vadd.f32 %v2431, %v3039
        %v3530 = vadd.f32 %v2435, %v3039
        %v3531 = vadd.f32 %v2439, %v3039
        %v3532 = vadd.f32 %v2443, %v3039
        %v3533 = vadd.f32 %v2447, %v3039
        %v3534 = vadd.f32 %v2451, %v3039
        %v3535 = vadd.f32 %v2455, %v3039
        %v3536 = vadd.f32 %v2462, %v3043
        %v3537 = vadd.f32 %v2466, %v3043
        %v3538 = vadd.f32 %v2470, %v3043
        %v3539 = vadd.f32 %v2474, %v3043
        %v3540 = vadd.f32 %v2478, %v3043
        %v3541 = vadd.f32 %v2482, %v3043
        %v3542 = vadd.f32 %v2486, %v3043
        %v3543 = vadd.f32 %v2490, %v3043
        %v3544 = vadd.f32 %v2494, %v3043
        %v3545 = vadd.f32 %v2498, %v3043
        %v3546 = vadd.f32 %v2502, %v3043
        %v3547 = vadd.f32 %v2506, %v3043
        %v3548 = vadd.f32 %v2510, %v3043
        %v3549 = vadd.f32 %v2514, %v3043
        %v3550 = vadd.f32 %v2518, %v3043
        %v3551 = vadd.f32 %v2522, %v3043
        %v3552 = vadd.f32 %v2529, %v3047
        %v3553 = vadd.f32 %v2533, %v3047
        %v3554 = vadd.f32 %v2537, %v3047
        %v3555 = vadd.f32 %v2541, %v3047
        %v3556 = vadd.f32 %v2545, %v3047
        %v3557 = vadd.f32 %v2549, %v3047
        %v3558 = vadd.f32 %v2553, %v3047
        %v3559 = vadd.f32 %v2557, %v3047
        %v3560 = vadd.f32 %v2561, %v3047
        %v3561 = vadd.f32 %v2565, %v3047
        %v3562 = vadd.f32 %v2569, %v3047
        %v3563 = vadd.f32 %v2573, %v3047
        %v3564 = vadd.f32 %v2577, %v3047
        %v3565 = vadd.f32 %v2581, %v3047
        %v3566 = vadd.f32 %v2585, %v3047
        %v3567 = vadd.f32 %v2589, %v3047
        %v3568 = vadd.f32 %v2596, %v3051
        %v3569 = vadd.f32 %v2600, %v3051
        %v3570 = vadd.f32 %v2604, %v3051
        %v3571 = vadd.f32 %v2608, %v3051
        %v3572 = vadd.f32 %v2612, %v3051
        %v3573 = vadd.f32 %v2616, %v3051
        %v3574 = vadd.f32 %v2620, %v3051
        %v3575 = vadd.f32 %v2624, %v3051
        %v3576 = vadd.f32 %v2628, %v3051
        %v3577 = vadd.f32 %v2632, %v3051
        %v3578 = vadd.f32 %v2636, %v3051
        %v3579 = vadd.f32 %v2640, %v3051
        %v3580 = vadd.f32 %v2644, %v3051
        %v3581 = vadd.f32 %v2648, %v3051
        %v3582 = vadd.f32 %v2652, %v3051
        %v3583 = vadd.f32 %v2656, %v3051
        %v3584 = vadd.f32 %v2663, %v3055
        %v3585 = vadd.f32 %v2667, %v3055
        %v3586 = vadd.f32 %v2671, %v3055
        %v3587 = vadd.f32 %v2675, %v3055
        %v3588 = vadd.f32 %v2679, %v3055
        %v3589 = vadd.f32 %v2683, %v3055
        %v3590 = vadd.f32 %v2687, %v3055
        %v3591 = vadd.f32 %v2691, %v3055
        %v3592 = vadd.f32 %v2695, %v3055
        %v3593 = vadd.f32 %v2699, %v3055
        %v3594 = vadd.f32 %v2703, %v3055
        %v3595 = vadd.f32 %v2707, %v3055
        %v3596 = vadd.f32 %v2711, %v3055
        %v3597 = vadd.f32 %v2715, %v3055
        %v3598 = vadd.f32 %v2719, %v3055
        %v3599 = vadd.f32 %v2723, %v3055
        %v3600 = vmax.f32 %v3088, 0.0
        %v3601 = vmax.f32 %v3089, 0.0
        %v3602 = vmax.f32 %v3090, 0.0
        %v3603 = vmax.f32 %v3091, 0.0
        %v3604 = vmax.f32 %v3092, 0.0
        %v3605 = vmax.f32 %v3093, 0.0
        %v3606 = vmax.f32 %v3094, 0.0
        %v3607 = vmax.f32 %v3095, 0.0
        %v3608 = vmax.f32 %v3096, 0.0
        %v3609 = vmax.f32 %v3097, 0.0
        %v3610 = vmax.f32 %v3098, 0.0
        %v3611 = vmax.f32 %v3099, 0.0
        %v3612 = vmax.f32 %v3100, 0.0
        %v3613 = vmax.f32 %v3101, 0.0
        %v3614 = vmax.f32 %v3102, 0.0
        %v3615 = vmax.f32 %v3103, 0.0
        %v3616 = vmax.f32 %v3104, 0.0
        %v3617 = vmax.f32 %v3105, 0.0
        %v3618 = vmax.f32 %v3106, 0.0
        %v3619 = vmax.f32 %v3107, 0.0
        %v3620 = vmax.f32 %v3108, 0.0
        %v3621 = vmax.f32 %v3109, 0.0
        %v3622 = vmax.f32 %v3110, 0.0
        %v3623 = vmax.f32 %v3111, 0.0
        %v3624 = vmax.f32 %v3112, 0.0
        %v3625 = vmax.f32 %v3113, 0.0
        %v3626 = vmax.f32 %v3114, 0.0
        %v3627 = vmax.f32 %v3115, 0.0
        %v3628 = vmax.f32 %v3116, 0.0
        %v3629 = vmax.f32 %v3117, 0.0
        %v3630 = vmax.f32 %v3118, 0.0
        %v3631 = vmax.f32 %v3119, 0.0
        %v3632 = vmax.f32 %v3120, 0.0
        %v3633 = vmax.f32 %v3121, 0.0
        %v3634 = vmax.f32 %v3122, 0.0
        %v3635 = vmax.f32 %v3123, 0.0
        %v3636 = vmax.f32 %v3124, 0.0
        %v3637 = vmax.f32 %v3125, 0.0
        %v3638 = vmax.f32 %v3126, 0.0
        %v3639 = vmax.f32 %v3127, 0.0
        %v3640 = vmax.f32 %v3128, 0.0
        %v3641 = vmax.f32 %v3129, 0.0
        %v3642 = vmax.f32 %v3130, 0.0
        %v3643 = vmax.f32 %v3131, 0.0
        %v3644 = vmax.f32 %v3132, 0.0
        %v3645 = vmax.f32 %v3133, 0.0
        %v3646 = vmax.f32 %v3134, 0.0
        %v3647 = vmax.f32 %v3135, 0.0
        %v3648 = vmax.f32 %v3136, 0.0
        %v3649 = vmax.f32 %v3137, 0.0
        %v3650 = vmax.f32 %v3138, 0.0
        %v3651 = vmax.f32 %v3139, 0.0
        %v3652 = vmax.f32 %v3140, 0.0
        %v3653 = vmax.f32 %v3141, 0.0
        %v3654 = vmax.f32 %v3142, 0.0
        %v3655 = vmax.f32 %v3143, 0.0
        %v3656 = vmax.f32 %v3144, 0.0
        %v3657 = vmax.f32 %v3145, 0.0
        %v3658 = vmax.f32 %v3146, 0.0
        %v3659 = vmax.f32 %v3147, 0.0
        %v3660 = vmax.f32 %v3148, 0.0
        %v3661 = vmax.f32 %v3149, 0.0
        %v3662 = vmax.f32 %v3150, 0.0
        %v3663 = vmax.f32 %v3151, 0.0
        %v3664 = vmax.f32 %v3152, 0.0
        %v3665 = vmax.f32 %v3153, 0.0
        %v3666 = vmax.f32 %v3154, 0.0
        %v3667 = vmax.f32 %v3155, 0.0
        %v3668 = vmax.f32 %v3156, 0.0
        %v3669 = vmax.f32 %v3157, 0.0
        %v3670 = vmax.f32 %v3158, 0.0
        %v3671 = vmax.f32 %v3159, 0.0
        %v3672 = vmax.f32 %v3160, 0.0
        %v3673 = vmax.f32 %v3161, 0.0
        %v3674 = vmax.f32 %v3162, 0.0
        %v3675 = vmax.f32 %v3163, 0.0
        %v3676 = vmax.f32 %v3164, 0.0
        %v3677 = vmax.f32 %v3165, 0.0
        %v3678 = vmax.f32 %v3166, 0.0
        %v3679 = vmax.f32 %v3167, 0.0
        %v3680 = vmax.f32 %v3168, 0.0
        %v3681 = vmax.f32 %v3169, 0.0
        %v3682 = vmax.f32 %v3170, 0.0
        %v3683 = vmax.f32 %v3171, 0.0
        %v3684 = vmax.f32 %v3172, 0.0
        %v3685 = vmax.f32 %v3173, 0.0
        %v3686 = vmax.f32 %v3174, 0.0
        %v3687 = vmax.f32 %v3175, 0.0
        %v3688 = vmax.f32 %v3176, 0.0
        %v3689 = vmax.f32 %v3177, 0.0
        %v3690 = vmax.f32 %v3178, 0.0
        %v3691 = vmax.f32 %v3179, 0.0
        %v3692 = vmax.f32 %v3180, 0.0
        %v3693 = vmax.f32 %v3181, 0.0
        %v3694 = vmax.f32 %v3182, 0.0
        %v3695 = vmax.f32 %v3183, 0.0
        %v3696 = vmax.f32 %v3184, 0.0
        %v3697 = vmax.f32 %v3185, 0.0
        %v3698 = vmax.f32 %v3186, 0.0
        %v3699 = vmax.f32 %v3187, 0.0
        %v3700 = vmax.f32 %v3188, 0.0
        %v3701 = vmax.f32 %v3189, 0.0
        %v3702 = vmax.f32 %v3190, 0.0
        %v3703 = vmax.f32 %v3191, 0.0
        %v3704 = vmax.f32 %v3192, 0.0
        %v3705 = vmax.f32 %v3193, 0.0
        %v3706 = vmax.f32 %v3194, 0.0
        %v3707 = vmax.f32 %v3195, 0.0
        %v3708 = vmax.f32 %v3196, 0.0
        %v3709 = vmax.f32 %v3197, 0.0
        %v3710 = vmax.f32 %v3198, 0.0
        %v3711 = vmax.f32 %v3199, 0.0
        %v3712 = vmax.f32 %v3200, 0.0
        %v3713 = vmax.f32 %v3201, 0.0
        %v3714 = vmax.f32 %v3202, 0.0
        %v3715 = vmax.f32 %v3203, 0.0
        %v3716 = vmax.f32 %v3204, 0.0
        %v3717 = vmax.f32 %v3205, 0.0
        %v3718 = vmax.f32 %v3206, 0.0
        %v3719 = vmax.f32 %v3207, 0.0
        %v3720 = vmax.f32 %v3208, 0.0
        %v3721 = vmax.f32 %v3209, 0.0
        %v3722 = vmax.f32 %v3210, 0.0
        %v3723 = vmax.f32 %v3211, 0.0
        %v3724 = vmax.f32 %v3212, 0.0
        %v3725 = vmax.f32 %v3213, 0.0
        %v3726 = vmax.f32 %v3214, 0.0
        %v3727 = vmax.f32 %v3215, 0.0
        %v3728 = vmax.f32 %v3216, 0.0
        %v3729 = vmax.f32 %v3217, 0.0
        %v3730 = vmax.f32 %v3218, 0.0
        %v3731 = vmax.f32 %v3219, 0.0
        %v3732 = vmax.f32 %v3220, 0.0
        %v3733 = vmax.f32 %v3221, 0.0
        %v3734 = vmax.f32 %v3222, 0.0
        %v3735 = vmax.f32 %v3223, 0.0
        %v3736 = vmax.f32 %v3224, 0.0
        %v3737 = vmax.f32 %v3225, 0.0
        %v3738 = vmax.f32 %v3226, 0.0
        %v3739 = vmax.f32 %v3227, 0.0
        %v3740 = vmax.f32 %v3228, 0.0
        %v3741 = vmax.f32 %v3229, 0.0
        %v3742 = vmax.f32 %v3230, 0.0
        %v3743 = vmax.f32 %v3231, 0.0
        %v3744 = vmax.f32 %v3232, 0.0
        %v3745 = vmax.f32 %v3233, 0.0
        %v3746 = vmax.f32 %v3234, 0.0
        %v3747 = vmax.f32 %v3235, 0.0
        %v3748 = vmax.f32 %v3236, 0.0
        %v3749 = vmax.f32 %v3237, 0.0
        %v3750 = vmax.f32 %v3238, 0.0
        %v3751 = vmax.f32 %v3239, 0.0
        %v3752 = vmax.f32 %v3240, 0.0
        %v3753 = vmax.f32 %v3241, 0.0
        %v3754 = vmax.f32 %v3242, 0.0
        %v3755 = vmax.f32 %v3243, 0.0
        %v3756 = vmax.f32 %v3244, 0.0
        %v3757 = vmax.f32 %v3245, 0.0
        %v3758 = vmax.f32 %v3246, 0.0
        %v3759 = vmax.f32 %v3247, 0.0
        %v3760 = vmax.f32 %v3248, 0.0
        %v3761 = vmax.f32 %v3249, 0.0
        %v3762 = vmax.f32 %v3250, 0.0
        %v3763 = vmax.f32 %v3251, 0.0
        %v3764 = vmax.f32 %v3252, 0.0
        %v3765 = vmax.f32 %v3253, 0.0
        %v3766 = vmax.f32 %v3254, 0.0
        %v3767 = vmax.f32 %v3255, 0.0
        %v3768 = vmax.f32 %v3256, 0.0
        %v3769 = vmax.f32 %v3257, 0.0
        %v3770 = vmax.f32 %v3258, 0.0
        %v3771 = vmax.f32 %v3259, 0.0
        %v3772 = vmax.f32 %v3260, 0.0
        %v3773 = vmax.f32 %v3261, 0.0
        %v3774 = vmax.f32 %v3262, 0.0
        %v3775 = vmax.f32 %v3263, 0.0
        %v3776 = vmax.f32 %v3264, 0.0
        %v3777 = vmax.f32 %v3265, 0.0
        %v3778 = vmax.f32 %v3266, 0.0
        %v3779 = vmax.f32 %v3267, 0.0
        %v3780 = vmax.f32 %v3268, 0.0
        %v3781 = vmax.f32 %v3269, 0.0
        %v3782 = vmax.f32 %v3270, 0.0
        %v3783 = vmax.f32 %v3271, 0.0
        %v3784 = vmax.f32 %v3272, 0.0
        %v3785 = vmax.f32 %v3273, 0.0
        %v3786 = vmax.f32 %v3274, 0.0
        %v3787 = vmax.f32 %v3275, 0.0
        %v3788 = vmax.f32 %v3276, 0.0
        %v3789 = vmax.f32 %v3277, 0.0
        %v3790 = vmax.f32 %v3278, 0.0
        %v3791 = vmax.f32 %v3279, 0.0
        %v3792 = vmax.f32 %v3280, 0.0
        %v3793 = vmax.f32 %v3281, 0.0
        %v3794 = vmax.f32 %v3282, 0.0
        %v3795 = vmax.f32 %v3283, 0.0
        %v3796 = vmax.f32 %v3284, 0.0
        %v3797 = vmax.f32 %v3285, 0.0
        %v3798 = vmax.f32 %v3286, 0.0
        %v3799 = vmax.f32 %v3287, 0.0
        %v3800 = vmax.f32 %v3288, 0.0
        %v3801 = vmax.f32 %v3289, 0.0
        %v3802 = vmax.f32 %v3290, 0.0
        %v3803 = vmax.f32 %v3291, 0.0
        %v3804 = vmax.f32 %v3292, 0.0
        %v3805 = vmax.f32 %v3293, 0.0
        %v3806 = vmax.f32 %v3294, 0.0
        %v3807 = vmax.f32 %v3295, 0.0
        %v3808 = vmax.f32 %v3296, 0.0
        %v3809 = vmax.f32 %v3297, 0.0
        %v3810 = vmax.f32 %v3298, 0.0
        %v3811 = vmax.f32 %v3299, 0.0
        %v3812 = vmax.f32 %v3300, 0.0
        %v3813 = vmax.f32 %v3301, 0.0
        %v3814 = vmax.f32 %v3302, 0.0
        %v3815 = vmax.f32 %v3303, 0.0
        %v3816 = vmax.f32 %v3304, 0.0
        %v3817 = vmax.f32 %v3305, 0.0
        %v3818 = vmax.f32 %v3306, 0.0
        %v3819 = vmax.f32 %v3307, 0.0
        %v3820 = vmax.f32 %v3308, 0.0
        %v3821 = vmax.f32 %v3309, 0.0
        %v3822 = vmax.f32 %v3310, 0.0
        %v3823 = vmax.f32 %v3311, 0.0
        %v3824 = vmax.f32 %v3312, 0.0
        %v3825 = vmax.f32 %v3313, 0.0
        %v3826 = vmax.f32 %v3314, 0.0
        %v3827 = vmax.f32 %v3315, 0.0
        %v3828 = vmax.f32 %v3316, 0.0
        %v3829 = vmax.f32 %v3317, 0.0
        %v3830 = vmax.f32 %v3318, 0.0
        %v3831 = vmax.f32 %v3319, 0.0
        %v3832 = vmax.f32 %v3320, 0.0
        %v3833 = vmax.f32 %v3321, 0.0
        %v3834 = vmax.f32 %v3322, 0.0
        %v3835 = vmax.f32 %v3323, 0.0
        %v3836 = vmax.f32 %v3324, 0.0
        %v3837 = vmax.f32 %v3325, 0.0
        %v3838 = vmax.f32 %v3326, 0.0
        %v3839 = vmax.f32 %v3327, 0.0
        %v3840 = vmax.f32 %v3328, 0.0
        %v3841 = vmax.f32 %v3329, 0.0
        %v3842 = vmax.f32 %v3330, 0.0
        %v3843 = vmax.f32 %v3331, 0.0
        %v3844 = vmax.f32 %v3332, 0.0
        %v3845 = vmax.f32 %v3333, 0.0
        %v3846 = vmax.f32 %v3334, 0.0
        %v3847 = vmax.f32 %v3335, 0.0
        %v3848 = vmax.f32 %v3336, 0.0
        %v3849 = vmax.f32 %v3337, 0.0
        %v3850 = vmax.f32 %v3338, 0.0
        %v3851 = vmax.f32 %v3339, 0.0
        %v3852 = vmax.f32 %v3340, 0.0
        %v3853 = vmax.f32 %v3341, 0.0
        %v3854 = vmax.f32 %v3342, 0.0
        %v3855 = vmax.f32 %v3343, 0.0
        %v3856 = vmax.f32 %v3344, 0.0
        %v3857 = vmax.f32 %v3345, 0.0
        %v3858 = vmax.f32 %v3346, 0.0
        %v3859 = vmax.f32 %v3347, 0.0
        %v3860 = vmax.f32 %v3348, 0.0
        %v3861 = vmax.f32 %v3349, 0.0
        %v3862 = vmax.f32 %v3350, 0.0
        %v3863 = vmax.f32 %v3351, 0.0
        %v3864 = vmax.f32 %v3352, 0.0
        %v3865 = vmax.f32 %v3353, 0.0
        %v3866 = vmax.f32 %v3354, 0.0
        %v3867 = vmax.f32 %v3355, 0.0
        %v3868 = vmax.f32 %v3356, 0.0
        %v3869 = vmax.f32 %v3357, 0.0
        %v3870 = vmax.f32 %v3358, 0.0
        %v3871 = vmax.f32 %v3359, 0.0
        %v3872 = vmax.f32 %v3360, 0.0
        %v3873 = vmax.f32 %v3361, 0.0
        %v3874 = vmax.f32 %v3362, 0.0
        %v3875 = vmax.f32 %v3363, 0.0
        %v3876 = vmax.f32 %v3364, 0.0
        %v3877 = vmax.f32 %v3365, 0.0
        %v3878 = vmax.f32 %v3366, 0.0
        %v3879 = vmax.f32 %v3367, 0.0
        %v3880 = vmax.f32 %v3368, 0.0
        %v3881 = vmax.f32 %v3369, 0.0
        %v3882 = vmax.f32 %v3370, 0.0
        %v3883 = vmax.f32 %v3371, 0.0
        %v3884 = vmax.f32 %v3372, 0.0
        %v3885 = vmax.f32 %v3373, 0.0
        %v3886 = vmax.f32 %v3374, 0.0
        %v3887 = vmax.f32 %v3375, 0.0
        %v3888 = vmax.f32 %v3376, 0.0
        %v3889 = vmax.f32 %v3377, 0.0
        %v3890 = vmax.f32 %v3378, 0.0
        %v3891 = vmax.f32 %v3379, 0.0
        %v3892 = vmax.f32 %v3380, 0.0
        %v3893 = vmax.f32 %v3381, 0.0
        %v3894 = vmax.f32 %v3382, 0.0
        %v3895 = vmax.f32 %v3383, 0.0
        %v3896 = vmax.f32 %v3384, 0.0
        %v3897 = vmax.f32 %v3385, 0.0
        %v3898 = vmax.f32 %v3386, 0.0
        %v3899 = vmax.f32 %v3387, 0.0
        %v3900 = vmax.f32 %v3388, 0.0
        %v3901 = vmax.f32 %v3389, 0.0
        %v3902 = vmax.f32 %v3390, 0.0
        %v3903 = vmax.f32 %v3391, 0.0
        %v3904 = vmax.f32 %v3392, 0.0
        %v3905 = vmax.f32 %v3393, 0.0
        %v3906 = vmax.f32 %v3394, 0.0
        %v3907 = vmax.f32 %v3395, 0.0
        %v3908 = vmax.f32 %v3396, 0.0
        %v3909 = vmax.f32 %v3397, 0.0
        %v3910 = vmax.f32 %v3398, 0.0
        %v3911 = vmax.f32 %v3399, 0.0
        %v3912 = vmax.f32 %v3400, 0.0
        %v3913 = vmax.f32 %v3401, 0.0
        %v3914 = vmax.f32 %v3402, 0.0
        %v3915 = vmax.f32 %v3403, 0.0
        %v3916 = vmax.f32 %v3404, 0.0
        %v3917 = vmax.f32 %v3405, 0.0
        %v3918 = vmax.f32 %v3406, 0.0
        %v3919 = vmax.f32 %v3407, 0.0
        %v3920 = vmax.f32 %v3408, 0.0
        %v3921 = vmax.f32 %v3409, 0.0
        %v3922 = vmax.f32 %v3410, 0.0
        %v3923 = vmax.f32 %v3411, 0.0
        %v3924 = vmax.f32 %v3412, 0.0
        %v3925 = vmax.f32 %v3413, 0.0
        %v3926 = vmax.f32 %v3414, 0.0
        %v3927 = vmax.f32 %v3415, 0.0
        %v3928 = vmax.f32 %v3416, 0.0
        %v3929 = vmax.f32 %v3417, 0.0
        %v3930 = vmax.f32 %v3418, 0.0
        %v3931 = vmax.f32 %v3419, 0.0
        %v3932 = vmax.f32 %v3420, 0.0
        %v3933 = vmax.f32 %v3421, 0.0
        %v3934 = vmax.f32 %v3422, 0.0
        %v3935 = vmax.f32 %v3423, 0.0
        %v3936 = vmax.f32 %v3424, 0.0
        %v3937 = vmax.f32 %v3425, 0.0
        %v3938 = vmax.f32 %v3426, 0.0
        %v3939 = vmax.f32 %v3427, 0.0
        %v3940 = vmax.f32 %v3428, 0.0
        %v3941 = vmax.f32 %v3429, 0.0
        %v3942 = vmax.f32 %v3430, 0.0
        %v3943 = vmax.f32 %v3431, 0.0
        %v3944 = vmax.f32 %v3432, 0.0
        %v3945 = vmax.f32 %v3433, 0.0
        %v3946 = vmax.f32 %v3434, 0.0
        %v3947 = vmax.f32 %v3435, 0.0
        %v3948 = vmax.f32 %v3436, 0.0
        %v3949 = vmax.f32 %v3437, 0.0
        %v3950 = vmax.f32 %v3438, 0.0
        %v3951 = vmax.f32 %v3439, 0.0
        %v3952 = vmax.f32 %v3440, 0.0
        %v3953 = vmax.f32 %v3441, 0.0
        %v3954 = vmax.f32 %v3442, 0.0
        %v3955 = vmax.f32 %v3443, 0.0
        %v3956 = vmax.f32 %v3444, 0.0
        %v3957 = vmax.f32 %v3445, 0.0
        %v3958 = vmax.f32 %v3446, 0.0
        %v3959 = vmax.f32 %v3447, 0.0
        %v3960 = vmax.f32 %v3448, 0.0
        %v3961 = vmax.f32 %v3449, 0.0
        %v3962 = vmax.f32 %v3450, 0.0
        %v3963 = vmax.f32 %v3451, 0.0
        %v3964 = vmax.f32 %v3452, 0.0
        %v3965 = vmax.f32 %v3453, 0.0
        %v3966 = vmax.f32 %v3454, 0.0
        %v3967 = vmax.f32 %v3455, 0.0
        %v3968 = vmax.f32 %v3456, 0.0
        %v3969 = vmax.f32 %v3457, 0.0
        %v3970 = vmax.f32 %v3458, 0.0
        %v3971 = vmax.f32 %v3459, 0.0
        %v3972 = vmax.f32 %v3460, 0.0
        %v3973 = vmax.f32 %v3461, 0.0
        %v3974 = vmax.f32 %v3462, 0.0
        %v3975 = vmax.f32 %v3463, 0.0
        %v3976 = vmax.f32 %v3464, 0.0
        %v3977 = vmax.f32 %v3465, 0.0
        %v3978 = vmax.f32 %v3466, 0.0
        %v3979 = vmax.f32 %v3467, 0.0
        %v3980 = vmax.f32 %v3468, 0.0
        %v3981 = vmax.f32 %v3469, 0.0
        %v3982 = vmax.f32 %v3470, 0.0
        %v3983 = vmax.f32 %v3471, 0.0
        %v3984 = vmax.f32 %v3472, 0.0
        %v3985 = vmax.f32 %v3473, 0.0
        %v3986 = vmax.f32 %v3474, 0.0
        %v3987 = vmax.f32 %v3475, 0.0
        %v3988 = vmax.f32 %v3476, 0.0
        %v3989 = vmax.f32 %v3477, 0.0
        %v3990 = vmax.f32 %v3478, 0.0
        %v3991 = vmax.f32 %v3479, 0.0
        %v3992 = vmax.f32 %v3480, 0.0
        %v3993 = vmax.f32 %v3481, 0.0
        %v3994 = vmax.f32 %v3482, 0.0
        %v3995 = vmax.f32 %v3483, 0.0
        %v3996 = vmax.f32 %v3484, 0.0
        %v3997 = vmax.f32 %v3485, 0.0
        %v3998 = vmax.f32 %v3486, 0.0
        %v3999 = vmax.f32 %v3487, 0.0
        %v4000 = vmax.f32 %v3488, 0.0
        %v4001 = vmax.f32 %v3489, 0.0
        %v4002 = vmax.f32 %v3490, 0.0
        %v4003 = vmax.f32 %v3491, 0.0
        %v4004 = vmax.f32 %v3492, 0.0
        %v4005 = vmax.f32 %v3493, 0.0
        %v4006 = vmax.f32 %v3494, 0.0
        %v4007 = vmax.f32 %v3495, 0.0
        %v4008 = vmax.f32 %v3496, 0.0
        %v4009 = vmax.f32 %v3497, 0.0
        %v4010 = vmax.f32 %v3498, 0.0
        %v4011 = vmax.f32 %v3499, 0.0
        %v4012 = vmax.f32 %v3500, 0.0
        %v4013 = vmax.f32 %v3501, 0.0
        %v4014 = vmax.f32 %v3502, 0.0
        %v4015 = vmax.f32 %v3503, 0.0
        %v4016 = vmax.f32 %v3504, 0.0
        %v4017 = vmax.f32 %v3505, 0.0
        %v4018 = vmax.f32 %v3506, 0.0
        %v4019 = vmax.f32 %v3507, 0.0
        %v4020 = vmax.f32 %v3508, 0.0
        %v4021 = vmax.f32 %v3509, 0.0
        %v4022 = vmax.f32 %v3510, 0.0
        %v4023 = vmax.f32 %v3511, 0.0
        %v4024 = vmax.f32 %v3512, 0.0
        %v4025 = vmax.f32 %v3513, 0.0
        %v4026 = vmax.f32 %v3514, 0.0
        %v4027 = vmax.f32 %v3515, 0.0
        %v4028 = vmax.f32 %v3516, 0.0
        %v4029 = vmax.f32 %v3517, 0.0
        %v4030 = vmax.f32 %v3518, 0.0
        %v4031 = vmax.f32 %v3519, 0.0
        %v4032 = vmax.f32 %v3520, 0.0
        %v4033 = vmax.f32 %v3521, 0.0
        %v4034 = vmax.f32 %v3522, 0.0
        %v4035 = vmax.f32 %v3523, 0.0
        %v4036 = vmax.f32 %v3524, 0.0
        %v4037 = vmax.f32 %v3525, 0.0
        %v4038 = vmax.f32 %v3526, 0.0
        %v4039 = vmax.f32 %v3527, 0.0
        %v4040 = vmax.f32 %v3528, 0.0
        %v4041 = vmax.f32 %v3529, 0.0
        %v4042 = vmax.f32 %v3530, 0.0
        %v4043 = vmax.f32 %v3531, 0.0
        %v4044 = vmax.f32 %v3532, 0.0
        %v4045 = vmax.f32 %v3533, 0.0
        %v4046 = vmax.f32 %v3534, 0.0
        %v4047 = vmax.f32 %v3535, 0.0
        %v4048 = vmax.f32 %v3536, 0.0
        %v4049 = vmax.f32 %v3537, 0.0
        %v4050 = vmax.f32 %v3538, 0.0
        %v4051 = vmax.f32 %v3539, 0.0
        %v4052 = vmax.f32 %v3540, 0.0
        %v4053 = vmax.f32 %v3541, 0.0
        %v4054 = vmax.f32 %v3542, 0.0
        %v4055 = vmax.f32 %v3543, 0.0
        %v4056 = vmax.f32 %v3544, 0.0
        %v4057 = vmax.f32 %v3545, 0.0
        %v4058 = vmax.f32 %v3546, 0.0
        %v4059 = vmax.f32 %v3547, 0.0
        %v4060 = vmax.f32 %v3548, 0.0
        %v4061 = vmax.f32 %v3549, 0.0
        %v4062 = vmax.f32 %v3550, 0.0
        %v4063 = vmax.f32 %v3551, 0.0
        %v4064 = vmax.f32 %v3552, 0.0
        %v4065 = vmax.f32 %v3553, 0.0
        %v4066 = vmax.f32 %v3554, 0.0
        %v4067 = vmax.f32 %v3555, 0.0
        %v4068 = vmax.f32 %v3556, 0.0
        %v4069 = vmax.f32 %v3557, 0.0
        %v4070 = vmax.f32 %v3558, 0.0
        %v4071 = vmax.f32 %v3559, 0.0
        %v4072 = vmax.f32 %v3560, 0.0
        %v4073 = vmax.f32 %v3561, 0.0
        %v4074 = vmax.f32 %v3562, 0.0
        %v4075 = vmax.f32 %v3563, 0.0
        %v4076 = vmax.f32 %v3564, 0.0
        %v4077 = vmax.f32 %v3565, 0.0
        %v4078 = vmax.f32 %v3566, 0.0
        %v4079 = vmax.f32 %v3567, 0.0
        %v4080 = vmax.f32 %v3568, 0.0
        %v4081 = vmax.f32 %v3569, 0.0
        %v4082 = vmax.f32 %v3570, 0.0
        %v4083 = vmax.f32 %v3571, 0.0
        %v4084 = vmax.f32 %v3572, 0.0
        %v4085 = vmax.f32 %v3573, 0.0
        %v4086 = vmax.f32 %v3574, 0.0
        %v4087 = vmax.f32 %v3575, 0.0
        %v4088 = vmax.f32 %v3576, 0.0
        %v4089 = vmax.f32 %v3577, 0.0
        %v4090 = vmax.f32 %v3578, 0.0
        %v4091 = vmax.f32 %v3579, 0.0
        %v4092 = vmax.f32 %v3580, 0.0
        %v4093 = vmax.f32 %v3581, 0.0
        %v4094 = vmax.f32 %v3582, 0.0
        %v4095 = vmax.f32 %v3583, 0.0
        %v4096 = vmax.f32 %v3584, 0.0
        %v4097 = vmax.f32 %v3585, 0.0
        %v4098 = vmax.f32 %v3586, 0.0
        %v4099 = vmax.f32 %v3587, 0.0
        %v4100 = vmax.f32 %v3588, 0.0
        %v4101 = vmax.f32 %v3589, 0.0
        %v4102 = vmax.f32 %v3590, 0.0
        %v4103 = vmax.f32 %v3591, 0.0
        %v4104 = vmax.f32 %v3592, 0.0
        %v4105 = vmax.f32 %v3593, 0.0
        %v4106 = vmax.f32 %v3594, 0.0
        %v4107 = vmax.f32 %v3595, 0.0
        %v4108 = vmax.f32 %v3596, 0.0
        %v4109 = vmax.f32 %v3597, 0.0
        %v4110 = vmax.f32 %v3598, 0.0
        %v4111 = vmax.f32 %v3599, 0.0
        %v4112 = vld [vmem:[%s5] sm:$0xff]
        %v4113 = vld [vmem:[%s5 + $0x8] sm:$0xff]
        %v4114 = vld [vmem:[%s5 + $0x10] sm:$0xff]
        %v4115 = vld [vmem:[%s5 + $0x18] sm:$0xff]
        %v4120 = vcombine.high %v4112, %v4112
        %v4122 = vunpack.c.l.s4 1966171168
        %v4123 = vunpack.c.0.s8 %v4122
        %v4124 = vlaneseq
        %v4125 = vshrl.u32 %v4124, 7
        %v4126 = vsub.s32 %v4123, %v4125
        %v4127 = vrot.slane %v4112, %v4126
        %v4129 = vunpack.c.l.s4 1966171168
        %v4130 = vunpack.c.0.s8 %v4129
        %v4131 = vlaneseq
        %v4132 = vshrl.u32 %v4131, 7
        %v4133 = vsub.s32 %v4130, %v4132
        %v4134 = vrot.slane %v4120, %v4133
        %v4135 = vcombine.high %v4127, %v4127
        %v4136 = vcombine.high %v4134, %v4134
        %v4138 = vunpack.c.l.s4 1966171168
        %v4139 = vunpack.c.0.s8 %v4138
        %v4140 = vlaneseq
        %v4141 = vshrl.u32 %v4140, 7
        %v4142 = vsub.s32 %v4139, %v4141
        %v4143 = vrot.slane %v4127, %v4142
        %v4145 = vunpack.c.l.s4 1966171168
        %v4146 = vunpack.c.0.s8 %v4145
        %v4147 = vlaneseq
        %v4148 = vshrl.u32 %v4147, 7
        %v4149 = vsub.s32 %v4146, %v4148
        %v4150 = vrot.slane %v4134, %v4149
        %v4152 = vunpack.c.l.s4 1966171168
        %v4153 = vunpack.c.0.s8 %v4152
        %v4154 = vlaneseq
        %v4155 = vshrl.u32 %v4154, 7
        %v4156 = vsub.s32 %v4153, %v4155
        %v4157 = vrot.slane %v4135, %v4156
        %v4159 = vunpack.c.l.s4 1966171168
        %v4160 = vunpack.c.0.s8 %v4159
        %v4161 = vlaneseq
        %v4162 = vshrl.u32 %v4161, 7
        %v4163 = vsub.s32 %v4160, %v4162
        %v4164 = vrot.slane %v4136, %v4163
        %v4165 = vcombine.high %v4143, %v4143
        %v4166 = vcombine.high %v4150, %v4150
        %v4167 = vcombine.high %v4157, %v4157
        %v4168 = vcombine.high %v4164, %v4164
        %v4169 = vcombine.high %v4113, %v4113
        %v4171 = vunpack.c.l.s4 1966171168
        %v4172 = vunpack.c.0.s8 %v4171
        %v4173 = vlaneseq
        %v4174 = vshrl.u32 %v4173, 7
        %v4175 = vsub.s32 %v4172, %v4174
        %v4176 = vrot.slane %v4113, %v4175
        %v4178 = vunpack.c.l.s4 1966171168
        %v4179 = vunpack.c.0.s8 %v4178
        %v4180 = vlaneseq
        %v4181 = vshrl.u32 %v4180, 7
        %v4182 = vsub.s32 %v4179, %v4181
        %v4183 = vrot.slane %v4169, %v4182
        %v4184 = vcombine.high %v4176, %v4176
        %v4185 = vcombine.high %v4183, %v4183
        %v4187 = vunpack.c.l.s4 1966171168
        %v4188 = vunpack.c.0.s8 %v4187
        %v4189 = vlaneseq
        %v4190 = vshrl.u32 %v4189, 7
        %v4191 = vsub.s32 %v4188, %v4190
        %v4192 = vrot.slane %v4176, %v4191
        %v4194 = vunpack.c.l.s4 1966171168
        %v4195 = vunpack.c.0.s8 %v4194
        %v4196 = vlaneseq
        %v4197 = vshrl.u32 %v4196, 7
        %v4198 = vsub.s32 %v4195, %v4197
        %v4199 = vrot.slane %v4183, %v4198
        %v4201 = vunpack.c.l.s4 1966171168
        %v4202 = vunpack.c.0.s8 %v4201
        %v4203 = vlaneseq
        %v4204 = vshrl.u32 %v4203, 7
        %v4205 = vsub.s32 %v4202, %v4204
        %v4206 = vrot.slane %v4184, %v4205
        %v4208 = vunpack.c.l.s4 1966171168
        %v4209 = vunpack.c.0.s8 %v4208
        %v4210 = vlaneseq
        %v4211 = vshrl.u32 %v4210, 7
        %v4212 = vsub.s32 %v4209, %v4211
        %v4213 = vrot.slane %v4185, %v4212
        %v4214 = vcombine.high %v4192, %v4192
        %v4215 = vcombine.high %v4199, %v4199
        %v4216 = vcombine.high %v4206, %v4206
        %v4217 = vcombine.high %v4213, %v4213
        %v4218 = vcombine.high %v4114, %v4114
        %v4220 = vunpack.c.l.s4 1966171168
        %v4221 = vunpack.c.0.s8 %v4220
        %v4222 = vlaneseq
        %v4223 = vshrl.u32 %v4222, 7
        %v4224 = vsub.s32 %v4221, %v4223
        %v4225 = vrot.slane %v4114, %v4224
        %v4227 = vunpack.c.l.s4 1966171168
        %v4228 = vunpack.c.0.s8 %v4227
        %v4229 = vlaneseq
        %v4230 = vshrl.u32 %v4229, 7
        %v4231 = vsub.s32 %v4228, %v4230
        %v4232 = vrot.slane %v4218, %v4231
        %v4233 = vcombine.high %v4225, %v4225
        %v4234 = vcombine.high %v4232, %v4232
        %v4236 = vunpack.c.l.s4 1966171168
        %v4237 = vunpack.c.0.s8 %v4236
        %v4238 = vlaneseq
        %v4239 = vshrl.u32 %v4238, 7
        %v4240 = vsub.s32 %v4237, %v4239
        %v4241 = vrot.slane %v4225, %v4240
        %v4243 = vunpack.c.l.s4 1966171168
        %v4244 = vunpack.c.0.s8 %v4243
        %v4245 = vlaneseq
        %v4246 = vshrl.u32 %v4245, 7
        %v4247 = vsub.s32 %v4244, %v4246
        %v4248 = vrot.slane %v4232, %v4247
        %v4250 = vunpack.c.l.s4 1966171168
        %v4251 = vunpack.c.0.s8 %v4250
        %v4252 = vlaneseq
        %v4253 = vshrl.u32 %v4252, 7
        %v4254 = vsub.s32 %v4251, %v4253
        %v4255 = vrot.slane %v4233, %v4254
        %v4257 = vunpack.c.l.s4 1966171168
        %v4258 = vunpack.c.0.s8 %v4257
        %v4259 = vlaneseq
        %v4260 = vshrl.u32 %v4259, 7
        %v4261 = vsub.s32 %v4258, %v4260
        %v4262 = vrot.slane %v4234, %v4261
        %v4263 = vcombine.high %v4241, %v4241
        %v4264 = vcombine.high %v4248, %v4248
        %v4265 = vcombine.high %v4255, %v4255
        %v4266 = vcombine.high %v4262, %v4262
        %v4267 = vcombine.high %v4115, %v4115
        %v4269 = vunpack.c.l.s4 1966171168
        %v4270 = vunpack.c.0.s8 %v4269
        %v4271 = vlaneseq
        %v4272 = vshrl.u32 %v4271, 7
        %v4273 = vsub.s32 %v4270, %v4272
        %v4274 = vrot.slane %v4115, %v4273
        %v4276 = vunpack.c.l.s4 1966171168
        %v4277 = vunpack.c.0.s8 %v4276
        %v4278 = vlaneseq
        %v4279 = vshrl.u32 %v4278, 7
        %v4280 = vsub.s32 %v4277, %v4279
        %v4281 = vrot.slane %v4267, %v4280
        %v4282 = vcombine.high %v4274, %v4274
        %v4283 = vcombine.high %v4281, %v4281
        %v4285 = vunpack.c.l.s4 1966171168
        %v4286 = vunpack.c.0.s8 %v4285
        %v4287 = vlaneseq
        %v4288 = vshrl.u32 %v4287, 7
        %v4289 = vsub.s32 %v4286, %v4288
        %v4290 = vrot.slane %v4274, %v4289
        %v4292 = vunpack.c.l.s4 1966171168
        %v4293 = vunpack.c.0.s8 %v4292
        %v4294 = vlaneseq
        %v4295 = vshrl.u32 %v4294, 7
        %v4296 = vsub.s32 %v4293, %v4295
        %v4297 = vrot.slane %v4281, %v4296
        %v4299 = vunpack.c.l.s4 1966171168
        %v4300 = vunpack.c.0.s8 %v4299
        %v4301 = vlaneseq
        %v4302 = vshrl.u32 %v4301, 7
        %v4303 = vsub.s32 %v4300, %v4302
        %v4304 = vrot.slane %v4282, %v4303
        %v4306 = vunpack.c.l.s4 1966171168
        %v4307 = vunpack.c.0.s8 %v4306
        %v4308 = vlaneseq
        %v4309 = vshrl.u32 %v4308, 7
        %v4310 = vsub.s32 %v4307, %v4309
        %v4311 = vrot.slane %v4283, %v4310
        %v4312 = vcombine.high %v4290, %v4290
        %v4313 = vcombine.high %v4297, %v4297
        %v4314 = vcombine.high %v4304, %v4304
        %v4315 = vcombine.high %v4311, %v4311
        %v4316 = vlaneseq
        %v4317 = vshrl.u32 %v4316, 7
        %v4318 = vsub.s32 0, %v4317
        %v4319 = vrot.slane %v4143, %v4318
        %v4320 = vlaneseq
        %v4321 = vshrl.u32 %v4320, 7
        %v4322 = vsub.s32 0, %v4321
        %v4323 = vrot.slane %v4157, %v4322
        %v4324 = vlaneseq
        %v4325 = vshrl.u32 %v4324, 7
        %v4326 = vsub.s32 0, %v4325
        %v4327 = vrot.slane %v4165, %v4326
        %v4328 = vlaneseq
        %v4329 = vshrl.u32 %v4328, 7
        %v4330 = vsub.s32 0, %v4329
        %v4331 = vrot.slane %v4167, %v4330
        %v4332 = vlaneseq
        %v4333 = vshrl.u32 %v4332, 7
        %v4334 = vsub.s32 0, %v4333
        %v4335 = vrot.slane %v4150, %v4334
        %v4336 = vlaneseq
        %v4337 = vshrl.u32 %v4336, 7
        %v4338 = vsub.s32 0, %v4337
        %v4339 = vrot.slane %v4164, %v4338
        %v4340 = vlaneseq
        %v4341 = vshrl.u32 %v4340, 7
        %v4342 = vsub.s32 0, %v4341
        %v4343 = vrot.slane %v4166, %v4342
        %v4344 = vlaneseq
        %v4345 = vshrl.u32 %v4344, 7
        %v4346 = vsub.s32 0, %v4345
        %v4347 = vrot.slane %v4168, %v4346
        %v4348 = vlaneseq
        %v4349 = vshrl.u32 %v4348, 7
        %v4350 = vsub.s32 0, %v4349
        %v4351 = vrot.slane %v4192, %v4350
        %v4352 = vlaneseq
        %v4353 = vshrl.u32 %v4352, 7
        %v4354 = vsub.s32 0, %v4353
        %v4355 = vrot.slane %v4206, %v4354
        %v4356 = vlaneseq
        %v4357 = vshrl.u32 %v4356, 7
        %v4358 = vsub.s32 0, %v4357
        %v4359 = vrot.slane %v4214, %v4358
        %v4360 = vlaneseq
        %v4361 = vshrl.u32 %v4360, 7
        %v4362 = vsub.s32 0, %v4361
        %v4363 = vrot.slane %v4216, %v4362
        %v4364 = vlaneseq
        %v4365 = vshrl.u32 %v4364, 7
        %v4366 = vsub.s32 0, %v4365
        %v4367 = vrot.slane %v4199, %v4366
        %v4368 = vlaneseq
        %v4369 = vshrl.u32 %v4368, 7
        %v4370 = vsub.s32 0, %v4369
        %v4371 = vrot.slane %v4213, %v4370
        %v4372 = vlaneseq
        %v4373 = vshrl.u32 %v4372, 7
        %v4374 = vsub.s32 0, %v4373
        %v4375 = vrot.slane %v4215, %v4374
        %v4376 = vlaneseq
        %v4377 = vshrl.u32 %v4376, 7
        %v4378 = vsub.s32 0, %v4377
        %v4379 = vrot.slane %v4217, %v4378
        %v4380 = vlaneseq
        %v4381 = vshrl.u32 %v4380, 7
        %v4382 = vsub.s32 0, %v4381
        %v4383 = vrot.slane %v4241, %v4382
        %v4384 = vlaneseq
        %v4385 = vshrl.u32 %v4384, 7
        %v4386 = vsub.s32 0, %v4385
        %v4387 = vrot.slane %v4255, %v4386
        %v4388 = vlaneseq
        %v4389 = vshrl.u32 %v4388, 7
        %v4390 = vsub.s32 0, %v4389
        %v4391 = vrot.slane %v4263, %v4390
        %v4392 = vlaneseq
        %v4393 = vshrl.u32 %v4392, 7
        %v4394 = vsub.s32 0, %v4393
        %v4395 = vrot.slane %v4265, %v4394
        %v4396 = vlaneseq
        %v4397 = vshrl.u32 %v4396, 7
        %v4398 = vsub.s32 0, %v4397
        %v4399 = vrot.slane %v4248, %v4398
        %v4400 = vlaneseq
        %v4401 = vshrl.u32 %v4400, 7
        %v4402 = vsub.s32 0, %v4401
        %v4403 = vrot.slane %v4262, %v4402
        %v4404 = vlaneseq
        %v4405 = vshrl.u32 %v4404, 7
        %v4406 = vsub.s32 0, %v4405
        %v4407 = vrot.slane %v4264, %v4406
        %v4408 = vlaneseq
        %v4409 = vshrl.u32 %v4408, 7
        %v4410 = vsub.s32 0, %v4409
        %v4411 = vrot.slane %v4266, %v4410
        %v4412 = vlaneseq
        %v4413 = vshrl.u32 %v4412, 7
        %v4414 = vsub.s32 0, %v4413
        %v4415 = vrot.slane %v4290, %v4414
        %v4416 = vlaneseq
        %v4417 = vshrl.u32 %v4416, 7
        %v4418 = vsub.s32 0, %v4417
        %v4419 = vrot.slane %v4304, %v4418
        %v4420 = vlaneseq
        %v4421 = vshrl.u32 %v4420, 7
        %v4422 = vsub.s32 0, %v4421
        %v4423 = vrot.slane %v4312, %v4422
        %v4424 = vlaneseq
        %v4425 = vshrl.u32 %v4424, 7
        %v4426 = vsub.s32 0, %v4425
        %v4427 = vrot.slane %v4314, %v4426
        %v4428 = vlaneseq
        %v4429 = vshrl.u32 %v4428, 7
        %v4430 = vsub.s32 0, %v4429
        %v4431 = vrot.slane %v4297, %v4430
        %v4432 = vlaneseq
        %v4433 = vshrl.u32 %v4432, 7
        %v4434 = vsub.s32 0, %v4433
        %v4435 = vrot.slane %v4311, %v4434
        %v4436 = vlaneseq
        %v4437 = vshrl.u32 %v4436, 7
        %v4438 = vsub.s32 0, %v4437
        %v4439 = vrot.slane %v4313, %v4438
        %v4440 = vlaneseq
        %v4441 = vshrl.u32 %v4440, 7
        %v4442 = vsub.s32 0, %v4441
        %v4443 = vrot.slane %v4315, %v4442
        %4444 = vset.pattern.permute.xlu0 0
        %4445 = vperm.xlu0 %4444, %v4319
        %v4446 = vpop.permute.xlu0 %4445
        %4448 = vset.pattern.permute.xlu0 0
        %4449 = vperm.xlu0 %4448, %v4323
        %v4450 = vpop.permute.xlu0 %4449
        %4452 = vset.pattern.permute.xlu0 0
        %4453 = vperm.xlu0 %4452, %v4327
        %v4454 = vpop.permute.xlu0 %4453
        %4456 = vset.pattern.permute.xlu0 0
        %4457 = vperm.xlu0 %4456, %v4331
        %v4458 = vpop.permute.xlu0 %4457
        %4460 = vset.pattern.permute.xlu0 0
        %4461 = vperm.xlu0 %4460, %v4335
        %v4462 = vpop.permute.xlu0 %4461
        %4464 = vset.pattern.permute.xlu0 0
        %4465 = vperm.xlu0 %4464, %v4339
        %v4466 = vpop.permute.xlu0 %4465
        %4468 = vset.pattern.permute.xlu0 0
        %4469 = vperm.xlu0 %4468, %v4343
        %v4470 = vpop.permute.xlu0 %4469
        %4472 = vset.pattern.permute.xlu0 0
        %4473 = vperm.xlu0 %4472, %v4347
        %v4474 = vpop.permute.xlu0 %4473
        %4476 = vset.pattern.permute.xlu0 0
        %4477 = vperm.xlu0 %4476, %v4351
        %v4478 = vpop.permute.xlu0 %4477
        %4480 = vset.pattern.permute.xlu0 0
        %4481 = vperm.xlu0 %4480, %v4355
        %v4482 = vpop.permute.xlu0 %4481
        %4484 = vset.pattern.permute.xlu0 0
        %4485 = vperm.xlu0 %4484, %v4359
        %v4486 = vpop.permute.xlu0 %4485
        %4488 = vset.pattern.permute.xlu0 0
        %4489 = vperm.xlu0 %4488, %v4363
        %v4490 = vpop.permute.xlu0 %4489
        %4492 = vset.pattern.permute.xlu0 0
        %4493 = vperm.xlu0 %4492, %v4367
        %v4494 = vpop.permute.xlu0 %4493
        %4496 = vset.pattern.permute.xlu0 0
        %4497 = vperm.xlu0 %4496, %v4371
        %v4498 = vpop.permute.xlu0 %4497
        %4500 = vset.pattern.permute.xlu0 0
        %4501 = vperm.xlu0 %4500, %v4375
        %v4502 = vpop.permute.xlu0 %4501
        %4504 = vset.pattern.permute.xlu0 0
        %4505 = vperm.xlu0 %4504, %v4379
        %v4506 = vpop.permute.xlu0 %4505
        %4508 = vset.pattern.permute.xlu0 0
        %4509 = vperm.xlu0 %4508, %v4383
        %v4510 = vpop.permute.xlu0 %4509
        %4512 = vset.pattern.permute.xlu0 0
        %4513 = vperm.xlu0 %4512, %v4387
        %v4514 = vpop.permute.xlu0 %4513
        %4516 = vset.pattern.permute.xlu0 0
        %4517 = vperm.xlu0 %4516, %v4391
        %v4518 = vpop.permute.xlu0 %4517
        %4520 = vset.pattern.permute.xlu0 0
        %4521 = vperm.xlu0 %4520, %v4395
        %v4522 = vpop.permute.xlu0 %4521
        %4524 = vset.pattern.permute.xlu0 0
        %4525 = vperm.xlu0 %4524, %v4399
        %v4526 = vpop.permute.xlu0 %4525
        %4528 = vset.pattern.permute.xlu0 0
        %4529 = vperm.xlu0 %4528, %v4403
        %v4530 = vpop.permute.xlu0 %4529
        %4532 = vset.pattern.permute.xlu0 0
        %4533 = vperm.xlu0 %4532, %v4407
        %v4534 = vpop.permute.xlu0 %4533
        %4536 = vset.pattern.permute.xlu0 0
        %4537 = vperm.xlu0 %4536, %v4411
        %v4538 = vpop.permute.xlu0 %4537
        %4540 = vset.pattern.permute.xlu0 0
        %4541 = vperm.xlu0 %4540, %v4415
        %v4542 = vpop.permute.xlu0 %4541
        %4544 = vset.pattern.permute.xlu0 0
        %4545 = vperm.xlu0 %4544, %v4419
        %v4546 = vpop.permute.xlu0 %4545
        %4548 = vset.pattern.permute.xlu0 0
        %4549 = vperm.xlu0 %4548, %v4423
        %v4550 = vpop.permute.xlu0 %4549
        %4552 = vset.pattern.permute.xlu0 0
        %4553 = vperm.xlu0 %4552, %v4427
        %v4554 = vpop.permute.xlu0 %4553
        %4556 = vset.pattern.permute.xlu0 0
        %4557 = vperm.xlu0 %4556, %v4431
        %v4558 = vpop.permute.xlu0 %4557
        %4560 = vset.pattern.permute.xlu0 0
        %4561 = vperm.xlu0 %4560, %v4435
        %v4562 = vpop.permute.xlu0 %4561
        %4564 = vset.pattern.permute.xlu0 0
        %4565 = vperm.xlu0 %4564, %v4439
        %v4566 = vpop.permute.xlu0 %4565
        %4568 = vset.pattern.permute.xlu0 0
        %4569 = vperm.xlu0 %4568, %v4443
        %v4570 = vpop.permute.xlu0 %4569
        %v4572 = vmul.f32 %v3600, %v4446
        %v4573 = vmul.f32 %v3601, %v4446
        %v4574 = vmul.f32 %v3602, %v4446
        %v4575 = vmul.f32 %v3603, %v4446
        %v4576 = vmul.f32 %v3604, %v4446
        %v4577 = vmul.f32 %v3605, %v4446
        %v4578 = vmul.f32 %v3606, %v4446
        %v4579 = vmul.f32 %v3607, %v4446
        %v4580 = vmul.f32 %v3608, %v4446
        %v4581 = vmul.f32 %v3609, %v4446
        %v4582 = vmul.f32 %v3610, %v4446
        %v4583 = vmul.f32 %v3611, %v4446
        %v4584 = vmul.f32 %v3612, %v4446
        %v4585 = vmul.f32 %v3613, %v4446
        %v4586 = vmul.f32 %v3614, %v4446
        %v4587 = vmul.f32 %v3615, %v4446
        %v4588 = vmul.f32 %v3616, %v4450
        %v4589 = vmul.f32 %v3617, %v4450
        %v4590 = vmul.f32 %v3618, %v4450
        %v4591 = vmul.f32 %v3619, %v4450
        %v4592 = vmul.f32 %v3620, %v4450
        %v4593 = vmul.f32 %v3621, %v4450
        %v4594 = vmul.f32 %v3622, %v4450
        %v4595 = vmul.f32 %v3623, %v4450
        %v4596 = vmul.f32 %v3624, %v4450
        %v4597 = vmul.f32 %v3625, %v4450
        %v4598 = vmul.f32 %v3626, %v4450
        %v4599 = vmul.f32 %v3627, %v4450
        %v4600 = vmul.f32 %v3628, %v4450
        %v4601 = vmul.f32 %v3629, %v4450
        %v4602 = vmul.f32 %v3630, %v4450
        %v4603 = vmul.f32 %v3631, %v4450
        %v4604 = vmul.f32 %v3632, %v4454
        %v4605 = vmul.f32 %v3633, %v4454
        %v4606 = vmul.f32 %v3634, %v4454
        %v4607 = vmul.f32 %v3635, %v4454
        %v4608 = vmul.f32 %v3636, %v4454
        %v4609 = vmul.f32 %v3637, %v4454
        %v4610 = vmul.f32 %v3638, %v4454
        %v4611 = vmul.f32 %v3639, %v4454
        %v4612 = vmul.f32 %v3640, %v4454
        %v4613 = vmul.f32 %v3641, %v4454
        %v4614 = vmul.f32 %v3642, %v4454
        %v4615 = vmul.f32 %v3643, %v4454
        %v4616 = vmul.f32 %v3644, %v4454
        %v4617 = vmul.f32 %v3645, %v4454
        %v4618 = vmul.f32 %v3646, %v4454
        %v4619 = vmul.f32 %v3647, %v4454
        %v4620 = vmul.f32 %v3648, %v4458
        %v4621 = vmul.f32 %v3649, %v4458
        %v4622 = vmul.f32 %v3650, %v4458
        %v4623 = vmul.f32 %v3651, %v4458
        %v4624 = vmul.f32 %v3652, %v4458
        %v4625 = vmul.f32 %v3653, %v4458
        %v4626 = vmul.f32 %v3654, %v4458
        %v4627 = vmul.f32 %v3655, %v4458
        %v4628 = vmul.f32 %v3656, %v4458
        %v4629 = vmul.f32 %v3657, %v4458
        %v4630 = vmul.f32 %v3658, %v4458
        %v4631 = vmul.f32 %v3659, %v4458
        %v4632 = vmul.f32 %v3660, %v4458
        %v4633 = vmul.f32 %v3661, %v4458
        %v4634 = vmul.f32 %v3662, %v4458
        %v4635 = vmul.f32 %v3663, %v4458
        %v4636 = vmul.f32 %v3664, %v4462
        %v4637 = vmul.f32 %v3665, %v4462
        %v4638 = vmul.f32 %v3666, %v4462
        %v4639 = vmul.f32 %v3667, %v4462
        %v4640 = vmul.f32 %v3668, %v4462
        %v4641 = vmul.f32 %v3669, %v4462
        %v4642 = vmul.f32 %v3670, %v4462
        %v4643 = vmul.f32 %v3671, %v4462
        %v4644 = vmul.f32 %v3672, %v4462
        %v4645 = vmul.f32 %v3673, %v4462
        %v4646 = vmul.f32 %v3674, %v4462
        %v4647 = vmul.f32 %v3675, %v4462
        %v4648 = vmul.f32 %v3676, %v4462
        %v4649 = vmul.f32 %v3677, %v4462
        %v4650 = vmul.f32 %v3678, %v4462
        %v4651 = vmul.f32 %v3679, %v4462
        %v4652 = vmul.f32 %v3680, %v4466
        %v4653 = vmul.f32 %v3681, %v4466
        %v4654 = vmul.f32 %v3682, %v4466
        %v4655 = vmul.f32 %v3683, %v4466
        %v4656 = vmul.f32 %v3684, %v4466
        %v4657 = vmul.f32 %v3685, %v4466
        %v4658 = vmul.f32 %v3686, %v4466
        %v4659 = vmul.f32 %v3687, %v4466
        %v4660 = vmul.f32 %v3688, %v4466
        %v4661 = vmul.f32 %v3689, %v4466
        %v4662 = vmul.f32 %v3690, %v4466
        %v4663 = vmul.f32 %v3691, %v4466
        %v4664 = vmul.f32 %v3692, %v4466
        %v4665 = vmul.f32 %v3693, %v4466
        %v4666 = vmul.f32 %v3694, %v4466
        %v4667 = vmul.f32 %v3695, %v4466
        %v4668 = vmul.f32 %v3696, %v4470
        %v4669 = vmul.f32 %v3697, %v4470
        %v4670 = vmul.f32 %v3698, %v4470
        %v4671 = vmul.f32 %v3699, %v4470
        %v4672 = vmul.f32 %v3700, %v4470
        %v4673 = vmul.f32 %v3701, %v4470
        %v4674 = vmul.f32 %v3702, %v4470
        %v4675 = vmul.f32 %v3703, %v4470
        %v4676 = vmul.f32 %v3704, %v4470
        %v4677 = vmul.f32 %v3705, %v4470
        %v4678 = vmul.f32 %v3706, %v4470
        %v4679 = vmul.f32 %v3707, %v4470
        %v4680 = vmul.f32 %v3708, %v4470
        %v4681 = vmul.f32 %v3709, %v4470
        %v4682 = vmul.f32 %v3710, %v4470
        %v4683 = vmul.f32 %v3711, %v4470
        %v4684 = vmul.f32 %v3712, %v4474
        %v4685 = vmul.f32 %v3713, %v4474
        %v4686 = vmul.f32 %v3714, %v4474
        %v4687 = vmul.f32 %v3715, %v4474
        %v4688 = vmul.f32 %v3716, %v4474
        %v4689 = vmul.f32 %v3717, %v4474
        %v4690 = vmul.f32 %v3718, %v4474
        %v4691 = vmul.f32 %v3719, %v4474
        %v4692 = vmul.f32 %v3720, %v4474
        %v4693 = vmul.f32 %v3721, %v4474
        %v4694 = vmul.f32 %v3722, %v4474
        %v4695 = vmul.f32 %v3723, %v4474
        %v4696 = vmul.f32 %v3724, %v4474
        %v4697 = vmul.f32 %v3725, %v4474
        %v4698 = vmul.f32 %v3726, %v4474
        %v4699 = vmul.f32 %v3727, %v4474
        %v4700 = vmul.f32 %v3728, %v4478
        %v4701 = vmul.f32 %v3729, %v4478
        %v4702 = vmul.f32 %v3730, %v4478
        %v4703 = vmul.f32 %v3731, %v4478
        %v4704 = vmul.f32 %v3732, %v4478
        %v4705 = vmul.f32 %v3733, %v4478
        %v4706 = vmul.f32 %v3734, %v4478
        %v4707 = vmul.f32 %v3735, %v4478
        %v4708 = vmul.f32 %v3736, %v4478
        %v4709 = vmul.f32 %v3737, %v4478
        %v4710 = vmul.f32 %v3738, %v4478
        %v4711 = vmul.f32 %v3739, %v4478
        %v4712 = vmul.f32 %v3740, %v4478
        %v4713 = vmul.f32 %v3741, %v4478
        %v4714 = vmul.f32 %v3742, %v4478
        %v4715 = vmul.f32 %v3743, %v4478
        %v4716 = vmul.f32 %v3744, %v4482
        %v4717 = vmul.f32 %v3745, %v4482
        %v4718 = vmul.f32 %v3746, %v4482
        %v4719 = vmul.f32 %v3747, %v4482
        %v4720 = vmul.f32 %v3748, %v4482
        %v4721 = vmul.f32 %v3749, %v4482
        %v4722 = vmul.f32 %v3750, %v4482
        %v4723 = vmul.f32 %v3751, %v4482
        %v4724 = vmul.f32 %v3752, %v4482
        %v4725 = vmul.f32 %v3753, %v4482
        %v4726 = vmul.f32 %v3754, %v4482
        %v4727 = vmul.f32 %v3755, %v4482
        %v4728 = vmul.f32 %v3756, %v4482
        %v4729 = vmul.f32 %v3757, %v4482
        %v4730 = vmul.f32 %v3758, %v4482
        %v4731 = vmul.f32 %v3759, %v4482
        %v4732 = vmul.f32 %v3760, %v4486
        %v4733 = vmul.f32 %v3761, %v4486
        %v4734 = vmul.f32 %v3762, %v4486
        %v4735 = vmul.f32 %v3763, %v4486
        %v4736 = vmul.f32 %v3764, %v4486
        %v4737 = vmul.f32 %v3765, %v4486
        %v4738 = vmul.f32 %v3766, %v4486
        %v4739 = vmul.f32 %v3767, %v4486
        %v4740 = vmul.f32 %v3768, %v4486
        %v4741 = vmul.f32 %v3769, %v4486
        %v4742 = vmul.f32 %v3770, %v4486
        %v4743 = vmul.f32 %v3771, %v4486
        %v4744 = vmul.f32 %v3772, %v4486
        %v4745 = vmul.f32 %v3773, %v4486
        %v4746 = vmul.f32 %v3774, %v4486
        %v4747 = vmul.f32 %v3775, %v4486
        %v4748 = vmul.f32 %v3776, %v4490
        %v4749 = vmul.f32 %v3777, %v4490
        %v4750 = vmul.f32 %v3778, %v4490
        %v4751 = vmul.f32 %v3779, %v4490
        %v4752 = vmul.f32 %v3780, %v4490
        %v4753 = vmul.f32 %v3781, %v4490
        %v4754 = vmul.f32 %v3782, %v4490
        %v4755 = vmul.f32 %v3783, %v4490
        %v4756 = vmul.f32 %v3784, %v4490
        %v4757 = vmul.f32 %v3785, %v4490
        %v4758 = vmul.f32 %v3786, %v4490
        %v4759 = vmul.f32 %v3787, %v4490
        %v4760 = vmul.f32 %v3788, %v4490
        %v4761 = vmul.f32 %v3789, %v4490
        %v4762 = vmul.f32 %v3790, %v4490
        %v4763 = vmul.f32 %v3791, %v4490
        %v4764 = vmul.f32 %v3792, %v4494
        %v4765 = vmul.f32 %v3793, %v4494
        %v4766 = vmul.f32 %v3794, %v4494
        %v4767 = vmul.f32 %v3795, %v4494
        %v4768 = vmul.f32 %v3796, %v4494
        %v4769 = vmul.f32 %v3797, %v4494
        %v4770 = vmul.f32 %v3798, %v4494
        %v4771 = vmul.f32 %v3799, %v4494
        %v4772 = vmul.f32 %v3800, %v4494
        %v4773 = vmul.f32 %v3801, %v4494
        %v4774 = vmul.f32 %v3802, %v4494
        %v4775 = vmul.f32 %v3803, %v4494
        %v4776 = vmul.f32 %v3804, %v4494
        %v4777 = vmul.f32 %v3805, %v4494
        %v4778 = vmul.f32 %v3806, %v4494
        %v4779 = vmul.f32 %v3807, %v4494
        %v4780 = vmul.f32 %v3808, %v4498
        %v4781 = vmul.f32 %v3809, %v4498
        %v4782 = vmul.f32 %v3810, %v4498
        %v4783 = vmul.f32 %v3811, %v4498
        %v4784 = vmul.f32 %v3812, %v4498
        %v4785 = vmul.f32 %v3813, %v4498
        %v4786 = vmul.f32 %v3814, %v4498
        %v4787 = vmul.f32 %v3815, %v4498
        %v4788 = vmul.f32 %v3816, %v4498
        %v4789 = vmul.f32 %v3817, %v4498
        %v4790 = vmul.f32 %v3818, %v4498
        %v4791 = vmul.f32 %v3819, %v4498
        %v4792 = vmul.f32 %v3820, %v4498
        %v4793 = vmul.f32 %v3821, %v4498
        %v4794 = vmul.f32 %v3822, %v4498
        %v4795 = vmul.f32 %v3823, %v4498
        %v4796 = vmul.f32 %v3824, %v4502
        %v4797 = vmul.f32 %v3825, %v4502
        %v4798 = vmul.f32 %v3826, %v4502
        %v4799 = vmul.f32 %v3827, %v4502
        %v4800 = vmul.f32 %v3828, %v4502
        %v4801 = vmul.f32 %v3829, %v4502
        %v4802 = vmul.f32 %v3830, %v4502
        %v4803 = vmul.f32 %v3831, %v4502
        %v4804 = vmul.f32 %v3832, %v4502
        %v4805 = vmul.f32 %v3833, %v4502
        %v4806 = vmul.f32 %v3834, %v4502
        %v4807 = vmul.f32 %v3835, %v4502
        %v4808 = vmul.f32 %v3836, %v4502
        %v4809 = vmul.f32 %v3837, %v4502
        %v4810 = vmul.f32 %v3838, %v4502
        %v4811 = vmul.f32 %v3839, %v4502
        %v4812 = vmul.f32 %v3840, %v4506
        %v4813 = vmul.f32 %v3841, %v4506
        %v4814 = vmul.f32 %v3842, %v4506
        %v4815 = vmul.f32 %v3843, %v4506
        %v4816 = vmul.f32 %v3844, %v4506
        %v4817 = vmul.f32 %v3845, %v4506
        %v4818 = vmul.f32 %v3846, %v4506
        %v4819 = vmul.f32 %v3847, %v4506
        %v4820 = vmul.f32 %v3848, %v4506
        %v4821 = vmul.f32 %v3849, %v4506
        %v4822 = vmul.f32 %v3850, %v4506
        %v4823 = vmul.f32 %v3851, %v4506
        %v4824 = vmul.f32 %v3852, %v4506
        %v4825 = vmul.f32 %v3853, %v4506
        %v4826 = vmul.f32 %v3854, %v4506
        %v4827 = vmul.f32 %v3855, %v4506
        %v4828 = vmul.f32 %v3856, %v4510
        %v4829 = vmul.f32 %v3857, %v4510
        %v4830 = vmul.f32 %v3858, %v4510
        %v4831 = vmul.f32 %v3859, %v4510
        %v4832 = vmul.f32 %v3860, %v4510
        %v4833 = vmul.f32 %v3861, %v4510
        %v4834 = vmul.f32 %v3862, %v4510
        %v4835 = vmul.f32 %v3863, %v4510
        %v4836 = vmul.f32 %v3864, %v4510
        %v4837 = vmul.f32 %v3865, %v4510
        %v4838 = vmul.f32 %v3866, %v4510
        %v4839 = vmul.f32 %v3867, %v4510
        %v4840 = vmul.f32 %v3868, %v4510
        %v4841 = vmul.f32 %v3869, %v4510
        %v4842 = vmul.f32 %v3870, %v4510
        %v4843 = vmul.f32 %v3871, %v4510
        %v4844 = vmul.f32 %v3872, %v4514
        %v4845 = vmul.f32 %v3873, %v4514
        %v4846 = vmul.f32 %v3874, %v4514
        %v4847 = vmul.f32 %v3875, %v4514
        %v4848 = vmul.f32 %v3876, %v4514
        %v4849 = vmul.f32 %v3877, %v4514
        %v4850 = vmul.f32 %v3878, %v4514
        %v4851 = vmul.f32 %v3879, %v4514
        %v4852 = vmul.f32 %v3880, %v4514
        %v4853 = vmul.f32 %v3881, %v4514
        %v4854 = vmul.f32 %v3882, %v4514
        %v4855 = vmul.f32 %v3883, %v4514
        %v4856 = vmul.f32 %v3884, %v4514
        %v4857 = vmul.f32 %v3885, %v4514
        %v4858 = vmul.f32 %v3886, %v4514
        %v4859 = vmul.f32 %v3887, %v4514
        %v4860 = vmul.f32 %v3888, %v4518
        %v4861 = vmul.f32 %v3889, %v4518
        %v4862 = vmul.f32 %v3890, %v4518
        %v4863 = vmul.f32 %v3891, %v4518
        %v4864 = vmul.f32 %v3892, %v4518
        %v4865 = vmul.f32 %v3893, %v4518
        %v4866 = vmul.f32 %v3894, %v4518
        %v4867 = vmul.f32 %v3895, %v4518
        %v4868 = vmul.f32 %v3896, %v4518
        %v4869 = vmul.f32 %v3897, %v4518
        %v4870 = vmul.f32 %v3898, %v4518
        %v4871 = vmul.f32 %v3899, %v4518
        %v4872 = vmul.f32 %v3900, %v4518
        %v4873 = vmul.f32 %v3901, %v4518
        %v4874 = vmul.f32 %v3902, %v4518
        %v4875 = vmul.f32 %v3903, %v4518
        %v4876 = vmul.f32 %v3904, %v4522
        %v4877 = vmul.f32 %v3905, %v4522
        %v4878 = vmul.f32 %v3906, %v4522
        %v4879 = vmul.f32 %v3907, %v4522
        %v4880 = vmul.f32 %v3908, %v4522
        %v4881 = vmul.f32 %v3909, %v4522
        %v4882 = vmul.f32 %v3910, %v4522
        %v4883 = vmul.f32 %v3911, %v4522
        %v4884 = vmul.f32 %v3912, %v4522
        %v4885 = vmul.f32 %v3913, %v4522
        %v4886 = vmul.f32 %v3914, %v4522
        %v4887 = vmul.f32 %v3915, %v4522
        %v4888 = vmul.f32 %v3916, %v4522
        %v4889 = vmul.f32 %v3917, %v4522
        %v4890 = vmul.f32 %v3918, %v4522
        %v4891 = vmul.f32 %v3919, %v4522
        %v4892 = vmul.f32 %v3920, %v4526
        %v4893 = vmul.f32 %v3921, %v4526
        %v4894 = vmul.f32 %v3922, %v4526
        %v4895 = vmul.f32 %v3923, %v4526
        %v4896 = vmul.f32 %v3924, %v4526
        %v4897 = vmul.f32 %v3925, %v4526
        %v4898 = vmul.f32 %v3926, %v4526
        %v4899 = vmul.f32 %v3927, %v4526
        %v4900 = vmul.f32 %v3928, %v4526
        %v4901 = vmul.f32 %v3929, %v4526
        %v4902 = vmul.f32 %v3930, %v4526
        %v4903 = vmul.f32 %v3931, %v4526
        %v4904 = vmul.f32 %v3932, %v4526
        %v4905 = vmul.f32 %v3933, %v4526
        %v4906 = vmul.f32 %v3934, %v4526
        %v4907 = vmul.f32 %v3935, %v4526
        %v4908 = vmul.f32 %v3936, %v4530
        %v4909 = vmul.f32 %v3937, %v4530
        %v4910 = vmul.f32 %v3938, %v4530
        %v4911 = vmul.f32 %v3939, %v4530
        %v4912 = vmul.f32 %v3940, %v4530
        %v4913 = vmul.f32 %v3941, %v4530
        %v4914 = vmul.f32 %v3942, %v4530
        %v4915 = vmul.f32 %v3943, %v4530
        %v4916 = vmul.f32 %v3944, %v4530
        %v4917 = vmul.f32 %v3945, %v4530
        %v4918 = vmul.f32 %v3946, %v4530
        %v4919 = vmul.f32 %v3947, %v4530
        %v4920 = vmul.f32 %v3948, %v4530
        %v4921 = vmul.f32 %v3949, %v4530
        %v4922 = vmul.f32 %v3950, %v4530
        %v4923 = vmul.f32 %v3951, %v4530
        %v4924 = vmul.f32 %v3952, %v4534
        %v4925 = vmul.f32 %v3953, %v4534
        %v4926 = vmul.f32 %v3954, %v4534
        %v4927 = vmul.f32 %v3955, %v4534
        %v4928 = vmul.f32 %v3956, %v4534
        %v4929 = vmul.f32 %v3957, %v4534
        %v4930 = vmul.f32 %v3958, %v4534
        %v4931 = vmul.f32 %v3959, %v4534
        %v4932 = vmul.f32 %v3960, %v4534
        %v4933 = vmul.f32 %v3961, %v4534
        %v4934 = vmul.f32 %v3962, %v4534
        %v4935 = vmul.f32 %v3963, %v4534
        %v4936 = vmul.f32 %v3964, %v4534
        %v4937 = vmul.f32 %v3965, %v4534
        %v4938 = vmul.f32 %v3966, %v4534
        %v4939 = vmul.f32 %v3967, %v4534
        %v4940 = vmul.f32 %v3968, %v4538
        %v4941 = vmul.f32 %v3969, %v4538
        %v4942 = vmul.f32 %v3970, %v4538
        %v4943 = vmul.f32 %v3971, %v4538
        %v4944 = vmul.f32 %v3972, %v4538
        %v4945 = vmul.f32 %v3973, %v4538
        %v4946 = vmul.f32 %v3974, %v4538
        %v4947 = vmul.f32 %v3975, %v4538
        %v4948 = vmul.f32 %v3976, %v4538
        %v4949 = vmul.f32 %v3977, %v4538
        %v4950 = vmul.f32 %v3978, %v4538
        %v4951 = vmul.f32 %v3979, %v4538
        %v4952 = vmul.f32 %v3980, %v4538
        %v4953 = vmul.f32 %v3981, %v4538
        %v4954 = vmul.f32 %v3982, %v4538
        %v4955 = vmul.f32 %v3983, %v4538
        %v4956 = vmul.f32 %v3984, %v4542
        %v4957 = vmul.f32 %v3985, %v4542
        %v4958 = vmul.f32 %v3986, %v4542
        %v4959 = vmul.f32 %v3987, %v4542
        %v4960 = vmul.f32 %v3988, %v4542
        %v4961 = vmul.f32 %v3989, %v4542
        %v4962 = vmul.f32 %v3990, %v4542
        %v4963 = vmul.f32 %v3991, %v4542
        %v4964 = vmul.f32 %v3992, %v4542
        %v4965 = vmul.f32 %v3993, %v4542
        %v4966 = vmul.f32 %v3994, %v4542
        %v4967 = vmul.f32 %v3995, %v4542
        %v4968 = vmul.f32 %v3996, %v4542
        %v4969 = vmul.f32 %v3997, %v4542
        %v4970 = vmul.f32 %v3998, %v4542
        %v4971 = vmul.f32 %v3999, %v4542
        %v4972 = vmul.f32 %v4000, %v4546
        %v4973 = vmul.f32 %v4001, %v4546
        %v4974 = vmul.f32 %v4002, %v4546
        %v4975 = vmul.f32 %v4003, %v4546
        %v4976 = vmul.f32 %v4004, %v4546
        %v4977 = vmul.f32 %v4005, %v4546
        %v4978 = vmul.f32 %v4006, %v4546
        %v4979 = vmul.f32 %v4007, %v4546
        %v4980 = vmul.f32 %v4008, %v4546
        %v4981 = vmul.f32 %v4009, %v4546
        %v4982 = vmul.f32 %v4010, %v4546
        %v4983 = vmul.f32 %v4011, %v4546
        %v4984 = vmul.f32 %v4012, %v4546
        %v4985 = vmul.f32 %v4013, %v4546
        %v4986 = vmul.f32 %v4014, %v4546
        %v4987 = vmul.f32 %v4015, %v4546
        %v4988 = vmul.f32 %v4016, %v4550
        %v4989 = vmul.f32 %v4017, %v4550
        %v4990 = vmul.f32 %v4018, %v4550
        %v4991 = vmul.f32 %v4019, %v4550
        %v4992 = vmul.f32 %v4020, %v4550
        %v4993 = vmul.f32 %v4021, %v4550
        %v4994 = vmul.f32 %v4022, %v4550
        %v4995 = vmul.f32 %v4023, %v4550
        %v4996 = vmul.f32 %v4024, %v4550
        %v4997 = vmul.f32 %v4025, %v4550
        %v4998 = vmul.f32 %v4026, %v4550
        %v4999 = vmul.f32 %v4027, %v4550
        %v5000 = vmul.f32 %v4028, %v4550
        %v5001 = vmul.f32 %v4029, %v4550
        %v5002 = vmul.f32 %v4030, %v4550
        %v5003 = vmul.f32 %v4031, %v4550
        %v5004 = vmul.f32 %v4032, %v4554
        %v5005 = vmul.f32 %v4033, %v4554
        %v5006 = vmul.f32 %v4034, %v4554
        %v5007 = vmul.f32 %v4035, %v4554
        %v5008 = vmul.f32 %v4036, %v4554
        %v5009 = vmul.f32 %v4037, %v4554
        %v5010 = vmul.f32 %v4038, %v4554
        %v5011 = vmul.f32 %v4039, %v4554
        %v5012 = vmul.f32 %v4040, %v4554
        %v5013 = vmul.f32 %v4041, %v4554
        %v5014 = vmul.f32 %v4042, %v4554
        %v5015 = vmul.f32 %v4043, %v4554
        %v5016 = vmul.f32 %v4044, %v4554
        %v5017 = vmul.f32 %v4045, %v4554
        %v5018 = vmul.f32 %v4046, %v4554
        %v5019 = vmul.f32 %v4047, %v4554
        %v5020 = vmul.f32 %v4048, %v4558
        %v5021 = vmul.f32 %v4049, %v4558
        %v5022 = vmul.f32 %v4050, %v4558
        %v5023 = vmul.f32 %v4051, %v4558
        %v5024 = vmul.f32 %v4052, %v4558
        %v5025 = vmul.f32 %v4053, %v4558
        %v5026 = vmul.f32 %v4054, %v4558
        %v5027 = vmul.f32 %v4055, %v4558
        %v5028 = vmul.f32 %v4056, %v4558
        %v5029 = vmul.f32 %v4057, %v4558
        %v5030 = vmul.f32 %v4058, %v4558
        %v5031 = vmul.f32 %v4059, %v4558
        %v5032 = vmul.f32 %v4060, %v4558
        %v5033 = vmul.f32 %v4061, %v4558
        %v5034 = vmul.f32 %v4062, %v4558
        %v5035 = vmul.f32 %v4063, %v4558
        %v5036 = vmul.f32 %v4064, %v4562
        %v5037 = vmul.f32 %v4065, %v4562
        %v5038 = vmul.f32 %v4066, %v4562
        %v5039 = vmul.f32 %v4067, %v4562
        %v5040 = vmul.f32 %v4068, %v4562
        %v5041 = vmul.f32 %v4069, %v4562
        %v5042 = vmul.f32 %v4070, %v4562
        %v5043 = vmul.f32 %v4071, %v4562
        %v5044 = vmul.f32 %v4072, %v4562
        %v5045 = vmul.f32 %v4073, %v4562
        %v5046 = vmul.f32 %v4074, %v4562
        %v5047 = vmul.f32 %v4075, %v4562
        %v5048 = vmul.f32 %v4076, %v4562
        %v5049 = vmul.f32 %v4077, %v4562
        %v5050 = vmul.f32 %v4078, %v4562
        %v5051 = vmul.f32 %v4079, %v4562
        %v5052 = vmul.f32 %v4080, %v4566
        %v5053 = vmul.f32 %v4081, %v4566
        %v5054 = vmul.f32 %v4082, %v4566
        %v5055 = vmul.f32 %v4083, %v4566
        %v5056 = vmul.f32 %v4084, %v4566
        %v5057 = vmul.f32 %v4085, %v4566
        %v5058 = vmul.f32 %v4086, %v4566
        %v5059 = vmul.f32 %v4087, %v4566
        %v5060 = vmul.f32 %v4088, %v4566
        %v5061 = vmul.f32 %v4089, %v4566
        %v5062 = vmul.f32 %v4090, %v4566
        %v5063 = vmul.f32 %v4091, %v4566
        %v5064 = vmul.f32 %v4092, %v4566
        %v5065 = vmul.f32 %v4093, %v4566
        %v5066 = vmul.f32 %v4094, %v4566
        %v5067 = vmul.f32 %v4095, %v4566
        %v5068 = vmul.f32 %v4096, %v4570
        %v5069 = vmul.f32 %v4097, %v4570
        %v5070 = vmul.f32 %v4098, %v4570
        %v5071 = vmul.f32 %v4099, %v4570
        %v5072 = vmul.f32 %v4100, %v4570
        %v5073 = vmul.f32 %v4101, %v4570
        %v5074 = vmul.f32 %v4102, %v4570
        %v5075 = vmul.f32 %v4103, %v4570
        %v5076 = vmul.f32 %v4104, %v4570
        %v5077 = vmul.f32 %v4105, %v4570
        %v5078 = vmul.f32 %v4106, %v4570
        %v5079 = vmul.f32 %v4107, %v4570
        %v5080 = vmul.f32 %v4108, %v4570
        %v5081 = vmul.f32 %v4109, %v4570
        %v5082 = vmul.f32 %v4110, %v4570
        %v5083 = vmul.f32 %v4111, %v4570
        %v5084 = vadd.f32 %v4572, %v4588
        %v5085 = vadd.f32 %v5084, %v4604
        %v5086 = vadd.f32 %v5085, %v4620
        %v5087 = vadd.f32 %v5086, %v4636
        %v5088 = vadd.f32 %v5087, %v4652
        %v5089 = vadd.f32 %v5088, %v4668
        %v5090 = vadd.f32 %v5089, %v4684
        %v5091 = vadd.f32 %v5090, %v4700
        %v5092 = vadd.f32 %v5091, %v4716
        %v5093 = vadd.f32 %v5092, %v4732
        %v5094 = vadd.f32 %v5093, %v4748
        %v5095 = vadd.f32 %v5094, %v4764
        %v5096 = vadd.f32 %v5095, %v4780
        %v5097 = vadd.f32 %v5096, %v4796
        %v5098 = vadd.f32 %v5097, %v4812
        %v5099 = vadd.f32 %v5098, %v4828
        %v5100 = vadd.f32 %v5099, %v4844
        %v5101 = vadd.f32 %v5100, %v4860
        %v5102 = vadd.f32 %v5101, %v4876
        %v5103 = vadd.f32 %v5102, %v4892
        %v5104 = vadd.f32 %v5103, %v4908
        %v5105 = vadd.f32 %v5104, %v4924
        %v5106 = vadd.f32 %v5105, %v4940
        %v5107 = vadd.f32 %v5106, %v4956
        %v5108 = vadd.f32 %v5107, %v4972
        %v5109 = vadd.f32 %v5108, %v4988
        %v5110 = vadd.f32 %v5109, %v5004
        %v5111 = vadd.f32 %v5110, %v5020
        %v5112 = vadd.f32 %v5111, %v5036
        %v5113 = vadd.f32 %v5112, %v5052
        %v5114 = vadd.f32 %v5113, %v5068
        %v5115 = vadd.f32 %v4573, %v4589
        %v5116 = vadd.f32 %v5115, %v4605
        %v5117 = vadd.f32 %v5116, %v4621
        %v5118 = vadd.f32 %v5117, %v4637
        %v5119 = vadd.f32 %v5118, %v4653
        %v5120 = vadd.f32 %v5119, %v4669
        %v5121 = vadd.f32 %v5120, %v4685
        %v5122 = vadd.f32 %v5121, %v4701
        %v5123 = vadd.f32 %v5122, %v4717
        %v5124 = vadd.f32 %v5123, %v4733
        %v5125 = vadd.f32 %v5124, %v4749
        %v5126 = vadd.f32 %v5125, %v4765
        %v5127 = vadd.f32 %v5126, %v4781
        %v5128 = vadd.f32 %v5127, %v4797
        %v5129 = vadd.f32 %v5128, %v4813
        %v5130 = vadd.f32 %v5129, %v4829
        %v5131 = vadd.f32 %v5130, %v4845
        %v5132 = vadd.f32 %v5131, %v4861
        %v5133 = vadd.f32 %v5132, %v4877
        %v5134 = vadd.f32 %v5133, %v4893
        %v5135 = vadd.f32 %v5134, %v4909
        %v5136 = vadd.f32 %v5135, %v4925
        %v5137 = vadd.f32 %v5136, %v4941
        %v5138 = vadd.f32 %v5137, %v4957
        %v5139 = vadd.f32 %v5138, %v4973
        %v5140 = vadd.f32 %v5139, %v4989
        %v5141 = vadd.f32 %v5140, %v5005
        %v5142 = vadd.f32 %v5141, %v5021
        %v5143 = vadd.f32 %v5142, %v5037
        %v5144 = vadd.f32 %v5143, %v5053
        %v5145 = vadd.f32 %v5144, %v5069
        %v5146 = vadd.f32 %v4574, %v4590
        %v5147 = vadd.f32 %v5146, %v4606
        %v5148 = vadd.f32 %v5147, %v4622
        %v5149 = vadd.f32 %v5148, %v4638
        %v5150 = vadd.f32 %v5149, %v4654
        %v5151 = vadd.f32 %v5150, %v4670
        %v5152 = vadd.f32 %v5151, %v4686
        %v5153 = vadd.f32 %v5152, %v4702
        %v5154 = vadd.f32 %v5153, %v4718
        %v5155 = vadd.f32 %v5154, %v4734
        %v5156 = vadd.f32 %v5155, %v4750
        %v5157 = vadd.f32 %v5156, %v4766
        %v5158 = vadd.f32 %v5157, %v4782
        %v5159 = vadd.f32 %v5158, %v4798
        %v5160 = vadd.f32 %v5159, %v4814
        %v5161 = vadd.f32 %v5160, %v4830
        %v5162 = vadd.f32 %v5161, %v4846
        %v5163 = vadd.f32 %v5162, %v4862
        %v5164 = vadd.f32 %v5163, %v4878
        %v5165 = vadd.f32 %v5164, %v4894
        %v5166 = vadd.f32 %v5165, %v4910
        %v5167 = vadd.f32 %v5166, %v4926
        %v5168 = vadd.f32 %v5167, %v4942
        %v5169 = vadd.f32 %v5168, %v4958
        %v5170 = vadd.f32 %v5169, %v4974
        %v5171 = vadd.f32 %v5170, %v4990
        %v5172 = vadd.f32 %v5171, %v5006
        %v5173 = vadd.f32 %v5172, %v5022
        %v5174 = vadd.f32 %v5173, %v5038
        %v5175 = vadd.f32 %v5174, %v5054
        %v5176 = vadd.f32 %v5175, %v5070
        %v5177 = vadd.f32 %v4575, %v4591
        %v5178 = vadd.f32 %v5177, %v4607
        %v5179 = vadd.f32 %v5178, %v4623
        %v5180 = vadd.f32 %v5179, %v4639
        %v5181 = vadd.f32 %v5180, %v4655
        %v5182 = vadd.f32 %v5181, %v4671
        %v5183 = vadd.f32 %v5182, %v4687
        %v5184 = vadd.f32 %v5183, %v4703
        %v5185 = vadd.f32 %v5184, %v4719
        %v5186 = vadd.f32 %v5185, %v4735
        %v5187 = vadd.f32 %v5186, %v4751
        %v5188 = vadd.f32 %v5187, %v4767
        %v5189 = vadd.f32 %v5188, %v4783
        %v5190 = vadd.f32 %v5189, %v4799
        %v5191 = vadd.f32 %v5190, %v4815
        %v5192 = vadd.f32 %v5191, %v4831
        %v5193 = vadd.f32 %v5192, %v4847
        %v5194 = vadd.f32 %v5193, %v4863
        %v5195 = vadd.f32 %v5194, %v4879
        %v5196 = vadd.f32 %v5195, %v4895
        %v5197 = vadd.f32 %v5196, %v4911
        %v5198 = vadd.f32 %v5197, %v4927
        %v5199 = vadd.f32 %v5198, %v4943
        %v5200 = vadd.f32 %v5199, %v4959
        %v5201 = vadd.f32 %v5200, %v4975
        %v5202 = vadd.f32 %v5201, %v4991
        %v5203 = vadd.f32 %v5202, %v5007
        %v5204 = vadd.f32 %v5203, %v5023
        %v5205 = vadd.f32 %v5204, %v5039
        %v5206 = vadd.f32 %v5205, %v5055
        %v5207 = vadd.f32 %v5206, %v5071
        %v5208 = vadd.f32 %v4576, %v4592
        %v5209 = vadd.f32 %v5208, %v4608
        %v5210 = vadd.f32 %v5209, %v4624
        %v5211 = vadd.f32 %v5210, %v4640
        %v5212 = vadd.f32 %v5211, %v4656
        %v5213 = vadd.f32 %v5212, %v4672
        %v5214 = vadd.f32 %v5213, %v4688
        %v5215 = vadd.f32 %v5214, %v4704
        %v5216 = vadd.f32 %v5215, %v4720
        %v5217 = vadd.f32 %v5216, %v4736
        %v5218 = vadd.f32 %v5217, %v4752
        %v5219 = vadd.f32 %v5218, %v4768
        %v5220 = vadd.f32 %v5219, %v4784
        %v5221 = vadd.f32 %v5220, %v4800
        %v5222 = vadd.f32 %v5221, %v4816
        %v5223 = vadd.f32 %v5222, %v4832
        %v5224 = vadd.f32 %v5223, %v4848
        %v5225 = vadd.f32 %v5224, %v4864
        %v5226 = vadd.f32 %v5225, %v4880
        %v5227 = vadd.f32 %v5226, %v4896
        %v5228 = vadd.f32 %v5227, %v4912
        %v5229 = vadd.f32 %v5228, %v4928
        %v5230 = vadd.f32 %v5229, %v4944
        %v5231 = vadd.f32 %v5230, %v4960
        %v5232 = vadd.f32 %v5231, %v4976
        %v5233 = vadd.f32 %v5232, %v4992
        %v5234 = vadd.f32 %v5233, %v5008
        %v5235 = vadd.f32 %v5234, %v5024
        %v5236 = vadd.f32 %v5235, %v5040
        %v5237 = vadd.f32 %v5236, %v5056
        %v5238 = vadd.f32 %v5237, %v5072
        %v5239 = vadd.f32 %v4577, %v4593
        %v5240 = vadd.f32 %v5239, %v4609
        %v5241 = vadd.f32 %v5240, %v4625
        %v5242 = vadd.f32 %v5241, %v4641
        %v5243 = vadd.f32 %v5242, %v4657
        %v5244 = vadd.f32 %v5243, %v4673
        %v5245 = vadd.f32 %v5244, %v4689
        %v5246 = vadd.f32 %v5245, %v4705
        %v5247 = vadd.f32 %v5246, %v4721
        %v5248 = vadd.f32 %v5247, %v4737
        %v5249 = vadd.f32 %v5248, %v4753
        %v5250 = vadd.f32 %v5249, %v4769
        %v5251 = vadd.f32 %v5250, %v4785
        %v5252 = vadd.f32 %v5251, %v4801
        %v5253 = vadd.f32 %v5252, %v4817
        %v5254 = vadd.f32 %v5253, %v4833
        %v5255 = vadd.f32 %v5254, %v4849
        %v5256 = vadd.f32 %v5255, %v4865
        %v5257 = vadd.f32 %v5256, %v4881
        %v5258 = vadd.f32 %v5257, %v4897
        %v5259 = vadd.f32 %v5258, %v4913
        %v5260 = vadd.f32 %v5259, %v4929
        %v5261 = vadd.f32 %v5260, %v4945
        %v5262 = vadd.f32 %v5261, %v4961
        %v5263 = vadd.f32 %v5262, %v4977
        %v5264 = vadd.f32 %v5263, %v4993
        %v5265 = vadd.f32 %v5264, %v5009
        %v5266 = vadd.f32 %v5265, %v5025
        %v5267 = vadd.f32 %v5266, %v5041
        %v5268 = vadd.f32 %v5267, %v5057
        %v5269 = vadd.f32 %v5268, %v5073
        %v5270 = vadd.f32 %v4578, %v4594
        %v5271 = vadd.f32 %v5270, %v4610
        %v5272 = vadd.f32 %v5271, %v4626
        %v5273 = vadd.f32 %v5272, %v4642
        %v5274 = vadd.f32 %v5273, %v4658
        %v5275 = vadd.f32 %v5274, %v4674
        %v5276 = vadd.f32 %v5275, %v4690
        %v5277 = vadd.f32 %v5276, %v4706
        %v5278 = vadd.f32 %v5277, %v4722
        %v5279 = vadd.f32 %v5278, %v4738
        %v5280 = vadd.f32 %v5279, %v4754
        %v5281 = vadd.f32 %v5280, %v4770
        %v5282 = vadd.f32 %v5281, %v4786
        %v5283 = vadd.f32 %v5282, %v4802
        %v5284 = vadd.f32 %v5283, %v4818
        %v5285 = vadd.f32 %v5284, %v4834
        %v5286 = vadd.f32 %v5285, %v4850
        %v5287 = vadd.f32 %v5286, %v4866
        %v5288 = vadd.f32 %v5287, %v4882
        %v5289 = vadd.f32 %v5288, %v4898
        %v5290 = vadd.f32 %v5289, %v4914
        %v5291 = vadd.f32 %v5290, %v4930
        %v5292 = vadd.f32 %v5291, %v4946
        %v5293 = vadd.f32 %v5292, %v4962
        %v5294 = vadd.f32 %v5293, %v4978
        %v5295 = vadd.f32 %v5294, %v4994
        %v5296 = vadd.f32 %v5295, %v5010
        %v5297 = vadd.f32 %v5296, %v5026
        %v5298 = vadd.f32 %v5297, %v5042
        %v5299 = vadd.f32 %v5298, %v5058
        %v5300 = vadd.f32 %v5299, %v5074
        %v5301 = vadd.f32 %v4579, %v4595
        %v5302 = vadd.f32 %v5301, %v4611
        %v5303 = vadd.f32 %v5302, %v4627
        %v5304 = vadd.f32 %v5303, %v4643
        %v5305 = vadd.f32 %v5304, %v4659
        %v5306 = vadd.f32 %v5305, %v4675
        %v5307 = vadd.f32 %v5306, %v4691
        %v5308 = vadd.f32 %v5307, %v4707
        %v5309 = vadd.f32 %v5308, %v4723
        %v5310 = vadd.f32 %v5309, %v4739
        %v5311 = vadd.f32 %v5310, %v4755
        %v5312 = vadd.f32 %v5311, %v4771
        %v5313 = vadd.f32 %v5312, %v4787
        %v5314 = vadd.f32 %v5313, %v4803
        %v5315 = vadd.f32 %v5314, %v4819
        %v5316 = vadd.f32 %v5315, %v4835
        %v5317 = vadd.f32 %v5316, %v4851
        %v5318 = vadd.f32 %v5317, %v4867
        %v5319 = vadd.f32 %v5318, %v4883
        %v5320 = vadd.f32 %v5319, %v4899
        %v5321 = vadd.f32 %v5320, %v4915
        %v5322 = vadd.f32 %v5321, %v4931
        %v5323 = vadd.f32 %v5322, %v4947
        %v5324 = vadd.f32 %v5323, %v4963
        %v5325 = vadd.f32 %v5324, %v4979
        %v5326 = vadd.f32 %v5325, %v4995
        %v5327 = vadd.f32 %v5326, %v5011
        %v5328 = vadd.f32 %v5327, %v5027
        %v5329 = vadd.f32 %v5328, %v5043
        %v5330 = vadd.f32 %v5329, %v5059
        %v5331 = vadd.f32 %v5330, %v5075
        %v5332 = vadd.f32 %v4580, %v4596
        %v5333 = vadd.f32 %v5332, %v4612
        %v5334 = vadd.f32 %v5333, %v4628
        %v5335 = vadd.f32 %v5334, %v4644
        %v5336 = vadd.f32 %v5335, %v4660
        %v5337 = vadd.f32 %v5336, %v4676
        %v5338 = vadd.f32 %v5337, %v4692
        %v5339 = vadd.f32 %v5338, %v4708
        %v5340 = vadd.f32 %v5339, %v4724
        %v5341 = vadd.f32 %v5340, %v4740
        %v5342 = vadd.f32 %v5341, %v4756
        %v5343 = vadd.f32 %v5342, %v4772
        %v5344 = vadd.f32 %v5343, %v4788
        %v5345 = vadd.f32 %v5344, %v4804
        %v5346 = vadd.f32 %v5345, %v4820
        %v5347 = vadd.f32 %v5346, %v4836
        %v5348 = vadd.f32 %v5347, %v4852
        %v5349 = vadd.f32 %v5348, %v4868
        %v5350 = vadd.f32 %v5349, %v4884
        %v5351 = vadd.f32 %v5350, %v4900
        %v5352 = vadd.f32 %v5351, %v4916
        %v5353 = vadd.f32 %v5352, %v4932
        %v5354 = vadd.f32 %v5353, %v4948
        %v5355 = vadd.f32 %v5354, %v4964
        %v5356 = vadd.f32 %v5355, %v4980
        %v5357 = vadd.f32 %v5356, %v4996
        %v5358 = vadd.f32 %v5357, %v5012
        %v5359 = vadd.f32 %v5358, %v5028
        %v5360 = vadd.f32 %v5359, %v5044
        %v5361 = vadd.f32 %v5360, %v5060
        %v5362 = vadd.f32 %v5361, %v5076
        %v5363 = vadd.f32 %v4581, %v4597
        %v5364 = vadd.f32 %v5363, %v4613
        %v5365 = vadd.f32 %v5364, %v4629
        %v5366 = vadd.f32 %v5365, %v4645
        %v5367 = vadd.f32 %v5366, %v4661
        %v5368 = vadd.f32 %v5367, %v4677
        %v5369 = vadd.f32 %v5368, %v4693
        %v5370 = vadd.f32 %v5369, %v4709
        %v5371 = vadd.f32 %v5370, %v4725
        %v5372 = vadd.f32 %v5371, %v4741
        %v5373 = vadd.f32 %v5372, %v4757
        %v5374 = vadd.f32 %v5373, %v4773
        %v5375 = vadd.f32 %v5374, %v4789
        %v5376 = vadd.f32 %v5375, %v4805
        %v5377 = vadd.f32 %v5376, %v4821
        %v5378 = vadd.f32 %v5377, %v4837
        %v5379 = vadd.f32 %v5378, %v4853
        %v5380 = vadd.f32 %v5379, %v4869
        %v5381 = vadd.f32 %v5380, %v4885
        %v5382 = vadd.f32 %v5381, %v4901
        %v5383 = vadd.f32 %v5382, %v4917
        %v5384 = vadd.f32 %v5383, %v4933
        %v5385 = vadd.f32 %v5384, %v4949
        %v5386 = vadd.f32 %v5385, %v4965
        %v5387 = vadd.f32 %v5386, %v4981
        %v5388 = vadd.f32 %v5387, %v4997
        %v5389 = vadd.f32 %v5388, %v5013
        %v5390 = vadd.f32 %v5389, %v5029
        %v5391 = vadd.f32 %v5390, %v5045
        %v5392 = vadd.f32 %v5391, %v5061
        %v5393 = vadd.f32 %v5392, %v5077
        %v5394 = vadd.f32 %v4582, %v4598
        %v5395 = vadd.f32 %v5394, %v4614
        %v5396 = vadd.f32 %v5395, %v4630
        %v5397 = vadd.f32 %v5396, %v4646
        %v5398 = vadd.f32 %v5397, %v4662
        %v5399 = vadd.f32 %v5398, %v4678
        %v5400 = vadd.f32 %v5399, %v4694
        %v5401 = vadd.f32 %v5400, %v4710
        %v5402 = vadd.f32 %v5401, %v4726
        %v5403 = vadd.f32 %v5402, %v4742
        %v5404 = vadd.f32 %v5403, %v4758
        %v5405 = vadd.f32 %v5404, %v4774
        %v5406 = vadd.f32 %v5405, %v4790
        %v5407 = vadd.f32 %v5406, %v4806
        %v5408 = vadd.f32 %v5407, %v4822
        %v5409 = vadd.f32 %v5408, %v4838
        %v5410 = vadd.f32 %v5409, %v4854
        %v5411 = vadd.f32 %v5410, %v4870
        %v5412 = vadd.f32 %v5411, %v4886
        %v5413 = vadd.f32 %v5412, %v4902
        %v5414 = vadd.f32 %v5413, %v4918
        %v5415 = vadd.f32 %v5414, %v4934
        %v5416 = vadd.f32 %v5415, %v4950
        %v5417 = vadd.f32 %v5416, %v4966
        %v5418 = vadd.f32 %v5417, %v4982
        %v5419 = vadd.f32 %v5418, %v4998
        %v5420 = vadd.f32 %v5419, %v5014
        %v5421 = vadd.f32 %v5420, %v5030
        %v5422 = vadd.f32 %v5421, %v5046
        %v5423 = vadd.f32 %v5422, %v5062
        %v5424 = vadd.f32 %v5423, %v5078
        %v5425 = vadd.f32 %v4583, %v4599
        %v5426 = vadd.f32 %v5425, %v4615
        %v5427 = vadd.f32 %v5426, %v4631
        %v5428 = vadd.f32 %v5427, %v4647
        %v5429 = vadd.f32 %v5428, %v4663
        %v5430 = vadd.f32 %v5429, %v4679
        %v5431 = vadd.f32 %v5430, %v4695
        %v5432 = vadd.f32 %v5431, %v4711
        %v5433 = vadd.f32 %v5432, %v4727
        %v5434 = vadd.f32 %v5433, %v4743
        %v5435 = vadd.f32 %v5434, %v4759
        %v5436 = vadd.f32 %v5435, %v4775
        %v5437 = vadd.f32 %v5436, %v4791
        %v5438 = vadd.f32 %v5437, %v4807
        %v5439 = vadd.f32 %v5438, %v4823
        %v5440 = vadd.f32 %v5439, %v4839
        %v5441 = vadd.f32 %v5440, %v4855
        %v5442 = vadd.f32 %v5441, %v4871
        %v5443 = vadd.f32 %v5442, %v4887
        %v5444 = vadd.f32 %v5443, %v4903
        %v5445 = vadd.f32 %v5444, %v4919
        %v5446 = vadd.f32 %v5445, %v4935
        %v5447 = vadd.f32 %v5446, %v4951
        %v5448 = vadd.f32 %v5447, %v4967
        %v5449 = vadd.f32 %v5448, %v4983
        %v5450 = vadd.f32 %v5449, %v4999
        %v5451 = vadd.f32 %v5450, %v5015
        %v5452 = vadd.f32 %v5451, %v5031
        %v5453 = vadd.f32 %v5452, %v5047
        %v5454 = vadd.f32 %v5453, %v5063
        %v5455 = vadd.f32 %v5454, %v5079
        %v5456 = vadd.f32 %v4584, %v4600
        %v5457 = vadd.f32 %v5456, %v4616
        %v5458 = vadd.f32 %v5457, %v4632
        %v5459 = vadd.f32 %v5458, %v4648
        %v5460 = vadd.f32 %v5459, %v4664
        %v5461 = vadd.f32 %v5460, %v4680
        %v5462 = vadd.f32 %v5461, %v4696
        %v5463 = vadd.f32 %v5462, %v4712
        %v5464 = vadd.f32 %v5463, %v4728
        %v5465 = vadd.f32 %v5464, %v4744
        %v5466 = vadd.f32 %v5465, %v4760
        %v5467 = vadd.f32 %v5466, %v4776
        %v5468 = vadd.f32 %v5467, %v4792
        %v5469 = vadd.f32 %v5468, %v4808
        %v5470 = vadd.f32 %v5469, %v4824
        %v5471 = vadd.f32 %v5470, %v4840
        %v5472 = vadd.f32 %v5471, %v4856
        %v5473 = vadd.f32 %v5472, %v4872
        %v5474 = vadd.f32 %v5473, %v4888
        %v5475 = vadd.f32 %v5474, %v4904
        %v5476 = vadd.f32 %v5475, %v4920
        %v5477 = vadd.f32 %v5476, %v4936
        %v5478 = vadd.f32 %v5477, %v4952
        %v5479 = vadd.f32 %v5478, %v4968
        %v5480 = vadd.f32 %v5479, %v4984
        %v5481 = vadd.f32 %v5480, %v5000
        %v5482 = vadd.f32 %v5481, %v5016
        %v5483 = vadd.f32 %v5482, %v5032
        %v5484 = vadd.f32 %v5483, %v5048
        %v5485 = vadd.f32 %v5484, %v5064
        %v5486 = vadd.f32 %v5485, %v5080
        %v5487 = vadd.f32 %v4585, %v4601
        %v5488 = vadd.f32 %v5487, %v4617
        %v5489 = vadd.f32 %v5488, %v4633
        %v5490 = vadd.f32 %v5489, %v4649
        %v5491 = vadd.f32 %v5490, %v4665
        %v5492 = vadd.f32 %v5491, %v4681
        %v5493 = vadd.f32 %v5492, %v4697
        %v5494 = vadd.f32 %v5493, %v4713
        %v5495 = vadd.f32 %v5494, %v4729
        %v5496 = vadd.f32 %v5495, %v4745
        %v5497 = vadd.f32 %v5496, %v4761
        %v5498 = vadd.f32 %v5497, %v4777
        %v5499 = vadd.f32 %v5498, %v4793
        %v5500 = vadd.f32 %v5499, %v4809
        %v5501 = vadd.f32 %v5500, %v4825
        %v5502 = vadd.f32 %v5501, %v4841
        %v5503 = vadd.f32 %v5502, %v4857
        %v5504 = vadd.f32 %v5503, %v4873
        %v5505 = vadd.f32 %v5504, %v4889
        %v5506 = vadd.f32 %v5505, %v4905
        %v5507 = vadd.f32 %v5506, %v4921
        %v5508 = vadd.f32 %v5507, %v4937
        %v5509 = vadd.f32 %v5508, %v4953
        %v5510 = vadd.f32 %v5509, %v4969
        %v5511 = vadd.f32 %v5510, %v4985
        %v5512 = vadd.f32 %v5511, %v5001
        %v5513 = vadd.f32 %v5512, %v5017
        %v5514 = vadd.f32 %v5513, %v5033
        %v5515 = vadd.f32 %v5514, %v5049
        %v5516 = vadd.f32 %v5515, %v5065
        %v5517 = vadd.f32 %v5516, %v5081
        %v5518 = vadd.f32 %v4586, %v4602
        %v5519 = vadd.f32 %v5518, %v4618
        %v5520 = vadd.f32 %v5519, %v4634
        %v5521 = vadd.f32 %v5520, %v4650
        %v5522 = vadd.f32 %v5521, %v4666
        %v5523 = vadd.f32 %v5522, %v4682
        %v5524 = vadd.f32 %v5523, %v4698
        %v5525 = vadd.f32 %v5524, %v4714
        %v5526 = vadd.f32 %v5525, %v4730
        %v5527 = vadd.f32 %v5526, %v4746
        %v5528 = vadd.f32 %v5527, %v4762
        %v5529 = vadd.f32 %v5528, %v4778
        %v5530 = vadd.f32 %v5529, %v4794
        %v5531 = vadd.f32 %v5530, %v4810
        %v5532 = vadd.f32 %v5531, %v4826
        %v5533 = vadd.f32 %v5532, %v4842
        %v5534 = vadd.f32 %v5533, %v4858
        %v5535 = vadd.f32 %v5534, %v4874
        %v5536 = vadd.f32 %v5535, %v4890
        %v5537 = vadd.f32 %v5536, %v4906
        %v5538 = vadd.f32 %v5537, %v4922
        %v5539 = vadd.f32 %v5538, %v4938
        %v5540 = vadd.f32 %v5539, %v4954
        %v5541 = vadd.f32 %v5540, %v4970
        %v5542 = vadd.f32 %v5541, %v4986
        %v5543 = vadd.f32 %v5542, %v5002
        %v5544 = vadd.f32 %v5543, %v5018
        %v5545 = vadd.f32 %v5544, %v5034
        %v5546 = vadd.f32 %v5545, %v5050
        %v5547 = vadd.f32 %v5546, %v5066
        %v5548 = vadd.f32 %v5547, %v5082
        %v5549 = vadd.f32 %v4587, %v4603
        %v5550 = vadd.f32 %v5549, %v4619
        %v5551 = vadd.f32 %v5550, %v4635
        %v5552 = vadd.f32 %v5551, %v4651
        %v5553 = vadd.f32 %v5552, %v4667
        %v5554 = vadd.f32 %v5553, %v4683
        %v5555 = vadd.f32 %v5554, %v4699
        %v5556 = vadd.f32 %v5555, %v4715
        %v5557 = vadd.f32 %v5556, %v4731
        %v5558 = vadd.f32 %v5557, %v4747
        %v5559 = vadd.f32 %v5558, %v4763
        %v5560 = vadd.f32 %v5559, %v4779
        %v5561 = vadd.f32 %v5560, %v4795
        %v5562 = vadd.f32 %v5561, %v4811
        %v5563 = vadd.f32 %v5562, %v4827
        %v5564 = vadd.f32 %v5563, %v4843
        %v5565 = vadd.f32 %v5564, %v4859
        %v5566 = vadd.f32 %v5565, %v4875
        %v5567 = vadd.f32 %v5566, %v4891
        %v5568 = vadd.f32 %v5567, %v4907
        %v5569 = vadd.f32 %v5568, %v4923
        %v5570 = vadd.f32 %v5569, %v4939
        %v5571 = vadd.f32 %v5570, %v4955
        %v5572 = vadd.f32 %v5571, %v4971
        %v5573 = vadd.f32 %v5572, %v4987
        %v5574 = vadd.f32 %v5573, %v5003
        %v5575 = vadd.f32 %v5574, %v5019
        %v5576 = vadd.f32 %v5575, %v5035
        %v5577 = vadd.f32 %v5576, %v5051
        %v5578 = vadd.f32 %v5577, %v5067
        %v5579 = vadd.f32 %v5578, %v5083
        %s5580 = sld [smem:[#allocation6]]
        %v5581 = vstv %s5580
        %v5582 = vadd.f32 %v5114, %v5581
        %v5583 = vadd.f32 %v5145, %v5581
        %v5584 = vadd.f32 %v5176, %v5581
        %v5585 = vadd.f32 %v5207, %v5581
        %v5586 = vadd.f32 %v5238, %v5581
        %v5587 = vadd.f32 %v5269, %v5581
        %v5588 = vadd.f32 %v5300, %v5581
        %v5589 = vadd.f32 %v5331, %v5581
        %v5590 = vadd.f32 %v5362, %v5581
        %v5591 = vadd.f32 %v5393, %v5581
        %v5592 = vadd.f32 %v5424, %v5581
        %v5593 = vadd.f32 %v5455, %v5581
        %v5594 = vadd.f32 %v5486, %v5581
        %v5595 = vadd.f32 %v5517, %v5581
        %v5596 = vadd.f32 %v5548, %v5581
        %v5597 = vadd.f32 %v5579, %v5581
        %v5598 = vmax.f32 %v5582, 0.0
        %v5599 = vmax.f32 %v5583, 0.0
        %v5600 = vmax.f32 %v5584, 0.0
        %v5601 = vmax.f32 %v5585, 0.0
        %v5602 = vmax.f32 %v5586, 0.0
        %v5603 = vmax.f32 %v5587, 0.0
        %v5604 = vmax.f32 %v5588, 0.0
        %v5605 = vmax.f32 %v5589, 0.0
        %v5606 = vmax.f32 %v5590, 0.0
        %v5607 = vmax.f32 %v5591, 0.0
        %v5608 = vmax.f32 %v5592, 0.0
        %v5609 = vmax.f32 %v5593, 0.0
        %v5610 = vmax.f32 %v5594, 0.0
        %v5611 = vmax.f32 %v5595, 0.0
        %v5612 = vmax.f32 %v5596, 0.0
        %v5613 = vmax.f32 %v5597, 0.0
        %v5614 = vld [vmem:[#allocation3] sm:$0xff]
        %v5615 = vld [vmem:[#allocation3 + $0x8] sm:$0xff]
        %v5616 = vld [vmem:[#allocation3 + $0x10] sm:$0xff]
        %v5617 = vld [vmem:[#allocation3 + $0x18] sm:$0xff]
        %v5618 = vld [vmem:[#allocation3 + $0x20] sm:$0xff]
        %v5619 = vld [vmem:[#allocation3 + $0x28] sm:$0xff]
        %v5620 = vld [vmem:[#allocation3 + $0x30] sm:$0xff]
        %v5621 = vld [vmem:[#allocation3 + $0x38] sm:$0xff]
        %v5622 = vld [vmem:[#allocation3 + $0x40] sm:$0xff]
        %v5623 = vld [vmem:[#allocation3 + $0x48] sm:$0xff]
        %v5624 = vld [vmem:[#allocation3 + $0x50] sm:$0xff]
        %v5625 = vld [vmem:[#allocation3 + $0x58] sm:$0xff]
        %v5626 = vld [vmem:[#allocation3 + $0x60] sm:$0xff]
        %v5627 = vld [vmem:[#allocation3 + $0x68] sm:$0xff]
        %v5628 = vld [vmem:[#allocation3 + $0x70] sm:$0xff]
        %v5629 = vld [vmem:[#allocation3 + $0x78] sm:$0xff]
        %5630 = vmax.xlane.f32.xlu0 %v5598
        %v5631 = vpop.xlane.xlu0 %5630
        %5632 = vmax.xlane.f32.xlu0 %v5599
        %v5633 = vpop.xlane.xlu0 %5632
        %5634 = vmax.xlane.f32.xlu0 %v5600
        %v5635 = vpop.xlane.xlu0 %5634
        %5636 = vmax.xlane.f32.xlu0 %v5601
        %v5637 = vpop.xlane.xlu0 %5636
        %5638 = vmax.xlane.f32.xlu0 %v5602
        %v5639 = vpop.xlane.xlu0 %5638
        %5640 = vmax.xlane.f32.xlu0 %v5603
        %v5641 = vpop.xlane.xlu0 %5640
        %5642 = vmax.xlane.f32.xlu0 %v5604
        %v5643 = vpop.xlane.xlu0 %5642
        %5644 = vmax.xlane.f32.xlu0 %v5605
        %v5645 = vpop.xlane.xlu0 %5644
        %5646 = vmax.xlane.f32.xlu0 %v5606
        %v5647 = vpop.xlane.xlu0 %5646
        %5648 = vmax.xlane.f32.xlu0 %v5607
        %v5649 = vpop.xlane.xlu0 %5648
        %5650 = vmax.xlane.f32.xlu0 %v5608
        %v5651 = vpop.xlane.xlu0 %5650
        %5652 = vmax.xlane.f32.xlu0 %v5609
        %v5653 = vpop.xlane.xlu0 %5652
        %5654 = vmax.xlane.f32.xlu0 %v5610
        %v5655 = vpop.xlane.xlu0 %5654
        %5656 = vmax.xlane.f32.xlu0 %v5611
        %v5657 = vpop.xlane.xlu0 %5656
        %5658 = vmax.xlane.f32.xlu0 %v5612
        %v5659 = vpop.xlane.xlu0 %5658
        %5660 = vmax.xlane.f32.xlu0 %v5613
        %v5661 = vpop.xlane.xlu0 %5660
        %v5662 = vmax.f32 %v5614, %v5631
        %v5663 = vmax.f32 %v5615, %v5633
        %v5664 = vmax.f32 %v5616, %v5635
        %v5665 = vmax.f32 %v5617, %v5637
        %v5666 = vmax.f32 %v5618, %v5639
        %v5667 = vmax.f32 %v5619, %v5641
        %v5668 = vmax.f32 %v5620, %v5643
        %v5669 = vmax.f32 %v5621, %v5645
        %v5670 = vmax.f32 %v5622, %v5647
        %v5671 = vmax.f32 %v5623, %v5649
        %v5672 = vmax.f32 %v5624, %v5651
        %v5673 = vmax.f32 %v5625, %v5653
        %v5674 = vmax.f32 %v5626, %v5655
        %v5675 = vmax.f32 %v5627, %v5657
        %v5676 = vmax.f32 %v5628, %v5659
        %v5677 = vmax.f32 %v5629, %v5661
        %v5678 = vsub.f32 %v5614, %v5662
        %v5679 = vsub.f32 %v5615, %v5663
        %v5680 = vsub.f32 %v5616, %v5664
        %v5681 = vsub.f32 %v5617, %v5665
        %v5682 = vsub.f32 %v5618, %v5666
        %v5683 = vsub.f32 %v5619, %v5667
        %v5684 = vsub.f32 %v5620, %v5668
        %v5685 = vsub.f32 %v5621, %v5669
        %v5686 = vsub.f32 %v5622, %v5670
        %v5687 = vsub.f32 %v5623, %v5671
        %v5688 = vsub.f32 %v5624, %v5672
        %v5689 = vsub.f32 %v5625, %v5673
        %v5690 = vsub.f32 %v5626, %v5674
        %v5691 = vsub.f32 %v5627, %v5675
        %v5692 = vsub.f32 %v5628, %v5676
        %v5693 = vsub.f32 %v5629, %v5677
        %v5694 = vmul.f32 %v5678, 1.442695
        %v5695 = vpow.pop %v5694
        %v5696 = vmul.f32 %v5679, 1.442695
        %v5697 = vpow.pop %v5696
        %v5698 = vmul.f32 %v5680, 1.442695
        %v5699 = vpow.pop %v5698
        %v5700 = vmul.f32 %v5681, 1.442695
        %v5701 = vpow.pop %v5700
        %v5702 = vmul.f32 %v5682, 1.442695
        %v5703 = vpow.pop %v5702
        %v5704 = vmul.f32 %v5683, 1.442695
        %v5705 = vpow.pop %v5704
        %v5706 = vmul.f32 %v5684, 1.442695
        %v5707 = vpow.pop %v5706
        %v5708 = vmul.f32 %v5685, 1.442695
        %v5709 = vpow.pop %v5708
        %v5710 = vmul.f32 %v5686, 1.442695
        %v5711 = vpow.pop %v5710
        %v5712 = vmul.f32 %v5687, 1.442695
        %v5713 = vpow.pop %v5712
        %v5714 = vmul.f32 %v5688, 1.442695
        %v5715 = vpow.pop %v5714
        %v5716 = vmul.f32 %v5689, 1.442695
        %v5717 = vpow.pop %v5716
        %v5718 = vmul.f32 %v5690, 1.442695
        %v5719 = vpow.pop %v5718
        %v5720 = vmul.f32 %v5691, 1.442695
        %v5721 = vpow.pop %v5720
        %v5722 = vmul.f32 %v5692, 1.442695
        %v5723 = vpow.pop %v5722
        %v5724 = vmul.f32 %v5693, 1.442695
        %v5725 = vpow.pop %v5724
        %5727 = vset.pattern.permute.xlu0 0
        %5728 = vperm.xlu0 %5727, %v5662
        %v5729 = vpop.permute.xlu0 %5728
        %5732 = vset.pattern.permute.xlu0 0
        %5733 = vperm.xlu0 %5732, %v5663
        %v5734 = vpop.permute.xlu0 %5733
        %5737 = vset.pattern.permute.xlu0 0
        %5738 = vperm.xlu0 %5737, %v5664
        %v5739 = vpop.permute.xlu0 %5738
        %5742 = vset.pattern.permute.xlu0 0
        %5743 = vperm.xlu0 %5742, %v5665
        %v5744 = vpop.permute.xlu0 %5743
        %5747 = vset.pattern.permute.xlu0 0
        %5748 = vperm.xlu0 %5747, %v5666
        %v5749 = vpop.permute.xlu0 %5748
        %5752 = vset.pattern.permute.xlu0 0
        %5753 = vperm.xlu0 %5752, %v5667
        %v5754 = vpop.permute.xlu0 %5753
        %5757 = vset.pattern.permute.xlu0 0
        %5758 = vperm.xlu0 %5757, %v5668
        %v5759 = vpop.permute.xlu0 %5758
        %5762 = vset.pattern.permute.xlu0 0
        %5763 = vperm.xlu0 %5762, %v5669
        %v5764 = vpop.permute.xlu0 %5763
        %5767 = vset.pattern.permute.xlu0 0
        %5768 = vperm.xlu0 %5767, %v5670
        %v5769 = vpop.permute.xlu0 %5768
        %5772 = vset.pattern.permute.xlu0 0
        %5773 = vperm.xlu0 %5772, %v5671
        %v5774 = vpop.permute.xlu0 %5773
        %5777 = vset.pattern.permute.xlu0 0
        %5778 = vperm.xlu0 %5777, %v5672
        %v5779 = vpop.permute.xlu0 %5778
        %5782 = vset.pattern.permute.xlu0 0
        %5783 = vperm.xlu0 %5782, %v5673
        %v5784 = vpop.permute.xlu0 %5783
        %5787 = vset.pattern.permute.xlu0 0
        %5788 = vperm.xlu0 %5787, %v5674
        %v5789 = vpop.permute.xlu0 %5788
        %5792 = vset.pattern.permute.xlu0 0
        %5793 = vperm.xlu0 %5792, %v5675
        %v5794 = vpop.permute.xlu0 %5793
        %5797 = vset.pattern.permute.xlu0 0
        %5798 = vperm.xlu0 %5797, %v5676
        %v5799 = vpop.permute.xlu0 %5798
        %5802 = vset.pattern.permute.xlu0 0
        %5803 = vperm.xlu0 %5802, %v5677
        %v5804 = vpop.permute.xlu0 %5803
        %v5806 = vsub.f32 %v5598, %v5729
        %v5807 = vsub.f32 %v5599, %v5734
        %v5808 = vsub.f32 %v5600, %v5739
        %v5809 = vsub.f32 %v5601, %v5744
        %v5810 = vsub.f32 %v5602, %v5749
        %v5811 = vsub.f32 %v5603, %v5754
        %v5812 = vsub.f32 %v5604, %v5759
        %v5813 = vsub.f32 %v5605, %v5764
        %v5814 = vsub.f32 %v5606, %v5769
        %v5815 = vsub.f32 %v5607, %v5774
        %v5816 = vsub.f32 %v5608, %v5779
        %v5817 = vsub.f32 %v5609, %v5784
        %v5818 = vsub.f32 %v5610, %v5789
        %v5819 = vsub.f32 %v5611, %v5794
        %v5820 = vsub.f32 %v5612, %v5799
        %v5821 = vsub.f32 %v5613, %v5804
        %v5822 = vmul.f32 %v5806, 1.442695
        %v5823 = vpow.pop %v5822
        %v5824 = vmul.f32 %v5807, 1.442695
        %v5825 = vpow.pop %v5824
        %v5826 = vmul.f32 %v5808, 1.442695
        %v5827 = vpow.pop %v5826
        %v5828 = vmul.f32 %v5809, 1.442695
        %v5829 = vpow.pop %v5828
        %v5830 = vmul.f32 %v5810, 1.442695
        %v5831 = vpow.pop %v5830
        %v5832 = vmul.f32 %v5811, 1.442695
        %v5833 = vpow.pop %v5832
        %v5834 = vmul.f32 %v5812, 1.442695
        %v5835 = vpow.pop %v5834
        %v5836 = vmul.f32 %v5813, 1.442695
        %v5837 = vpow.pop %v5836
        %v5838 = vmul.f32 %v5814, 1.442695
        %v5839 = vpow.pop %v5838
        %v5840 = vmul.f32 %v5815, 1.442695
        %v5841 = vpow.pop %v5840
        %v5842 = vmul.f32 %v5816, 1.442695
        %v5843 = vpow.pop %v5842
        %v5844 = vmul.f32 %v5817, 1.442695
        %v5845 = vpow.pop %v5844
        %v5846 = vmul.f32 %v5818, 1.442695
        %v5847 = vpow.pop %v5846
        %v5848 = vmul.f32 %v5819, 1.442695
        %v5849 = vpow.pop %v5848
        %v5850 = vmul.f32 %v5820, 1.442695
        %v5851 = vpow.pop %v5850
        %v5852 = vmul.f32 %v5821, 1.442695
        %v5853 = vpow.pop %v5852
        %v5854 = vld [vmem:[#allocation4] sm:$0xff]
        %v5855 = vld [vmem:[#allocation4 + $0x8] sm:$0xff]
        %v5856 = vld [vmem:[#allocation4 + $0x10] sm:$0xff]
        %v5857 = vld [vmem:[#allocation4 + $0x18] sm:$0xff]
        %v5858 = vld [vmem:[#allocation4 + $0x20] sm:$0xff]
        %v5859 = vld [vmem:[#allocation4 + $0x28] sm:$0xff]
        %v5860 = vld [vmem:[#allocation4 + $0x30] sm:$0xff]
        %v5861 = vld [vmem:[#allocation4 + $0x38] sm:$0xff]
        %v5862 = vld [vmem:[#allocation4 + $0x40] sm:$0xff]
        %v5863 = vld [vmem:[#allocation4 + $0x48] sm:$0xff]
        %v5864 = vld [vmem:[#allocation4 + $0x50] sm:$0xff]
        %v5865 = vld [vmem:[#allocation4 + $0x58] sm:$0xff]
        %v5866 = vld [vmem:[#allocation4 + $0x60] sm:$0xff]
        %v5867 = vld [vmem:[#allocation4 + $0x68] sm:$0xff]
        %v5868 = vld [vmem:[#allocation4 + $0x70] sm:$0xff]
        %v5869 = vld [vmem:[#allocation4 + $0x78] sm:$0xff]
        %v5870 = vmul.f32 %v5695, %v5854
        %v5871 = vmul.f32 %v5697, %v5855
        %v5872 = vmul.f32 %v5699, %v5856
        %v5873 = vmul.f32 %v5701, %v5857
        %v5874 = vmul.f32 %v5703, %v5858
        %v5875 = vmul.f32 %v5705, %v5859
        %v5876 = vmul.f32 %v5707, %v5860
        %v5877 = vmul.f32 %v5709, %v5861
        %v5878 = vmul.f32 %v5711, %v5862
        %v5879 = vmul.f32 %v5713, %v5863
        %v5880 = vmul.f32 %v5715, %v5864
        %v5881 = vmul.f32 %v5717, %v5865
        %v5882 = vmul.f32 %v5719, %v5866
        %v5883 = vmul.f32 %v5721, %v5867
        %v5884 = vmul.f32 %v5723, %v5868
        %v5885 = vmul.f32 %v5725, %v5869
        %5886 = vadd.xlane.f32.xlu0 %v5823
        %v5887 = vpop.xlane.xlu0 %5886
        %5888 = vadd.xlane.f32.xlu0 %v5825
        %v5889 = vpop.xlane.xlu0 %5888
        %5890 = vadd.xlane.f32.xlu0 %v5827
        %v5891 = vpop.xlane.xlu0 %5890
        %5892 = vadd.xlane.f32.xlu0 %v5829
        %v5893 = vpop.xlane.xlu0 %5892
        %5894 = vadd.xlane.f32.xlu0 %v5831
        %v5895 = vpop.xlane.xlu0 %5894
        %5896 = vadd.xlane.f32.xlu0 %v5833
        %v5897 = vpop.xlane.xlu0 %5896
        %5898 = vadd.xlane.f32.xlu0 %v5835
        %v5899 = vpop.xlane.xlu0 %5898
        %5900 = vadd.xlane.f32.xlu0 %v5837
        %v5901 = vpop.xlane.xlu0 %5900
        %5902 = vadd.xlane.f32.xlu0 %v5839
        %v5903 = vpop.xlane.xlu0 %5902
        %5904 = vadd.xlane.f32.xlu0 %v5841
        %v5905 = vpop.xlane.xlu0 %5904
        %5906 = vadd.xlane.f32.xlu0 %v5843
        %v5907 = vpop.xlane.xlu0 %5906
        %5908 = vadd.xlane.f32.xlu0 %v5845
        %v5909 = vpop.xlane.xlu0 %5908
        %5910 = vadd.xlane.f32.xlu0 %v5847
        %v5911 = vpop.xlane.xlu0 %5910
        %5912 = vadd.xlane.f32.xlu0 %v5849
        %v5913 = vpop.xlane.xlu0 %5912
        %5914 = vadd.xlane.f32.xlu0 %v5851
        %v5915 = vpop.xlane.xlu0 %5914
        %5916 = vadd.xlane.f32.xlu0 %v5853
        %v5917 = vpop.xlane.xlu0 %5916
        %v5918 = vadd.f32 %v5870, %v5887
        %v5919 = vadd.f32 %v5871, %v5889
        %v5920 = vadd.f32 %v5872, %v5891
        %v5921 = vadd.f32 %v5873, %v5893
        %v5922 = vadd.f32 %v5874, %v5895
        %v5923 = vadd.f32 %v5875, %v5897
        %v5924 = vadd.f32 %v5876, %v5899
        %v5925 = vadd.f32 %v5877, %v5901
        %v5926 = vadd.f32 %v5878, %v5903
        %v5927 = vadd.f32 %v5879, %v5905
        %v5928 = vadd.f32 %v5880, %v5907
        %v5929 = vadd.f32 %v5881, %v5909
        %v5930 = vadd.f32 %v5882, %v5911
        %v5931 = vadd.f32 %v5883, %v5913
        %v5932 = vadd.f32 %v5884, %v5915
        %v5933 = vadd.f32 %v5885, %v5917
        %vm5934 = vcmask 7168
        %5935 = vst.msk [vmem:[#allocation4] sm:$0xff] %vm5934, %v5918
        %5936 = vst.msk [vmem:[#allocation4 + $0x8] sm:$0xff] %vm5934, %v5919
        %5937 = vst.msk [vmem:[#allocation4 + $0x10] sm:$0xff] %vm5934, %v5920
        %5938 = vst.msk [vmem:[#allocation4 + $0x18] sm:$0xff] %vm5934, %v5921
        %5939 = vst.msk [vmem:[#allocation4 + $0x20] sm:$0xff] %vm5934, %v5922
        %5940 = vst.msk [vmem:[#allocation4 + $0x28] sm:$0xff] %vm5934, %v5923
        %5941 = vst.msk [vmem:[#allocation4 + $0x30] sm:$0xff] %vm5934, %v5924
        %5942 = vst.msk [vmem:[#allocation4 + $0x38] sm:$0xff] %vm5934, %v5925
        %5943 = vst.msk [vmem:[#allocation4 + $0x40] sm:$0xff] %vm5934, %v5926
        %5944 = vst.msk [vmem:[#allocation4 + $0x48] sm:$0xff] %vm5934, %v5927
        %5945 = vst.msk [vmem:[#allocation4 + $0x50] sm:$0xff] %vm5934, %v5928
        %5946 = vst.msk [vmem:[#allocation4 + $0x58] sm:$0xff] %vm5934, %v5929
        %5947 = vst.msk [vmem:[#allocation4 + $0x60] sm:$0xff] %vm5934, %v5930
        %5948 = vst.msk [vmem:[#allocation4 + $0x68] sm:$0xff] %vm5934, %v5931
        %5949 = vst.msk [vmem:[#allocation4 + $0x70] sm:$0xff] %vm5934, %v5932
        %5950 = vst.msk [vmem:[#allocation4 + $0x78] sm:$0xff] %vm5934, %v5933
        %v5951 = vld [vmem:[#allocation5] sm:$0xff]
        %v5952 = vld [vmem:[#allocation5 + $0x8] sm:$0xff]
        %v5953 = vld [vmem:[#allocation5 + $0x10] sm:$0xff]
        %v5954 = vld [vmem:[#allocation5 + $0x18] sm:$0xff]
        %v5955 = vld [vmem:[#allocation5 + $0x20] sm:$0xff]
        %v5956 = vld [vmem:[#allocation5 + $0x28] sm:$0xff]
        %v5957 = vld [vmem:[#allocation5 + $0x30] sm:$0xff]
        %v5958 = vld [vmem:[#allocation5 + $0x38] sm:$0xff]
        %v5959 = vld [vmem:[#allocation5 + $0x40] sm:$0xff]
        %v5960 = vld [vmem:[#allocation5 + $0x48] sm:$0xff]
        %v5961 = vld [vmem:[#allocation5 + $0x50] sm:$0xff]
        %v5962 = vld [vmem:[#allocation5 + $0x58] sm:$0xff]
        %v5963 = vld [vmem:[#allocation5 + $0x60] sm:$0xff]
        %v5964 = vld [vmem:[#allocation5 + $0x68] sm:$0xff]
        %v5965 = vld [vmem:[#allocation5 + $0x70] sm:$0xff]
        %v5966 = vld [vmem:[#allocation5 + $0x78] sm:$0xff]
        %5968 = vset.pattern.permute.xlu0 0
        %5969 = vperm.xlu0 %5968, %v5695
        %v5970 = vpop.permute.xlu0 %5969
        %5973 = vset.pattern.permute.xlu0 0
        %5974 = vperm.xlu0 %5973, %v5697
        %v5975 = vpop.permute.xlu0 %5974
        %5978 = vset.pattern.permute.xlu0 0
        %5979 = vperm.xlu0 %5978, %v5699
        %v5980 = vpop.permute.xlu0 %5979
        %5983 = vset.pattern.permute.xlu0 0
        %5984 = vperm.xlu0 %5983, %v5701
        %v5985 = vpop.permute.xlu0 %5984
        %5988 = vset.pattern.permute.xlu0 0
        %5989 = vperm.xlu0 %5988, %v5703
        %v5990 = vpop.permute.xlu0 %5989
        %5993 = vset.pattern.permute.xlu0 0
        %5994 = vperm.xlu0 %5993, %v5705
        %v5995 = vpop.permute.xlu0 %5994
        %5998 = vset.pattern.permute.xlu0 0
        %5999 = vperm.xlu0 %5998, %v5707
        %v6000 = vpop.permute.xlu0 %5999
        %6003 = vset.pattern.permute.xlu0 0
        %6004 = vperm.xlu0 %6003, %v5709
        %v6005 = vpop.permute.xlu0 %6004
        %6008 = vset.pattern.permute.xlu0 0
        %6009 = vperm.xlu0 %6008, %v5711
        %v6010 = vpop.permute.xlu0 %6009
        %6013 = vset.pattern.permute.xlu0 0
        %6014 = vperm.xlu0 %6013, %v5713
        %v6015 = vpop.permute.xlu0 %6014
        %6018 = vset.pattern.permute.xlu0 0
        %6019 = vperm.xlu0 %6018, %v5715
        %v6020 = vpop.permute.xlu0 %6019
        %6023 = vset.pattern.permute.xlu0 0
        %6024 = vperm.xlu0 %6023, %v5717
        %v6025 = vpop.permute.xlu0 %6024
        %6028 = vset.pattern.permute.xlu0 0
        %6029 = vperm.xlu0 %6028, %v5719
        %v6030 = vpop.permute.xlu0 %6029
        %6033 = vset.pattern.permute.xlu0 0
        %6034 = vperm.xlu0 %6033, %v5721
        %v6035 = vpop.permute.xlu0 %6034
        %6038 = vset.pattern.permute.xlu0 0
        %6039 = vperm.xlu0 %6038, %v5723
        %v6040 = vpop.permute.xlu0 %6039
        %6043 = vset.pattern.permute.xlu0 0
        %6044 = vperm.xlu0 %6043, %v5725
        %v6045 = vpop.permute.xlu0 %6044
        %v6047 = vmul.f32 %v5970, %v5951
        %v6048 = vmul.f32 %v5975, %v5952
        %v6049 = vmul.f32 %v5980, %v5953
        %v6050 = vmul.f32 %v5985, %v5954
        %v6051 = vmul.f32 %v5990, %v5955
        %v6052 = vmul.f32 %v5995, %v5956
        %v6053 = vmul.f32 %v6000, %v5957
        %v6054 = vmul.f32 %v6005, %v5958
        %v6055 = vmul.f32 %v6010, %v5959
        %v6056 = vmul.f32 %v6015, %v5960
        %v6057 = vmul.f32 %v6020, %v5961
        %v6058 = vmul.f32 %v6025, %v5962
        %v6059 = vmul.f32 %v6030, %v5963
        %v6060 = vmul.f32 %v6035, %v5964
        %v6061 = vmul.f32 %v6040, %v5965
        %v6062 = vmul.f32 %v6045, %v5966
        %v6063 = vld [vmem:[%s402] sm:$0xff]
        %v6064 = vld [vmem:[%s402 + $0x8] sm:$0xff]
        %v6065 = vld [vmem:[%s402 + $0x10] sm:$0xff]
        %v6066 = vld [vmem:[%s402 + $0x18] sm:$0xff]
        %v6067 = vld [vmem:[%s402 + $0x20] sm:$0xff]
        %v6068 = vld [vmem:[%s402 + $0x28] sm:$0xff]
        %v6069 = vld [vmem:[%s402 + $0x30] sm:$0xff]
        %v6070 = vld [vmem:[%s402 + $0x38] sm:$0xff]
        %v6071 = vld [vmem:[%s402 + $0x40] sm:$0xff]
        %v6072 = vld [vmem:[%s402 + $0x48] sm:$0xff]
        %v6073 = vld [vmem:[%s402 + $0x50] sm:$0xff]
        %v6074 = vld [vmem:[%s402 + $0x58] sm:$0xff]
        %v6075 = vld [vmem:[%s402 + $0x60] sm:$0xff]
        %v6076 = vld [vmem:[%s402 + $0x68] sm:$0xff]
        %v6077 = vld [vmem:[%s402 + $0x70] sm:$0xff]
        %v6078 = vld [vmem:[%s402 + $0x78] sm:$0xff]
        %6079 = vmatprep.subr.mxu0 0.0
        %6080 = vmatpush1.msra.mxu0 %v6078
        %6081 = vmatprep.subr.mxu0 0.0
        %6082 = vmatpush1.msra.mxu0 %v6077
        %6083 = vmatprep.subr.mxu0 0.0
        %6084 = vmatpush1.msra.mxu0 %v6076
        %6085 = vmatprep.subr.mxu0 0.0
        %6086 = vmatpush1.msra.mxu0 %v6075
        %6087 = vmatprep.subr.mxu0 0.0
        %6088 = vmatpush1.msra.mxu0 %v6074
        %6089 = vmatprep.subr.mxu0 0.0
        %6090 = vmatpush1.msra.mxu0 %v6073
        %6091 = vmatprep.subr.mxu0 0.0
        %6092 = vmatpush1.msra.mxu0 %v6072
        %6093 = vmatprep.subr.mxu0 0.0
        %6094 = vmatpush1.msra.mxu0 %v6071
        %6095 = vmatprep.subr.mxu0 0.0
        %6096 = vmatpush1.msra.mxu0 %v6070
        %6097 = vmatprep.subr.mxu0 0.0
        %6098 = vmatpush1.msra.mxu0 %v6069
        %6099 = vmatprep.subr.mxu0 0.0
        %6100 = vmatpush1.msra.mxu0 %v6068
        %6101 = vmatprep.subr.mxu0 0.0
        %6102 = vmatpush1.msra.mxu0 %v6067
        %6103 = vmatprep.subr.mxu0 0.0
        %6104 = vmatpush1.msra.mxu0 %v6066
        %6105 = vmatprep.subr.mxu0 0.0
        %6106 = vmatpush1.msra.mxu0 %v6065
        %6107 = vmatprep.subr.mxu0 0.0
        %6108 = vmatpush1.msra.mxu0 %v6064
        %6109 = vmatprep.subr.mxu0 0.0
        %6110 = vmatpush1.msra.mxu0 %v6063
        %6111 = vmatprep.subr.mxu0 0.0
        %6112 = vmatpush2.msra.mxu0 0.0
        %6113 = vmatprep.subr.mxu0 0.0
        %6114 = vmatpush2.msra.mxu0 0.0
        %6115 = vmatprep.subr.mxu0 0.0
        %6116 = vmatpush2.msra.mxu0 0.0
        %6117 = vmatprep.subr.mxu0 0.0
        %6118 = vmatpush2.msra.mxu0 0.0
        %6119 = vmatprep.subr.mxu0 0.0
        %6120 = vmatpush2.msra.mxu0 0.0
        %6121 = vmatprep.subr.mxu0 0.0
        %6122 = vmatpush2.msra.mxu0 0.0
        %6123 = vmatprep.subr.mxu0 0.0
        %6124 = vmatpush2.msra.mxu0 0.0
        %6125 = vmatprep.subr.mxu0 0.0
        %6126 = vmatpush2.msra.mxu0 0.0
        %6127 = vmatprep.subr.mxu0 0.0
        %6128 = vmatpush2.msra.mxu0 0.0
        %6129 = vmatprep.subr.mxu0 0.0
        %6130 = vmatpush2.msra.mxu0 0.0
        %6131 = vmatprep.subr.mxu0 0.0
        %6132 = vmatpush2.msra.mxu0 0.0
        %6133 = vmatprep.subr.mxu0 0.0
        %6134 = vmatpush2.msra.mxu0 0.0
        %6135 = vmatprep.subr.mxu0 0.0
        %6136 = vmatpush2.msra.mxu0 0.0
        %6137 = vmatprep.subr.mxu0 0.0
        %6138 = vmatpush2.msra.mxu0 0.0
        %6139 = vmatprep.subr.mxu0 0.0
        %6140 = vmatpush2.msra.mxu0 0.0
        %6141 = vmatprep.subr.mxu0 0.0
        %6142 = vmatpush2.msra.mxu0 0.0
        %6143 = vmatprep.mubr.f32.mxu0 0.0
        %6144 = vmatmul.mubr.f32.gmra.mxu0 %v5823
        %v6145 = vpop.f32.mrf.mxu0
        %v6146 = vadd.f32 0.0, %v6145
        %v6147 = vpop.f32.mrf.mxu0
        %6148 = vmatprep.mubr.f32.mxu0 0.0
        %6149 = vmatmul.mubr.f32.gmra.mxu0 %v5825
        %v6150 = vpop.f32.mrf.mxu0
        %v6151 = vadd.f32 0.0, %v6150
        %v6152 = vpop.f32.mrf.mxu0
        %6153 = vmatprep.mubr.f32.mxu0 0.0
        %6154 = vmatmul.mubr.f32.gmra.mxu0 %v5827
        %v6155 = vpop.f32.mrf.mxu0
        %v6156 = vadd.f32 0.0, %v6155
        %v6157 = vpop.f32.mrf.mxu0
        %6158 = vmatprep.mubr.f32.mxu0 0.0
        %6159 = vmatmul.mubr.f32.gmra.mxu0 %v5829
        %v6160 = vpop.f32.mrf.mxu0
        %v6161 = vadd.f32 0.0, %v6160
        %v6162 = vpop.f32.mrf.mxu0
        %6163 = vmatprep.mubr.f32.mxu0 0.0
        %6164 = vmatmul.mubr.f32.gmra.mxu0 %v5831
        %v6165 = vpop.f32.mrf.mxu0
        %v6166 = vadd.f32 0.0, %v6165
        %v6167 = vpop.f32.mrf.mxu0
        %6168 = vmatprep.mubr.f32.mxu0 0.0
        %6169 = vmatmul.mubr.f32.gmra.mxu0 %v5833
        %v6170 = vpop.f32.mrf.mxu0
        %v6171 = vadd.f32 0.0, %v6170
        %v6172 = vpop.f32.mrf.mxu0
        %6173 = vmatprep.mubr.f32.mxu0 0.0
        %6174 = vmatmul.mubr.f32.gmra.mxu0 %v5835
        %v6175 = vpop.f32.mrf.mxu0
        %v6176 = vadd.f32 0.0, %v6175
        %v6177 = vpop.f32.mrf.mxu0
        %6178 = vmatprep.mubr.f32.mxu0 0.0
        %6179 = vmatmul.mubr.f32.gmra.mxu0 %v5837
        %v6180 = vpop.f32.mrf.mxu0
        %v6181 = vadd.f32 0.0, %v6180
        %v6182 = vpop.f32.mrf.mxu0
        %6183 = vmatprep.mubr.f32.mxu0 0.0
        %6184 = vmatmul.mubr.f32.gmra.mxu0 %v5839
        %v6185 = vpop.f32.mrf.mxu0
        %v6186 = vadd.f32 0.0, %v6185
        %v6187 = vpop.f32.mrf.mxu0
        %6188 = vmatprep.mubr.f32.mxu0 0.0
        %6189 = vmatmul.mubr.f32.gmra.mxu0 %v5841
        %v6190 = vpop.f32.mrf.mxu0
        %v6191 = vadd.f32 0.0, %v6190
        %v6192 = vpop.f32.mrf.mxu0
        %6193 = vmatprep.mubr.f32.mxu0 0.0
        %6194 = vmatmul.mubr.f32.gmra.mxu0 %v5843
        %v6195 = vpop.f32.mrf.mxu0
        %v6196 = vadd.f32 0.0, %v6195
        %v6197 = vpop.f32.mrf.mxu0
        %6198 = vmatprep.mubr.f32.mxu0 0.0
        %6199 = vmatmul.mubr.f32.gmra.mxu0 %v5845
        %v6200 = vpop.f32.mrf.mxu0
        %v6201 = vadd.f32 0.0, %v6200
        %v6202 = vpop.f32.mrf.mxu0
        %6203 = vmatprep.mubr.f32.mxu0 0.0
        %6204 = vmatmul.mubr.f32.gmra.mxu0 %v5847
        %v6205 = vpop.f32.mrf.mxu0
        %v6206 = vadd.f32 0.0, %v6205
        %v6207 = vpop.f32.mrf.mxu0
        %6208 = vmatprep.mubr.f32.mxu0 0.0
        %6209 = vmatmul.mubr.f32.gmra.mxu0 %v5849
        %v6210 = vpop.f32.mrf.mxu0
        %v6211 = vadd.f32 0.0, %v6210
        %v6212 = vpop.f32.mrf.mxu0
        %6213 = vmatprep.mubr.f32.mxu0 0.0
        %6214 = vmatmul.mubr.f32.gmra.mxu0 %v5851
        %v6215 = vpop.f32.mrf.mxu0
        %v6216 = vadd.f32 0.0, %v6215
        %v6217 = vpop.f32.mrf.mxu0
        %6218 = vmatprep.mubr.f32.mxu0 0.0
        %6219 = vmatmul.mubr.f32.gmra.mxu0 %v5853
        %v6220 = vpop.f32.mrf.mxu0
        %v6221 = vadd.f32 0.0, %v6220
        %v6222 = vpop.f32.mrf.mxu0
        %6223 = vdwg.mxu0
        %v6224 = vadd.f32 %v6047, %v6146
        %v6225 = vadd.f32 %v6048, %v6151
        %v6226 = vadd.f32 %v6049, %v6156
        %v6227 = vadd.f32 %v6050, %v6161
        %v6228 = vadd.f32 %v6051, %v6166
        %v6229 = vadd.f32 %v6052, %v6171
        %v6230 = vadd.f32 %v6053, %v6176
        %v6231 = vadd.f32 %v6054, %v6181
        %v6232 = vadd.f32 %v6055, %v6186
        %v6233 = vadd.f32 %v6056, %v6191
        %v6234 = vadd.f32 %v6057, %v6196
        %v6235 = vadd.f32 %v6058, %v6201
        %v6236 = vadd.f32 %v6059, %v6206
        %v6237 = vadd.f32 %v6060, %v6211
        %v6238 = vadd.f32 %v6061, %v6216
        %v6239 = vadd.f32 %v6062, %v6221
        %vm6240 = vcmask 261120
        %6241 = vst.msk [vmem:[#allocation5] sm:$0xff] %vm6240, %v6224
        %6242 = vst.msk [vmem:[#allocation5 + $0x8] sm:$0xff] %vm6240, %v6225
        %6243 = vst.msk [vmem:[#allocation5 + $0x10] sm:$0xff] %vm6240, %v6226
        %6244 = vst.msk [vmem:[#allocation5 + $0x18] sm:$0xff] %vm6240, %v6227
        %6245 = vst.msk [vmem:[#allocation5 + $0x20] sm:$0xff] %vm6240, %v6228
        %6246 = vst.msk [vmem:[#allocation5 + $0x28] sm:$0xff] %vm6240, %v6229
        %6247 = vst.msk [vmem:[#allocation5 + $0x30] sm:$0xff] %vm6240, %v6230
        %6248 = vst.msk [vmem:[#allocation5 + $0x38] sm:$0xff] %vm6240, %v6231
        %6249 = vst.msk [vmem:[#allocation5 + $0x40] sm:$0xff] %vm6240, %v6232
        %6250 = vst.msk [vmem:[#allocation5 + $0x48] sm:$0xff] %vm6240, %v6233
        %6251 = vst.msk [vmem:[#allocation5 + $0x50] sm:$0xff] %vm6240, %v6234
        %6252 = vst.msk [vmem:[#allocation5 + $0x58] sm:$0xff] %vm6240, %v6235
        %6253 = vst.msk [vmem:[#allocation5 + $0x60] sm:$0xff] %vm6240, %v6236
        %6254 = vst.msk [vmem:[#allocation5 + $0x68] sm:$0xff] %vm6240, %v6237
        %6255 = vst.msk [vmem:[#allocation5 + $0x70] sm:$0xff] %vm6240, %v6238
        %6256 = vst.msk [vmem:[#allocation5 + $0x78] sm:$0xff] %vm6240, %v6239
        %6257 = vst.msk [vmem:[#allocation3] sm:$0xff] %vm5934, %v5662
        %6258 = vst.msk [vmem:[#allocation3 + $0x8] sm:$0xff] %vm5934, %v5663
        %6259 = vst.msk [vmem:[#allocation3 + $0x10] sm:$0xff] %vm5934, %v5664
        %6260 = vst.msk [vmem:[#allocation3 + $0x18] sm:$0xff] %vm5934, %v5665
        %6261 = vst.msk [vmem:[#allocation3 + $0x20] sm:$0xff] %vm5934, %v5666
        %6262 = vst.msk [vmem:[#allocation3 + $0x28] sm:$0xff] %vm5934, %v5667
        %6263 = vst.msk [vmem:[#allocation3 + $0x30] sm:$0xff] %vm5934, %v5668
        %6264 = vst.msk [vmem:[#allocation3 + $0x38] sm:$0xff] %vm5934, %v5669
        %6265 = vst.msk [vmem:[#allocation3 + $0x40] sm:$0xff] %vm5934, %v5670
        %6266 = vst.msk [vmem:[#allocation3 + $0x48] sm:$0xff] %vm5934, %v5671
        %6267 = vst.msk [vmem:[#allocation3 + $0x50] sm:$0xff] %vm5934, %v5672
        %6268 = vst.msk [vmem:[#allocation3 + $0x58] sm:$0xff] %vm5934, %v5673
        %6269 = vst.msk [vmem:[#allocation3 + $0x60] sm:$0xff] %vm5934, %v5674
        %6270 = vst.msk [vmem:[#allocation3 + $0x68] sm:$0xff] %vm5934, %v5675
        %6271 = vst.msk [vmem:[#allocation3 + $0x70] sm:$0xff] %vm5934, %v5676
        %6272 = vst.msk [vmem:[#allocation3 + $0x78] sm:$0xff] %vm5934, %v5677
        %p6273 = scmp.eq.s32.totalorder %s23, 1
        // Predicated region
        $region125: #{tpu_custom_call.1} parent=111 // pred_check
          %p6274 = pneg %p6273
        $region126: #{tpu_custom_call.1} parent=111 // pred_check_branch
          %6276 = sbr.rel (%p6274) target = $region128
        $region127: #{tpu_custom_call.1} parent=111 // pred_region
          %v6277 = vld [vmem:[#allocation5] sm:$0xff]
          %v6278 = vld [vmem:[#allocation5 + $0x8] sm:$0xff]
          %v6279 = vld [vmem:[#allocation5 + $0x10] sm:$0xff]
          %v6280 = vld [vmem:[#allocation5 + $0x18] sm:$0xff]
          %v6281 = vld [vmem:[#allocation5 + $0x20] sm:$0xff]
          %v6282 = vld [vmem:[#allocation5 + $0x28] sm:$0xff]
          %v6283 = vld [vmem:[#allocation5 + $0x30] sm:$0xff]
          %v6284 = vld [vmem:[#allocation5 + $0x38] sm:$0xff]
          %v6285 = vld [vmem:[#allocation5 + $0x40] sm:$0xff]
          %v6286 = vld [vmem:[#allocation5 + $0x48] sm:$0xff]
          %v6287 = vld [vmem:[#allocation5 + $0x50] sm:$0xff]
          %v6288 = vld [vmem:[#allocation5 + $0x58] sm:$0xff]
          %v6289 = vld [vmem:[#allocation5 + $0x60] sm:$0xff]
          %v6290 = vld [vmem:[#allocation5 + $0x68] sm:$0xff]
          %v6291 = vld [vmem:[#allocation5 + $0x70] sm:$0xff]
          %v6292 = vld [vmem:[#allocation5 + $0x78] sm:$0xff]
          %v6293 = vld [vmem:[#allocation4] sm:$0xff]
          %v6294 = vld [vmem:[#allocation4 + $0x8] sm:$0xff]
          %v6295 = vld [vmem:[#allocation4 + $0x10] sm:$0xff]
          %v6296 = vld [vmem:[#allocation4 + $0x18] sm:$0xff]
          %v6297 = vld [vmem:[#allocation4 + $0x20] sm:$0xff]
          %v6298 = vld [vmem:[#allocation4 + $0x28] sm:$0xff]
          %v6299 = vld [vmem:[#allocation4 + $0x30] sm:$0xff]
          %v6300 = vld [vmem:[#allocation4 + $0x38] sm:$0xff]
          %v6301 = vld [vmem:[#allocation4 + $0x40] sm:$0xff]
          %v6302 = vld [vmem:[#allocation4 + $0x48] sm:$0xff]
          %v6303 = vld [vmem:[#allocation4 + $0x50] sm:$0xff]
          %v6304 = vld [vmem:[#allocation4 + $0x58] sm:$0xff]
          %v6305 = vld [vmem:[#allocation4 + $0x60] sm:$0xff]
          %v6306 = vld [vmem:[#allocation4 + $0x68] sm:$0xff]
          %v6307 = vld [vmem:[#allocation4 + $0x70] sm:$0xff]
          %v6308 = vld [vmem:[#allocation4 + $0x78] sm:$0xff]
          %v6309 = vrcp.pop %v6293
          %v6310 = vmul.f32 1.0, %v6309
          %v6311 = vrcp.pop %v6294
          %v6312 = vmul.f32 1.0, %v6311
          %v6313 = vrcp.pop %v6295
          %v6314 = vmul.f32 1.0, %v6313
          %v6315 = vrcp.pop %v6296
          %v6316 = vmul.f32 1.0, %v6315
          %v6317 = vrcp.pop %v6297
          %v6318 = vmul.f32 1.0, %v6317
          %v6319 = vrcp.pop %v6298
          %v6320 = vmul.f32 1.0, %v6319
          %v6321 = vrcp.pop %v6299
          %v6322 = vmul.f32 1.0, %v6321
          %v6323 = vrcp.pop %v6300
          %v6324 = vmul.f32 1.0, %v6323
          %v6325 = vrcp.pop %v6301
          %v6326 = vmul.f32 1.0, %v6325
          %v6327 = vrcp.pop %v6302
          %v6328 = vmul.f32 1.0, %v6327
          %v6329 = vrcp.pop %v6303
          %v6330 = vmul.f32 1.0, %v6329
          %v6331 = vrcp.pop %v6304
          %v6332 = vmul.f32 1.0, %v6331
          %v6333 = vrcp.pop %v6305
          %v6334 = vmul.f32 1.0, %v6333
          %v6335 = vrcp.pop %v6306
          %v6336 = vmul.f32 1.0, %v6335
          %v6337 = vrcp.pop %v6307
          %v6338 = vmul.f32 1.0, %v6337
          %v6339 = vrcp.pop %v6308
          %v6340 = vmul.f32 1.0, %v6339
          %6342 = vset.pattern.permute.xlu0 0
          %6343 = vperm.xlu0 %6342, %v6310
          %v6344 = vpop.permute.xlu0 %6343
          %6347 = vset.pattern.permute.xlu0 0
          %6348 = vperm.xlu0 %6347, %v6312
          %v6349 = vpop.permute.xlu0 %6348
          %6352 = vset.pattern.permute.xlu0 0
          %6353 = vperm.xlu0 %6352, %v6314
          %v6354 = vpop.permute.xlu0 %6353
          %6357 = vset.pattern.permute.xlu0 0
          %6358 = vperm.xlu0 %6357, %v6316
          %v6359 = vpop.permute.xlu0 %6358
          %6362 = vset.pattern.permute.xlu0 0
          %6363 = vperm.xlu0 %6362, %v6318
          %v6364 = vpop.permute.xlu0 %6363
          %6367 = vset.pattern.permute.xlu0 0
          %6368 = vperm.xlu0 %6367, %v6320
          %v6369 = vpop.permute.xlu0 %6368
          %6372 = vset.pattern.permute.xlu0 0
          %6373 = vperm.xlu0 %6372, %v6322
          %v6374 = vpop.permute.xlu0 %6373
          %6377 = vset.pattern.permute.xlu0 0
          %6378 = vperm.xlu0 %6377, %v6324
          %v6379 = vpop.permute.xlu0 %6378
          %6382 = vset.pattern.permute.xlu0 0
          %6383 = vperm.xlu0 %6382, %v6326
          %v6384 = vpop.permute.xlu0 %6383
          %6387 = vset.pattern.permute.xlu0 0
          %6388 = vperm.xlu0 %6387, %v6328
          %v6389 = vpop.permute.xlu0 %6388
          %6392 = vset.pattern.permute.xlu0 0
          %6393 = vperm.xlu0 %6392, %v6330
          %v6394 = vpop.permute.xlu0 %6393
          %6397 = vset.pattern.permute.xlu0 0
          %6398 = vperm.xlu0 %6397, %v6332
          %v6399 = vpop.permute.xlu0 %6398
          %6402 = vset.pattern.permute.xlu0 0
          %6403 = vperm.xlu0 %6402, %v6334
          %v6404 = vpop.permute.xlu0 %6403
          %6407 = vset.pattern.permute.xlu0 0
          %6408 = vperm.xlu0 %6407, %v6336
          %v6409 = vpop.permute.xlu0 %6408
          %6412 = vset.pattern.permute.xlu0 0
          %6413 = vperm.xlu0 %6412, %v6338
          %v6414 = vpop.permute.xlu0 %6413
          %6417 = vset.pattern.permute.xlu0 0
          %6418 = vperm.xlu0 %6417, %v6340
          %v6419 = vpop.permute.xlu0 %6418
          %v6421 = vmul.f32 %v6277, %v6344
          %v6422 = vmul.f32 %v6278, %v6349
          %v6423 = vmul.f32 %v6279, %v6354
          %v6424 = vmul.f32 %v6280, %v6359
          %v6425 = vmul.f32 %v6281, %v6364
          %v6426 = vmul.f32 %v6282, %v6369
          %v6427 = vmul.f32 %v6283, %v6374
          %v6428 = vmul.f32 %v6284, %v6379
          %v6429 = vmul.f32 %v6285, %v6384
          %v6430 = vmul.f32 %v6286, %v6389
          %v6431 = vmul.f32 %v6287, %v6394
          %v6432 = vmul.f32 %v6288, %v6399
          %v6433 = vmul.f32 %v6289, %v6404
          %v6434 = vmul.f32 %v6290, %v6409
          %v6435 = vmul.f32 %v6291, %v6414
          %v6436 = vmul.f32 %v6292, %v6419
          %6437 = vst.msk [vmem:[%s408] sm:$0xff] %vm6240, %v6421
          %6438 = vst.msk [vmem:[%s408 + $0x8] sm:$0xff] %vm6240, %v6422
          %6439 = vst.msk [vmem:[%s408 + $0x10] sm:$0xff] %vm6240, %v6423
          %6440 = vst.msk [vmem:[%s408 + $0x18] sm:$0xff] %vm6240, %v6424
          %6441 = vst.msk [vmem:[%s408 + $0x20] sm:$0xff] %vm6240, %v6425
          %6442 = vst.msk [vmem:[%s408 + $0x28] sm:$0xff] %vm6240, %v6426
          %6443 = vst.msk [vmem:[%s408 + $0x30] sm:$0xff] %vm6240, %v6427
          %6444 = vst.msk [vmem:[%s408 + $0x38] sm:$0xff] %vm6240, %v6428
          %6445 = vst.msk [vmem:[%s408 + $0x40] sm:$0xff] %vm6240, %v6429
          %6446 = vst.msk [vmem:[%s408 + $0x48] sm:$0xff] %vm6240, %v6430
          %6447 = vst.msk [vmem:[%s408 + $0x50] sm:$0xff] %vm6240, %v6431
          %6448 = vst.msk [vmem:[%s408 + $0x58] sm:$0xff] %vm6240, %v6432
          %6449 = vst.msk [vmem:[%s408 + $0x60] sm:$0xff] %vm6240, %v6433
          %6450 = vst.msk [vmem:[%s408 + $0x68] sm:$0xff] %vm6240, %v6434
          %6451 = vst.msk [vmem:[%s408 + $0x70] sm:$0xff] %vm6240, %v6435
          %6452 = vst.msk [vmem:[%s408 + $0x78] sm:$0xff] %vm6240, %v6436
        $region128: #{tpu_custom_call.1} parent=111 // pred_fallthru
          _
        %s6453 = smul.u32 16, %s22
        %p6454 = scmp.lt.s32.totalorder %s6453, 31
        %s6455 = scalar_select %p6454, %s6453, 31
        %s6456 = smul.addr %s6455, 8
        %s6457 = scalar_lea.vmem %s6, %s6456
        // Predicated region
        $region129: #{tpu_custom_call.1} parent=111 // pred_check
          %p6458 = pneg %p189
        $region130: #{tpu_custom_call.1} parent=111 // pred_check_branch
          %6460 = sbr.rel (%p6458) target = $region132
        $region131: #{tpu_custom_call.1} parent=111 // pred_region
          %s6461 = smul.u32 16, %s22
        $region132: #{tpu_custom_call.1} parent=111 // pred_fallthru
          _
      $region112: #{tpu_custom_call.1} parent=5 // pred_fallthru
        _
      %p6462 = scmp.le.s32.totalorder 2, %s13
      // Predicated region
      $region133: #{tpu_custom_call.1} parent=5 // pred_check
        %p6463 = pneg %p6462
      $region134: #{tpu_custom_call.1} parent=5 // pred_check_branch
        %6465 = sbr.rel (%p6463) target = $region136
      $region135: #{tpu_custom_call.1} parent=5 // pred_region
        %s6466 = ssub.s32 %s13, 2
        // Predicated region
        $region137: #{tpu_custom_call.1} parent=135 // pred_check
          %p6467 = pneg %p195
        $region138: #{tpu_custom_call.1} parent=135 // pred_check_branch
          %6469 = sbr.rel (%p6467) target = $region140
        $region139: #{tpu_custom_call.1} parent=135 // pred_region
          %s6470 = smul.u32 16, %s24
          %p6471 = scmp.lt.s32.totalorder %s6470, 31
          %s6472 = scalar_select %p6471, %s6470, 31
          %s6473 = smul.addr %s6472, 8
          %s6474 = scalar_lea.vmem %s6, %s6473
        $region140: #{tpu_custom_call.1} parent=135 // pred_fallthru
          _
      $region136: #{tpu_custom_call.1} parent=5 // pred_fallthru
        _
    $region6: #{tpu_custom_call.1} parent=1 // loop_footer
      %s17 = sadd.s32 1, %s13
    $region7: #{tpu_custom_call.1} parent=1 // loop_footer_branch
      %12 = sbr.rel target = $region3
    $region8: #{tpu_custom_call.1} parent=1 // loop_exit
      _

</llo_original>
